<compile_context>
chip_gen: v7x
topology: tpu7x:2x2x1
jax: 0.10.0
libtpu: 0.0.40
codegen_flags: <defaults>
</compile_context>

<pallas_src>
import jax
import jax.numpy as jnp
from jax import lax
from jax.experimental import pallas as pl
from jax.experimental.pallas import tpu as pltpu


def sent_encoder_kernel(
    x_ref,       # [T, TB, E]  bf16 embedded tokens (time-major batch tile)
    lens_ref,    # [TB, 1]     int32 packed-seq lengths (= count_nonzero + 1)
    wih_ref,     # [E, 8H]     bf16  input weights, fwd 0:4H / bwd 4H:8H (i,f,g,o)
    ball_ref,    # [1, 8H]     f32   fused biases (b_ih + b_hh), both directions
    whh_f_ref,   # [H, 4H]     bf16  forward recurrent weights
    whh_b_ref,   # [H, 4H]     bf16  backward recurrent weights
    fcw_f_ref,   # [H, 2H]     bf16  attention fc weight.T, forward half
    fcw_b_ref,   # [H, 2H]     bf16  attention fc weight.T, backward half
    fcb_ref,     # [1, 2H]     f32   attention fc bias
    u_ref,       # [1, 2H]     f32   attention context vector
    o_ref,       # [TB, 2H]    f32   output feature
    out_f_ref,   # [T, TB, H]  f32 scratch: masked forward hidden outputs
    out_b_ref,   # [T, TB, H]  f32 scratch: masked backward hidden outputs
):
    T, TB, E = x_ref.shape
    H = whh_f_ref.shape[0]

    lens = lens_ref[...]                                   # [TB, 1] int32

    # ---- hoisted input projection for both directions (one MXU matmul) ----
    # Flatten time into rows via concat (keeps lane dim unchanged; no reshape).
    x2d = jnp.concatenate([x_ref[t] for t in range(T)], axis=0)       # [T*TB, E]
    xg = (jnp.dot(x2d, wih_ref[...], preferred_element_type=jnp.float32)
          + ball_ref[...])                                            # [T*TB, 8H] f32

    # ---- precomputed validity masks, broadcast to H lanes ----
    t_iota = lax.broadcasted_iota(jnp.int32, (T, TB, H), 0)
    mask = (t_iota < lens[None, :, :]).astype(jnp.float32)            # [T, TB, H]

    whh_f = whh_f_ref[...]
    whh_b = whh_b_ref[...]

    def gate_update(gates, c):
        # gates: [TB, 4H] f32 pre-activations (input term + recurrent term)
        i_g = jax.nn.sigmoid(gates[:, 0:H])
        f_g = jax.nn.sigmoid(gates[:, H:2 * H])
        g_g = jnp.tanh(gates[:, 2 * H:3 * H])
        o_g = jax.nn.sigmoid(gates[:, 3 * H:4 * H])
        c_new = f_g * c + i_g * g_g
        h_new = o_g * jnp.tanh(c_new)
        return h_new, c_new

    zero = jnp.zeros((TB, H), jnp.float32)
    h_f, c_f, h_b, c_b = zero, zero, zero, zero

    # ---- fused fwd+bwd recurrence, fully unrolled (T is small & static) ----
    # Every slice / ref index below is static, so the scheduler sees straight-
    # line code; only h @ W_hh remains on the serial critical path per step.
    for s in range(T):
        sb = T - 1 - s
        ig_f = xg[s * TB:(s + 1) * TB, 0:4 * H]            # [TB, 4H]
        ig_b = xg[sb * TB:(sb + 1) * TB, 4 * H:8 * H]

        g_f = ig_f + jnp.dot(h_f.astype(jnp.bfloat16), whh_f,
                             preferred_element_type=jnp.float32)
        g_b = ig_b + jnp.dot(h_b.astype(jnp.bfloat16), whh_b,
                             preferred_element_type=jnp.float32)

        hn_f, cn_f = gate_update(g_f, c_f)
        hn_b, cn_b = gate_update(g_b, c_b)

        m_f = mask[s]                                      # [TB, H]
        m_b = mask[sb]
        h_f = h_f + m_f * (hn_f - h_f)
        c_f = c_f + m_f * (cn_f - c_f)
        h_b = h_b + m_b * (hn_b - h_b)
        c_b = c_b + m_b * (cn_b - c_b)

        out_f_ref[s] = h_f * m_f                           # zero at padded steps
        out_b_ref[sb] = h_b * m_b

    # ---- attention pooling (all batched, off the recurrent path) ----
    out_f2d = jnp.concatenate([out_f_ref[t] for t in range(T)], axis=0)   # [T*TB, H]
    out_b2d = jnp.concatenate([out_b_ref[t] for t in range(T)], axis=0)
    pre = (jnp.dot(out_f2d.astype(jnp.bfloat16), fcw_f_ref[...],
                   preferred_element_type=jnp.float32)
           + jnp.dot(out_b2d.astype(jnp.bfloat16), fcw_b_ref[...],
                     preferred_element_type=jnp.float32)
           + fcb_ref[...])                                                # [T*TB, 2H]
    h_att = jnp.tanh(pre)
    scores = jnp.sum(h_att * u_ref[...], axis=-1, keepdims=True)          # [T*TB, 1]

    neg = jnp.float32(-1e32)
    s_list = []
    for t in range(T):
        s_t = scores[t * TB:(t + 1) * TB, :]               # [TB, 1]
        v_t = mask[t][:, 0:1]                              # [TB, 1] 1.0 / 0.0
        s_list.append(jnp.where(v_t > 0.0, s_t, neg))

    s_max = s_list[0]
    for t in range(1, T):
        s_max = jnp.maximum(s_max, s_list[t])
    e_list = [jnp.exp(s_t - s_max) for s_t in s_list]
    denom = e_list[0]
    for t in range(1, T):
        denom = denom + e_list[t]
    inv = pl.reciprocal(denom, approx=True)                # [TB, 1]

    feat_f = jnp.zeros((TB, H), jnp.float32)
    feat_b = jnp.zeros((TB, H), jnp.float32)
    for t in range(T):
        a_t = e_list[t] * inv                              # [TB, 1]
        feat_f = feat_f + a_t * out_f_ref[t]
        feat_b = feat_b + a_t * out_b_ref[t]

    o_ref[:, 0:H] = feat_f
    o_ref[:, H:2 * H] = feat_b


def init_params(key, vocab_size, emb_dim, hid_dim):
    ks = jax.random.split(key, 10)
    scale = 0.1

    def rnd(k, shape):
        return jax.random.normal(k, shape, jnp.float32) * scale

    emb = rnd(ks[0], (vocab_size, emb_dim)).at[0].set(0.0)   # padding_idx = 0
    return dict(
        emb=emb,
        wih_f=rnd(ks[1], (emb_dim, 4 * hid_dim)),
        whh_f=rnd(ks[2], (hid_dim, 4 * hid_dim)),
        b_f=rnd(ks[3], (1, 4 * hid_dim)),
        wih_b=rnd(ks[4], (emb_dim, 4 * hid_dim)),
        whh_b=rnd(ks[5], (hid_dim, 4 * hid_dim)),
        b_b=rnd(ks[6], (1, 4 * hid_dim)),
        fcw=rnd(ks[7], (2 * hid_dim, 2 * hid_dim)),   # fc.weight.T: (in, out)
        fcb=rnd(ks[8], (1, 2 * hid_dim)),
        u=rnd(ks[9], (1, 2 * hid_dim)),
    )


def sent_encoder_forward(sent_list, params, hid_dim):
    B, T = sent_list.shape
    H = hid_dim
    E = params['emb'].shape[1]

    # Embedding lookup (glue, plain JAX gather); padding rows are zero.
    x = jnp.take(params['emb'], sent_list, axis=0)                    # [B, T, E]
    x_tbe = jnp.transpose(x, (1, 0, 2)).astype(jnp.bfloat16)          # [T, B, E]
    # PyTorch: lens = count_nonzero(dim=1) + 1 (pack includes one pad step).
    # Clamp to T: pack_padded_sequence would raise for lens > T; we stay defined.
    lens = jnp.minimum(jnp.count_nonzero(sent_list, axis=1) + 1, T)
    lens = lens.astype(jnp.int32).reshape(B, 1)

    # MXU operands in bf16 (f32 accumulate inside the kernel); biases f32.
    wih_all = jnp.concatenate([params['wih_f'], params['wih_b']],
                              axis=1).astype(jnp.bfloat16)            # [E, 8H]
    b_all = jnp.concatenate([params['b_f'], params['b_b']],
                            axis=1).astype(jnp.float32)               # [1, 8H]
    whh_f = params['whh_f'].astype(jnp.bfloat16)
    whh_b = params['whh_b'].astype(jnp.bfloat16)
    fcw_f = params['fcw'][:H, :].astype(jnp.bfloat16)                 # [H, 2H]
    fcw_b = params['fcw'][H:, :].astype(jnp.bfloat16)
    fcb = params['fcb'].astype(jnp.float32)
    u = params['u'].astype(jnp.float32)

    # Batch tile: full batch when small, else 8-row (sublane aligned) tiles so
    # the parallel grid can shard across TensorCores (v7x) and pipeline x.
    tb = B if B <= 8 else 8
    assert B % tb == 0, "batch must be a multiple of the batch tile"
    grid = (B // tb,)

    def full(shape):
        return pl.BlockSpec(shape, lambda i: (0,) * len(shape))

    in_specs = [
        pl.BlockSpec((T, tb, E), lambda i: (0, i, 0)),     # x
        pl.BlockSpec((tb, 1), lambda i: (i, 0)),           # lens
        full((E, 8 * H)),                                  # wih_all
        full((1, 8 * H)),                                  # b_all
        full((H, 4 * H)),                                  # whh_f
        full((H, 4 * H)),                                  # whh_b
        full((H, 2 * H)),                                  # fcw_f
        full((H, 2 * H)),                                  # fcw_b
        full((1, 2 * H)),                                  # fcb
        full((1, 2 * H)),                                  # u
    ]
    out_spec = pl.BlockSpec((tb, 2 * H), lambda i: (i, 0))

    flops = (2 * T * B * E * 8 * H            # hoisted input projection (both dirs)
             + 2 * T * B * H * 4 * H * 2      # recurrent matmuls
             + 2 * T * B * H * 2 * H * 2      # attention fc
             + 2 * T * B * 2 * H)             # score contraction
    transcendentals = T * B * (2 * 5 * H + 2 * H) + T * B + B
    bytes_accessed = (x_tbe.size * 2 + lens.size * 4
                      + (wih_all.size + whh_f.size + whh_b.size
                         + fcw_f.size + fcw_b.size) * 2
                      + (b_all.size + fcb.size + u.size) * 4
                      + B * 2 * H * 4)

    return pl.pallas_call(
        sent_encoder_kernel,
        out_shape=jax.ShapeDtypeStruct((B, 2 * H), jnp.float32),
        grid=grid,
        in_specs=in_specs,
        out_specs=out_spec,
        scratch_shapes=[
            pltpu.VMEM((T, tb, H), jnp.float32),   # forward hidden outputs
            pltpu.VMEM((T, tb, H), jnp.float32),   # backward hidden outputs
        ],
        compiler_params=pltpu.CompilerParams(
            dimension_semantics=("parallel",)),
        cost_estimate=pl.CostEstimate(
            flops=flops,
            transcendentals=transcendentals,
            bytes_accessed=bytes_accessed),
    )(x_tbe, lens, wih_all, b_all, whh_f, whh_b, fcw_f, fcw_b, fcb, u)


if __name__ == "__main__":
    B, T, EMB, HID = 2, 8, 32, 32
    VOCAB = 35549                              # as in IngrEmbedLayer.__init__
    key = jax.random.PRNGKey(0)
    kp, kd = jax.random.split(key)

    params = init_params(kp, VOCAB, EMB, HID)

    # Token ids with zero padding so that lens = nnz + 1 <= T (pack_padded requirement).
    toks = jax.random.randint(kd, (B, T), 1, 200, dtype=jnp.int32)
    nnz = jnp.array([5, 3], dtype=jnp.int32)
    col = jnp.arange(T, dtype=jnp.int32)[None, :]
    toks = jnp.where(col < nnz[:, None], toks, 0)

    feat = sent_encoder_forward(toks, params, HID)
    feat = jax.block_until_ready(feat)
    assert feat.shape == (B, 2 * HID)
    assert bool(jnp.all(jnp.isfinite(feat)))
    print("KERNEL_OK")
</pallas_src>

<mosaic_0001>
module attributes {stable_mosaic.version = 11 : i64} {
  func.func @sent_encoder_kernel(%arg0: i32, %arg1: memref<8x2x32xbf16, #tpu.memory_space<vmem>>, %arg2: memref<2x1xi32, #tpu.memory_space<vmem>>, %arg3: memref<32x256xbf16, #tpu.memory_space<vmem>>, %arg4: memref<1x256xf32, #tpu.memory_space<vmem>>, %arg5: memref<32x128xbf16, #tpu.memory_space<vmem>>, %arg6: memref<32x128xbf16, #tpu.memory_space<vmem>>, %arg7: memref<32x64xbf16, #tpu.memory_space<vmem>>, %arg8: memref<32x64xbf16, #tpu.memory_space<vmem>>, %arg9: memref<1x64xf32, #tpu.memory_space<vmem>>, %arg10: memref<1x64xf32, #tpu.memory_space<vmem>>, %arg11: memref<2x64xf32, #tpu.memory_space<vmem>>, %arg12: memref<8x2x32xf32, #tpu.memory_space<vmem>>, %arg13: memref<8x2x32xf32, #tpu.memory_space<vmem>>) attributes {dimension_semantics = [#tpu.dimension_semantics<parallel>], iteration_bounds = array<i64: 1>, scalar_prefetch = 0 : i64, scratch_operands = 2 : i64, tpu.core_type = #tpu.core_type<tc>, window_params = [{transform_indices = @transform_0, window_bounds = array<i64: 8, 2, 32>}, {transform_indices = @transform_1, window_bounds = array<i64: 2, 1>}, {pipeline_mode = #tpu.pipeline_mode<synchronous>, transform_indices = @transform_2, window_bounds = array<i64: 32, 256>}, {pipeline_mode = #tpu.pipeline_mode<synchronous>, transform_indices = @transform_3, window_bounds = array<i64: 1, 256>}, {pipeline_mode = #tpu.pipeline_mode<synchronous>, transform_indices = @transform_4, window_bounds = array<i64: 32, 128>}, {pipeline_mode = #tpu.pipeline_mode<synchronous>, transform_indices = @transform_5, window_bounds = array<i64: 32, 128>}, {pipeline_mode = #tpu.pipeline_mode<synchronous>, transform_indices = @transform_6, window_bounds = array<i64: 32, 64>}, {pipeline_mode = #tpu.pipeline_mode<synchronous>, transform_indices = @transform_7, window_bounds = array<i64: 32, 64>}, {pipeline_mode = #tpu.pipeline_mode<synchronous>, transform_indices = @transform_8, window_bounds = array<i64: 1, 64>}, {pipeline_mode = #tpu.pipeline_mode<synchronous>, transform_indices = @transform_9, window_bounds = array<i64: 1, 64>}, {transform_indices = @transform_10, window_bounds = array<i64: 2, 64>}]} {
    %c0 = arith.constant 0 : index
    %c0_0 = arith.constant 0 : index
    %0 = vector.load %arg2[%c0, %c0_0] : memref<2x1xi32, #tpu.memory_space<vmem>>, vector<2x1xi32>
    %c0_1 = arith.constant 0 : index
    %c0_2 = arith.constant 0 : index
    %c0_3 = arith.constant 0 : index
    %1 = vector.load %arg1[%c0_1, %c0_2, %c0_3] : memref<8x2x32xbf16, #tpu.memory_space<vmem>>, vector<1x2x32xbf16>
    %2 = vector.shape_cast %1 : vector<1x2x32xbf16> to vector<2x32xbf16>
    %c1 = arith.constant 1 : index
    %c0_4 = arith.constant 0 : index
    %c0_5 = arith.constant 0 : index
    %3 = vector.load %arg1[%c1, %c0_4, %c0_5] : memref<8x2x32xbf16, #tpu.memory_space<vmem>>, vector<1x2x32xbf16>
    %4 = vector.shape_cast %3 : vector<1x2x32xbf16> to vector<2x32xbf16>
    %c2 = arith.constant 2 : index
    %c0_6 = arith.constant 0 : index
    %c0_7 = arith.constant 0 : index
    %5 = vector.load %arg1[%c2, %c0_6, %c0_7] : memref<8x2x32xbf16, #tpu.memory_space<vmem>>, vector<1x2x32xbf16>
    %6 = vector.shape_cast %5 : vector<1x2x32xbf16> to vector<2x32xbf16>
    %c3 = arith.constant 3 : index
    %c0_8 = arith.constant 0 : index
    %c0_9 = arith.constant 0 : index
    %7 = vector.load %arg1[%c3, %c0_8, %c0_9] : memref<8x2x32xbf16, #tpu.memory_space<vmem>>, vector<1x2x32xbf16>
    %8 = vector.shape_cast %7 : vector<1x2x32xbf16> to vector<2x32xbf16>
    %c4 = arith.constant 4 : index
    %c0_10 = arith.constant 0 : index
    %c0_11 = arith.constant 0 : index
    %9 = vector.load %arg1[%c4, %c0_10, %c0_11] : memref<8x2x32xbf16, #tpu.memory_space<vmem>>, vector<1x2x32xbf16>
    %10 = vector.shape_cast %9 : vector<1x2x32xbf16> to vector<2x32xbf16>
    %c5 = arith.constant 5 : index
    %c0_12 = arith.constant 0 : index
    %c0_13 = arith.constant 0 : index
    %11 = vector.load %arg1[%c5, %c0_12, %c0_13] : memref<8x2x32xbf16, #tpu.memory_space<vmem>>, vector<1x2x32xbf16>
    %12 = vector.shape_cast %11 : vector<1x2x32xbf16> to vector<2x32xbf16>
    %c6 = arith.constant 6 : index
    %c0_14 = arith.constant 0 : index
    %c0_15 = arith.constant 0 : index
    %13 = vector.load %arg1[%c6, %c0_14, %c0_15] : memref<8x2x32xbf16, #tpu.memory_space<vmem>>, vector<1x2x32xbf16>
    %14 = vector.shape_cast %13 : vector<1x2x32xbf16> to vector<2x32xbf16>
    %c7 = arith.constant 7 : index
    %c0_16 = arith.constant 0 : index
    %c0_17 = arith.constant 0 : index
    %15 = vector.load %arg1[%c7, %c0_16, %c0_17] : memref<8x2x32xbf16, #tpu.memory_space<vmem>>, vector<1x2x32xbf16>
    %16 = vector.shape_cast %15 : vector<1x2x32xbf16> to vector<2x32xbf16>
    %17 = tpu.concatenate %2, %4, %6, %8, %10, %12, %14, %16 in 0 : vector<2x32xbf16>, vector<2x32xbf16>, vector<2x32xbf16>, vector<2x32xbf16>, vector<2x32xbf16>, vector<2x32xbf16>, vector<2x32xbf16>, vector<2x32xbf16> -> vector<16x32xbf16>
    %c0_18 = arith.constant 0 : index
    %c0_19 = arith.constant 0 : index
    %18 = vector.load %arg3[%c0_18, %c0_19] : memref<32x256xbf16, #tpu.memory_space<vmem>>, vector<32x256xbf16>
    %cst = arith.constant dense<0.000000e+00> : vector<16x256xf32>
    %19 = tpu.matmul %17, %18, %cst {dimension_numbers = #tpu.dot_dimension_numbers<[1], [0], [0], [1], [0, 0, 1, 1], [], []>} : vector<16x32xbf16>, vector<32x256xbf16>, vector<16x256xf32> -> vector<16x256xf32>
    %c0_20 = arith.constant 0 : index
    %c0_21 = arith.constant 0 : index
    %20 = vector.load %arg4[%c0_20, %c0_21] : memref<1x256xf32, #tpu.memory_space<vmem>>, vector<1x256xf32>
    %21 = vector.broadcast %20 : vector<1x256xf32> to vector<16x256xf32>
    %22 = arith.addf %19, %21 : vector<16x256xf32>
    %23 = tpu.iota {dimensions = array<i32: 0>} : vector<8x2x32xi32>
    %24 = vector.shape_cast %0 : vector<2x1xi32> to vector<1x2x1xi32>
    %25 = vector.broadcast %24 : vector<1x2x1xi32> to vector<8x2x32xi32>
    %26 = arith.cmpi slt, %23, %25 : vector<8x2x32xi32>
    %27 = arith.extui %26 : vector<8x2x32xi1> to vector<8x2x32xi32>
    %28 = arith.sitofp %27 : vector<8x2x32xi32> to vector<8x2x32xf32>
    %c0_22 = arith.constant 0 : index
    %c0_23 = arith.constant 0 : index
    %29 = vector.load %arg5[%c0_22, %c0_23] : memref<32x128xbf16, #tpu.memory_space<vmem>>, vector<32x128xbf16>
    %c0_24 = arith.constant 0 : index
    %c0_25 = arith.constant 0 : index
    %30 = vector.load %arg6[%c0_24, %c0_25] : memref<32x128xbf16, #tpu.memory_space<vmem>>, vector<32x128xbf16>
    %cst_26 = arith.constant 0.000000e+00 : f32
    %31 = vector.broadcast %cst_26 : f32 to vector<2x32xf32>
    %32 = vector.extract_strided_slice %22 {offsets = [0, 0], sizes = [2, 128], strides = [1, 1]} : vector<16x256xf32> to vector<2x128xf32>
    %33 = vector.extract_strided_slice %22 {offsets = [14, 128], sizes = [2, 128], strides = [1, 1]} : vector<16x256xf32> to vector<2x128xf32>
    %34 = arith.truncf %31 : vector<2x32xf32> to vector<2x32xbf16>
    %cst_27 = arith.constant dense<0.000000e+00> : vector<2x128xf32>
    %35 = tpu.matmul %34, %29, %cst_27 {dimension_numbers = #tpu.dot_dimension_numbers<[1], [0], [0], [1], [0, 0, 1, 1], [], []>} : vector<2x32xbf16>, vector<32x128xbf16>, vector<2x128xf32> -> vector<2x128xf32>
    %36 = arith.addf %32, %35 : vector<2x128xf32>
    %37 = arith.truncf %31 : vector<2x32xf32> to vector<2x32xbf16>
    %cst_28 = arith.constant dense<0.000000e+00> : vector<2x128xf32>
    %38 = tpu.matmul %37, %30, %cst_28 {dimension_numbers = #tpu.dot_dimension_numbers<[1], [0], [0], [1], [0, 0, 1, 1], [], []>} : vector<2x32xbf16>, vector<32x128xbf16>, vector<2x128xf32> -> vector<2x128xf32>
    %39 = arith.addf %33, %38 : vector<2x128xf32>
    %40 = vector.extract_strided_slice %36 {offsets = [0, 0], sizes = [2, 32], strides = [1, 1]} : vector<2x128xf32> to vector<2x32xf32>
    %41 = arith.negf %40 : vector<2x32xf32>
    %42 = math.exp %41 : vector<2x32xf32>
    %cst_29 = arith.constant 1.000000e+00 : f32
    %43 = vector.broadcast %cst_29 : f32 to vector<2x32xf32>
    %44 = arith.addf %43, %42 : vector<2x32xf32>
    %45 = arith.divf %43, %44 : vector<2x32xf32>
    %46 = vector.extract_strided_slice %36 {offsets = [0, 32], sizes = [2, 32], strides = [1, 1]} : vector<2x128xf32> to vector<2x32xf32>
    %47 = arith.negf %46 : vector<2x32xf32>
    %48 = math.exp %47 : vector<2x32xf32>
    %cst_30 = arith.constant 1.000000e+00 : f32
    %49 = vector.broadcast %cst_30 : f32 to vector<2x32xf32>
    %50 = arith.addf %49, %48 : vector<2x32xf32>
    %51 = arith.divf %49, %50 : vector<2x32xf32>
    %52 = vector.extract_strided_slice %36 {offsets = [0, 64], sizes = [2, 32], strides = [1, 1]} : vector<2x128xf32> to vector<2x32xf32>
    %53 = math.tanh %52 : vector<2x32xf32>
    %54 = vector.extract_strided_slice %36 {offsets = [0, 96], sizes = [2, 32], strides = [1, 1]} : vector<2x128xf32> to vector<2x32xf32>
    %55 = arith.negf %54 : vector<2x32xf32>
    %56 = math.exp %55 : vector<2x32xf32>
    %cst_31 = arith.constant 1.000000e+00 : f32
    %57 = vector.broadcast %cst_31 : f32 to vector<2x32xf32>
    %58 = arith.addf %57, %56 : vector<2x32xf32>
    %59 = arith.divf %57, %58 : vector<2x32xf32>
    %60 = arith.mulf %51, %31 : vector<2x32xf32>
    %61 = arith.mulf %45, %53 : vector<2x32xf32>
    %62 = arith.addf %60, %61 : vector<2x32xf32>
    %63 = math.tanh %62 : vector<2x32xf32>
    %64 = arith.mulf %59, %63 : vector<2x32xf32>
    %65 = vector.extract_strided_slice %39 {offsets = [0, 0], sizes = [2, 32], strides = [1, 1]} : vector<2x128xf32> to vector<2x32xf32>
    %66 = arith.negf %65 : vector<2x32xf32>
    %67 = math.exp %66 : vector<2x32xf32>
    %cst_32 = arith.constant 1.000000e+00 : f32
    %68 = vector.broadcast %cst_32 : f32 to vector<2x32xf32>
    %69 = arith.addf %68, %67 : vector<2x32xf32>
    %70 = arith.divf %68, %69 : vector<2x32xf32>
    %71 = vector.extract_strided_slice %39 {offsets = [0, 32], sizes = [2, 32], strides = [1, 1]} : vector<2x128xf32> to vector<2x32xf32>
    %72 = arith.negf %71 : vector<2x32xf32>
    %73 = math.exp %72 : vector<2x32xf32>
    %cst_33 = arith.constant 1.000000e+00 : f32
    %74 = vector.broadcast %cst_33 : f32 to vector<2x32xf32>
    %75 = arith.addf %74, %73 : vector<2x32xf32>
    %76 = arith.divf %74, %75 : vector<2x32xf32>
    %77 = vector.extract_strided_slice %39 {offsets = [0, 64], sizes = [2, 32], strides = [1, 1]} : vector<2x128xf32> to vector<2x32xf32>
    %78 = math.tanh %77 : vector<2x32xf32>
    %79 = vector.extract_strided_slice %39 {offsets = [0, 96], sizes = [2, 32], strides = [1, 1]} : vector<2x128xf32> to vector<2x32xf32>
    %80 = arith.negf %79 : vector<2x32xf32>
    %81 = math.exp %80 : vector<2x32xf32>
    %cst_34 = arith.constant 1.000000e+00 : f32
    %82 = vector.broadcast %cst_34 : f32 to vector<2x32xf32>
    %83 = arith.addf %82, %81 : vector<2x32xf32>
    %84 = arith.divf %82, %83 : vector<2x32xf32>
    %85 = arith.mulf %76, %31 : vector<2x32xf32>
    %86 = arith.mulf %70, %78 : vector<2x32xf32>
    %87 = arith.addf %85, %86 : vector<2x32xf32>
    %88 = math.tanh %87 : vector<2x32xf32>
    %89 = arith.mulf %84, %88 : vector<2x32xf32>
    %90 = vector.extract_strided_slice %28 {offsets = [0, 0, 0], sizes = [1, 2, 32], strides = [1, 1, 1]} : vector<8x2x32xf32> to vector<1x2x32xf32>
    %91 = vector.shape_cast %90 : vector<1x2x32xf32> to vector<2x32xf32>
    %92 = vector.extract_strided_slice %28 {offsets = [7, 0, 0], sizes = [1, 2, 32], strides = [1, 1, 1]} : vector<8x2x32xf32> to vector<1x2x32xf32>
    %93 = vector.shape_cast %92 : vector<1x2x32xf32> to vector<2x32xf32>
    %94 = arith.subf %64, %31 : vector<2x32xf32>
    %95 = arith.mulf %91, %94 : vector<2x32xf32>
    %96 = arith.addf %31, %95 : vector<2x32xf32>
    %97 = arith.subf %62, %31 : vector<2x32xf32>
    %98 = arith.mulf %91, %97 : vector<2x32xf32>
    %99 = arith.addf %31, %98 : vector<2x32xf32>
    %100 = arith.subf %89, %31 : vector<2x32xf32>
    %101 = arith.mulf %93, %100 : vector<2x32xf32>
    %102 = arith.addf %31, %101 : vector<2x32xf32>
    %103 = arith.subf %87, %31 : vector<2x32xf32>
    %104 = arith.mulf %93, %103 : vector<2x32xf32>
    %105 = arith.addf %31, %104 : vector<2x32xf32>
    %106 = arith.mulf %96, %91 : vector<2x32xf32>
    %c0_35 = arith.constant 0 : index
    %c0_36 = arith.constant 0 : index
    %c0_37 = arith.constant 0 : index
    %107 = vector.load %arg12[%c0_35, %c0_36, %c0_37] : memref<8x2x32xf32, #tpu.memory_space<vmem>>, vector<1x2x32xf32>
    %108 = vector.shape_cast %107 : vector<1x2x32xf32> to vector<2x32xf32>
    %109 = vector.shape_cast %106 : vector<2x32xf32> to vector<1x2x32xf32>
    tpu.vector_store %arg12[%c0_35, %c0_36, %c0_37], %109 {strides = array<i32>} : memref<8x2x32xf32, #tpu.memory_space<vmem>>, vector<1x2x32xf32>,
    %110 = arith.mulf %102, %93 : vector<2x32xf32>
    %c7_38 = arith.constant 7 : index
    %c0_39 = arith.constant 0 : index
    %c0_40 = arith.constant 0 : index
    %111 = vector.load %arg13[%c7_38, %c0_39, %c0_40] : memref<8x2x32xf32, #tpu.memory_space<vmem>>, vector<1x2x32xf32>
    %112 = vector.shape_cast %111 : vector<1x2x32xf32> to vector<2x32xf32>
    %113 = vector.shape_cast %110 : vector<2x32xf32> to vector<1x2x32xf32>
    tpu.vector_store %arg13[%c7_38, %c0_39, %c0_40], %113 {strides = array<i32>} : memref<8x2x32xf32, #tpu.memory_space<vmem>>, vector<1x2x32xf32>,
    %114 = vector.extract_strided_slice %22 {offsets = [2, 0], sizes = [2, 128], strides = [1, 1]} : vector<16x256xf32> to vector<2x128xf32>
    %115 = vector.extract_strided_slice %22 {offsets = [12, 128], sizes = [2, 128], strides = [1, 1]} : vector<16x256xf32> to vector<2x128xf32>
    %116 = arith.truncf %96 : vector<2x32xf32> to vector<2x32xbf16>
    %cst_41 = arith.constant dense<0.000000e+00> : vector<2x128xf32>
    %117 = tpu.matmul %116, %29, %cst_41 {dimension_numbers = #tpu.dot_dimension_numbers<[1], [0], [0], [1], [0, 0, 1, 1], [], []>} : vector<2x32xbf16>, vector<32x128xbf16>, vector<2x128xf32> -> vector<2x128xf32>
    %118 = arith.addf %114, %117 : vector<2x128xf32>
    %119 = arith.truncf %102 : vector<2x32xf32> to vector<2x32xbf16>
    %cst_42 = arith.constant dense<0.000000e+00> : vector<2x128xf32>
    %120 = tpu.matmul %119, %30, %cst_42 {dimension_numbers = #tpu.dot_dimension_numbers<[1], [0], [0], [1], [0, 0, 1, 1], [], []>} : vector<2x32xbf16>, vector<32x128xbf16>, vector<2x128xf32> -> vector<2x128xf32>
    %121 = arith.addf %115, %120 : vector<2x128xf32>
    %122 = vector.extract_strided_slice %118 {offsets = [0, 0], sizes = [2, 32], strides = [1, 1]} : vector<2x128xf32> to vector<2x32xf32>
    %123 = arith.negf %122 : vector<2x32xf32>
    %124 = math.exp %123 : vector<2x32xf32>
    %cst_43 = arith.constant 1.000000e+00 : f32
    %125 = vector.broadcast %cst_43 : f32 to vector<2x32xf32>
    %126 = arith.addf %125, %124 : vector<2x32xf32>
    %127 = arith.divf %125, %126 : vector<2x32xf32>
    %128 = vector.extract_strided_slice %118 {offsets = [0, 32], sizes = [2, 32], strides = [1, 1]} : vector<2x128xf32> to vector<2x32xf32>
    %129 = arith.negf %128 : vector<2x32xf32>
    %130 = math.exp %129 : vector<2x32xf32>
    %cst_44 = arith.constant 1.000000e+00 : f32
    %131 = vector.broadcast %cst_44 : f32 to vector<2x32xf32>
    %132 = arith.addf %131, %130 : vector<2x32xf32>
    %133 = arith.divf %131, %132 : vector<2x32xf32>
    %134 = vector.extract_strided_slice %118 {offsets = [0, 64], sizes = [2, 32], strides = [1, 1]} : vector<2x128xf32> to vector<2x32xf32>
    %135 = math.tanh %134 : vector<2x32xf32>
    %136 = vector.extract_strided_slice %118 {offsets = [0, 96], sizes = [2, 32], strides = [1, 1]} : vector<2x128xf32> to vector<2x32xf32>
    %137 = arith.negf %136 : vector<2x32xf32>
    %138 = math.exp %137 : vector<2x32xf32>
    %cst_45 = arith.constant 1.000000e+00 : f32
    %139 = vector.broadcast %cst_45 : f32 to vector<2x32xf32>
    %140 = arith.addf %139, %138 : vector<2x32xf32>
    %141 = arith.divf %139, %140 : vector<2x32xf32>
    %142 = arith.mulf %133, %99 : vector<2x32xf32>
    %143 = arith.mulf %127, %135 : vector<2x32xf32>
    %144 = arith.addf %142, %143 : vector<2x32xf32>
    %145 = math.tanh %144 : vector<2x32xf32>
    %146 = arith.mulf %141, %145 : vector<2x32xf32>
    %147 = vector.extract_strided_slice %121 {offsets = [0, 0], sizes = [2, 32], strides = [1, 1]} : vector<2x128xf32> to vector<2x32xf32>
    %148 = arith.negf %147 : vector<2x32xf32>
    %149 = math.exp %148 : vector<2x32xf32>
    %cst_46 = arith.constant 1.000000e+00 : f32
    %150 = vector.broadcast %cst_46 : f32 to vector<2x32xf32>
    %151 = arith.addf %150, %149 : vector<2x32xf32>
    %152 = arith.divf %150, %151 : vector<2x32xf32>
    %153 = vector.extract_strided_slice %121 {offsets = [0, 32], sizes = [2, 32], strides = [1, 1]} : vector<2x128xf32> to vector<2x32xf32>
    %154 = arith.negf %153 : vector<2x32xf32>
    %155 = math.exp %154 : vector<2x32xf32>
    %cst_47 = arith.constant 1.000000e+00 : f32
    %156 = vector.broadcast %cst_47 : f32 to vector<2x32xf32>
    %157 = arith.addf %156, %155 : vector<2x32xf32>
    %158 = arith.divf %156, %157 : vector<2x32xf32>
    %159 = vector.extract_strided_slice %121 {offsets = [0, 64], sizes = [2, 32], strides = [1, 1]} : vector<2x128xf32> to vector<2x32xf32>
    %160 = math.tanh %159 : vector<2x32xf32>
    %161 = vector.extract_strided_slice %121 {offsets = [0, 96], sizes = [2, 32], strides = [1, 1]} : vector<2x128xf32> to vector<2x32xf32>
    %162 = arith.negf %161 : vector<2x32xf32>
    %163 = math.exp %162 : vector<2x32xf32>
    %cst_48 = arith.constant 1.000000e+00 : f32
    %164 = vector.broadcast %cst_48 : f32 to vector<2x32xf32>
    %165 = arith.addf %164, %163 : vector<2x32xf32>
    %166 = arith.divf %164, %165 : vector<2x32xf32>
    %167 = arith.mulf %158, %105 : vector<2x32xf32>
    %168 = arith.mulf %152, %160 : vector<2x32xf32>
    %169 = arith.addf %167, %168 : vector<2x32xf32>
    %170 = math.tanh %169 : vector<2x32xf32>
    %171 = arith.mulf %166, %170 : vector<2x32xf32>
    %172 = vector.extract_strided_slice %28 {offsets = [1, 0, 0], sizes = [1, 2, 32], strides = [1, 1, 1]} : vector<8x2x32xf32> to vector<1x2x32xf32>
    %173 = vector.shape_cast %172 : vector<1x2x32xf32> to vector<2x32xf32>
    %174 = vector.extract_strided_slice %28 {offsets = [6, 0, 0], sizes = [1, 2, 32], strides = [1, 1, 1]} : vector<8x2x32xf32> to vector<1x2x32xf32>
    %175 = vector.shape_cast %174 : vector<1x2x32xf32> to vector<2x32xf32>
    %176 = arith.subf %146, %96 : vector<2x32xf32>
    %177 = arith.mulf %173, %176 : vector<2x32xf32>
    %178 = arith.addf %96, %177 : vector<2x32xf32>
    %179 = arith.subf %144, %99 : vector<2x32xf32>
    %180 = arith.mulf %173, %179 : vector<2x32xf32>
    %181 = arith.addf %99, %180 : vector<2x32xf32>
    %182 = arith.subf %171, %102 : vector<2x32xf32>
    %183 = arith.mulf %175, %182 : vector<2x32xf32>
    %184 = arith.addf %102, %183 : vector<2x32xf32>
    %185 = arith.subf %169, %105 : vector<2x32xf32>
    %186 = arith.mulf %175, %185 : vector<2x32xf32>
    %187 = arith.addf %105, %186 : vector<2x32xf32>
    %188 = arith.mulf %178, %173 : vector<2x32xf32>
    %c1_49 = arith.constant 1 : index
    %c0_50 = arith.constant 0 : index
    %c0_51 = arith.constant 0 : index
    %189 = vector.load %arg12[%c1_49, %c0_50, %c0_51] : memref<8x2x32xf32, #tpu.memory_space<vmem>>, vector<1x2x32xf32>
    %190 = vector.shape_cast %189 : vector<1x2x32xf32> to vector<2x32xf32>
    %191 = vector.shape_cast %188 : vector<2x32xf32> to vector<1x2x32xf32>
    tpu.vector_store %arg12[%c1_49, %c0_50, %c0_51], %191 {strides = array<i32>} : memref<8x2x32xf32, #tpu.memory_space<vmem>>, vector<1x2x32xf32>,
    %192 = arith.mulf %184, %175 : vector<2x32xf32>
    %c6_52 = arith.constant 6 : index
    %c0_53 = arith.constant 0 : index
    %c0_54 = arith.constant 0 : index
    %193 = vector.load %arg13[%c6_52, %c0_53, %c0_54] : memref<8x2x32xf32, #tpu.memory_space<vmem>>, vector<1x2x32xf32>
    %194 = vector.shape_cast %193 : vector<1x2x32xf32> to vector<2x32xf32>
    %195 = vector.shape_cast %192 : vector<2x32xf32> to vector<1x2x32xf32>
    tpu.vector_store %arg13[%c6_52, %c0_53, %c0_54], %195 {strides = array<i32>} : memref<8x2x32xf32, #tpu.memory_space<vmem>>, vector<1x2x32xf32>,
    %196 = vector.extract_strided_slice %22 {offsets = [4, 0], sizes = [2, 128], strides = [1, 1]} : vector<16x256xf32> to vector<2x128xf32>
    %197 = vector.extract_strided_slice %22 {offsets = [10, 128], sizes = [2, 128], strides = [1, 1]} : vector<16x256xf32> to vector<2x128xf32>
    %198 = arith.truncf %178 : vector<2x32xf32> to vector<2x32xbf16>
    %cst_55 = arith.constant dense<0.000000e+00> : vector<2x128xf32>
    %199 = tpu.matmul %198, %29, %cst_55 {dimension_numbers = #tpu.dot_dimension_numbers<[1], [0], [0], [1], [0, 0, 1, 1], [], []>} : vector<2x32xbf16>, vector<32x128xbf16>, vector<2x128xf32> -> vector<2x128xf32>
    %200 = arith.addf %196, %199 : vector<2x128xf32>
    %201 = arith.truncf %184 : vector<2x32xf32> to vector<2x32xbf16>
    %cst_56 = arith.constant dense<0.000000e+00> : vector<2x128xf32>
    %202 = tpu.matmul %201, %30, %cst_56 {dimension_numbers = #tpu.dot_dimension_numbers<[1], [0], [0], [1], [0, 0, 1, 1], [], []>} : vector<2x32xbf16>, vector<32x128xbf16>, vector<2x128xf32> -> vector<2x128xf32>
    %203 = arith.addf %197, %202 : vector<2x128xf32>
    %204 = vector.extract_strided_slice %200 {offsets = [0, 0], sizes = [2, 32], strides = [1, 1]} : vector<2x128xf32> to vector<2x32xf32>
    %205 = arith.negf %204 : vector<2x32xf32>
    %206 = math.exp %205 : vector<2x32xf32>
    %cst_57 = arith.constant 1.000000e+00 : f32
    %207 = vector.broadcast %cst_57 : f32 to vector<2x32xf32>
    %208 = arith.addf %207, %206 : vector<2x32xf32>
    %209 = arith.divf %207, %208 : vector<2x32xf32>
    %210 = vector.extract_strided_slice %200 {offsets = [0, 32], sizes = [2, 32], strides = [1, 1]} : vector<2x128xf32> to vector<2x32xf32>
    %211 = arith.negf %210 : vector<2x32xf32>
    %212 = math.exp %211 : vector<2x32xf32>
    %cst_58 = arith.constant 1.000000e+00 : f32
    %213 = vector.broadcast %cst_58 : f32 to vector<2x32xf32>
    %214 = arith.addf %213, %212 : vector<2x32xf32>
    %215 = arith.divf %213, %214 : vector<2x32xf32>
    %216 = vector.extract_strided_slice %200 {offsets = [0, 64], sizes = [2, 32], strides = [1, 1]} : vector<2x128xf32> to vector<2x32xf32>
    %217 = math.tanh %216 : vector<2x32xf32>
    %218 = vector.extract_strided_slice %200 {offsets = [0, 96], sizes = [2, 32], strides = [1, 1]} : vector<2x128xf32> to vector<2x32xf32>
    %219 = arith.negf %218 : vector<2x32xf32>
    %220 = math.exp %219 : vector<2x32xf32>
    %cst_59 = arith.constant 1.000000e+00 : f32
    %221 = vector.broadcast %cst_59 : f32 to vector<2x32xf32>
    %222 = arith.addf %221, %220 : vector<2x32xf32>
    %223 = arith.divf %221, %222 : vector<2x32xf32>
    %224 = arith.mulf %215, %181 : vector<2x32xf32>
    %225 = arith.mulf %209, %217 : vector<2x32xf32>
    %226 = arith.addf %224, %225 : vector<2x32xf32>
    %227 = math.tanh %226 : vector<2x32xf32>
    %228 = arith.mulf %223, %227 : vector<2x32xf32>
    %229 = vector.extract_strided_slice %203 {offsets = [0, 0], sizes = [2, 32], strides = [1, 1]} : vector<2x128xf32> to vector<2x32xf32>
    %230 = arith.negf %229 : vector<2x32xf32>
    %231 = math.exp %230 : vector<2x32xf32>
    %cst_60 = arith.constant 1.000000e+00 : f32
    %232 = vector.broadcast %cst_60 : f32 to vector<2x32xf32>
    %233 = arith.addf %232, %231 : vector<2x32xf32>
    %234 = arith.divf %232, %233 : vector<2x32xf32>
    %235 = vector.extract_strided_slice %203 {offsets = [0, 32], sizes = [2, 32], strides = [1, 1]} : vector<2x128xf32> to vector<2x32xf32>
    %236 = arith.negf %235 : vector<2x32xf32>
    %237 = math.exp %236 : vector<2x32xf32>
    %cst_61 = arith.constant 1.000000e+00 : f32
    %238 = vector.broadcast %cst_61 : f32 to vector<2x32xf32>
    %239 = arith.addf %238, %237 : vector<2x32xf32>
    %240 = arith.divf %238, %239 : vector<2x32xf32>
    %241 = vector.extract_strided_slice %203 {offsets = [0, 64], sizes = [2, 32], strides = [1, 1]} : vector<2x128xf32> to vector<2x32xf32>
    %242 = math.tanh %241 : vector<2x32xf32>
    %243 = vector.extract_strided_slice %203 {offsets = [0, 96], sizes = [2, 32], strides = [1, 1]} : vector<2x128xf32> to vector<2x32xf32>
    %244 = arith.negf %243 : vector<2x32xf32>
    %245 = math.exp %244 : vector<2x32xf32>
    %cst_62 = arith.constant 1.000000e+00 : f32
    %246 = vector.broadcast %cst_62 : f32 to vector<2x32xf32>
    %247 = arith.addf %246, %245 : vector<2x32xf32>
    %248 = arith.divf %246, %247 : vector<2x32xf32>
    %249 = arith.mulf %240, %187 : vector<2x32xf32>
    %250 = arith.mulf %234, %242 : vector<2x32xf32>
    %251 = arith.addf %249, %250 : vector<2x32xf32>
    %252 = math.tanh %251 : vector<2x32xf32>
    %253 = arith.mulf %248, %252 : vector<2x32xf32>
    %254 = vector.extract_strided_slice %28 {offsets = [2, 0, 0], sizes = [1, 2, 32], strides = [1, 1, 1]} : vector<8x2x32xf32> to vector<1x2x32xf32>
    %255 = vector.shape_cast %254 : vector<1x2x32xf32> to vector<2x32xf32>
    %256 = vector.extract_strided_slice %28 {offsets = [5, 0, 0], sizes = [1, 2, 32], strides = [1, 1, 1]} : vector<8x2x32xf32> to vector<1x2x32xf32>
    %257 = vector.shape_cast %256 : vector<1x2x32xf32> to vector<2x32xf32>
    %258 = arith.subf %228, %178 : vector<2x32xf32>
    %259 = arith.mulf %255, %258 : vector<2x32xf32>
    %260 = arith.addf %178, %259 : vector<2x32xf32>
    %261 = arith.subf %226, %181 : vector<2x32xf32>
    %262 = arith.mulf %255, %261 : vector<2x32xf32>
    %263 = arith.addf %181, %262 : vector<2x32xf32>
    %264 = arith.subf %253, %184 : vector<2x32xf32>
    %265 = arith.mulf %257, %264 : vector<2x32xf32>
    %266 = arith.addf %184, %265 : vector<2x32xf32>
    %267 = arith.subf %251, %187 : vector<2x32xf32>
    %268 = arith.mulf %257, %267 : vector<2x32xf32>
    %269 = arith.addf %187, %268 : vector<2x32xf32>
    %270 = arith.mulf %260, %255 : vector<2x32xf32>
    %c2_63 = arith.constant 2 : index
    %c0_64 = arith.constant 0 : index
    %c0_65 = arith.constant 0 : index
    %271 = vector.load %arg12[%c2_63, %c0_64, %c0_65] : memref<8x2x32xf32, #tpu.memory_space<vmem>>, vector<1x2x32xf32>
    %272 = vector.shape_cast %271 : vector<1x2x32xf32> to vector<2x32xf32>
    %273 = vector.shape_cast %270 : vector<2x32xf32> to vector<1x2x32xf32>
    tpu.vector_store %arg12[%c2_63, %c0_64, %c0_65], %273 {strides = array<i32>} : memref<8x2x32xf32, #tpu.memory_space<vmem>>, vector<1x2x32xf32>,
    %274 = arith.mulf %266, %257 : vector<2x32xf32>
    %c5_66 = arith.constant 5 : index
    %c0_67 = arith.constant 0 : index
    %c0_68 = arith.constant 0 : index
    %275 = vector.load %arg13[%c5_66, %c0_67, %c0_68] : memref<8x2x32xf32, #tpu.memory_space<vmem>>, vector<1x2x32xf32>
    %276 = vector.shape_cast %275 : vector<1x2x32xf32> to vector<2x32xf32>
    %277 = vector.shape_cast %274 : vector<2x32xf32> to vector<1x2x32xf32>
    tpu.vector_store %arg13[%c5_66, %c0_67, %c0_68], %277 {strides = array<i32>} : memref<8x2x32xf32, #tpu.memory_space<vmem>>, vector<1x2x32xf32>,
    %278 = vector.extract_strided_slice %22 {offsets = [6, 0], sizes = [2, 128], strides = [1, 1]} : vector<16x256xf32> to vector<2x128xf32>
    %279 = vector.extract_strided_slice %22 {offsets = [8, 128], sizes = [2, 128], strides = [1, 1]} : vector<16x256xf32> to vector<2x128xf32>
    %280 = arith.truncf %260 : vector<2x32xf32> to vector<2x32xbf16>
    %cst_69 = arith.constant dense<0.000000e+00> : vector<2x128xf32>
    %281 = tpu.matmul %280, %29, %cst_69 {dimension_numbers = #tpu.dot_dimension_numbers<[1], [0], [0], [1], [0, 0, 1, 1], [], []>} : vector<2x32xbf16>, vector<32x128xbf16>, vector<2x128xf32> -> vector<2x128xf32>
    %282 = arith.addf %278, %281 : vector<2x128xf32>
    %283 = arith.truncf %266 : vector<2x32xf32> to vector<2x32xbf16>
    %cst_70 = arith.constant dense<0.000000e+00> : vector<2x128xf32>
    %284 = tpu.matmul %283, %30, %cst_70 {dimension_numbers = #tpu.dot_dimension_numbers<[1], [0], [0], [1], [0, 0, 1, 1], [], []>} : vector<2x32xbf16>, vector<32x128xbf16>, vector<2x128xf32> -> vector<2x128xf32>
    %285 = arith.addf %279, %284 : vector<2x128xf32>
    %286 = vector.extract_strided_slice %282 {offsets = [0, 0], sizes = [2, 32], strides = [1, 1]} : vector<2x128xf32> to vector<2x32xf32>
    %287 = arith.negf %286 : vector<2x32xf32>
    %288 = math.exp %287 : vector<2x32xf32>
    %cst_71 = arith.constant 1.000000e+00 : f32
    %289 = vector.broadcast %cst_71 : f32 to vector<2x32xf32>
    %290 = arith.addf %289, %288 : vector<2x32xf32>
    %291 = arith.divf %289, %290 : vector<2x32xf32>
    %292 = vector.extract_strided_slice %282 {offsets = [0, 32], sizes = [2, 32], strides = [1, 1]} : vector<2x128xf32> to vector<2x32xf32>
    %293 = arith.negf %292 : vector<2x32xf32>
    %294 = math.exp %293 : vector<2x32xf32>
    %cst_72 = arith.constant 1.000000e+00 : f32
    %295 = vector.broadcast %cst_72 : f32 to vector<2x32xf32>
    %296 = arith.addf %295, %294 : vector<2x32xf32>
    %297 = arith.divf %295, %296 : vector<2x32xf32>
    %298 = vector.extract_strided_slice %282 {offsets = [0, 64], sizes = [2, 32], strides = [1, 1]} : vector<2x128xf32> to vector<2x32xf32>
    %299 = math.tanh %298 : vector<2x32xf32>
    %300 = vector.extract_strided_slice %282 {offsets = [0, 96], sizes = [2, 32], strides = [1, 1]} : vector<2x128xf32> to vector<2x32xf32>
    %301 = arith.negf %300 : vector<2x32xf32>
    %302 = math.exp %301 : vector<2x32xf32>
    %cst_73 = arith.constant 1.000000e+00 : f32
    %303 = vector.broadcast %cst_73 : f32 to vector<2x32xf32>
    %304 = arith.addf %303, %302 : vector<2x32xf32>
    %305 = arith.divf %303, %304 : vector<2x32xf32>
    %306 = arith.mulf %297, %263 : vector<2x32xf32>
    %307 = arith.mulf %291, %299 : vector<2x32xf32>
    %308 = arith.addf %306, %307 : vector<2x32xf32>
    %309 = math.tanh %308 : vector<2x32xf32>
    %310 = arith.mulf %305, %309 : vector<2x32xf32>
    %311 = vector.extract_strided_slice %285 {offsets = [0, 0], sizes = [2, 32], strides = [1, 1]} : vector<2x128xf32> to vector<2x32xf32>
    %312 = arith.negf %311 : vector<2x32xf32>
    %313 = math.exp %312 : vector<2x32xf32>
    %cst_74 = arith.constant 1.000000e+00 : f32
    %314 = vector.broadcast %cst_74 : f32 to vector<2x32xf32>
    %315 = arith.addf %314, %313 : vector<2x32xf32>
    %316 = arith.divf %314, %315 : vector<2x32xf32>
    %317 = vector.extract_strided_slice %285 {offsets = [0, 32], sizes = [2, 32], strides = [1, 1]} : vector<2x128xf32> to vector<2x32xf32>
    %318 = arith.negf %317 : vector<2x32xf32>
    %319 = math.exp %318 : vector<2x32xf32>
    %cst_75 = arith.constant 1.000000e+00 : f32
    %320 = vector.broadcast %cst_75 : f32 to vector<2x32xf32>
    %321 = arith.addf %320, %319 : vector<2x32xf32>
    %322 = arith.divf %320, %321 : vector<2x32xf32>
    %323 = vector.extract_strided_slice %285 {offsets = [0, 64], sizes = [2, 32], strides = [1, 1]} : vector<2x128xf32> to vector<2x32xf32>
    %324 = math.tanh %323 : vector<2x32xf32>
    %325 = vector.extract_strided_slice %285 {offsets = [0, 96], sizes = [2, 32], strides = [1, 1]} : vector<2x128xf32> to vector<2x32xf32>
    %326 = arith.negf %325 : vector<2x32xf32>
    %327 = math.exp %326 : vector<2x32xf32>
    %cst_76 = arith.constant 1.000000e+00 : f32
    %328 = vector.broadcast %cst_76 : f32 to vector<2x32xf32>
    %329 = arith.addf %328, %327 : vector<2x32xf32>
    %330 = arith.divf %328, %329 : vector<2x32xf32>
    %331 = arith.mulf %322, %269 : vector<2x32xf32>
    %332 = arith.mulf %316, %324 : vector<2x32xf32>
    %333 = arith.addf %331, %332 : vector<2x32xf32>
    %334 = math.tanh %333 : vector<2x32xf32>
    %335 = arith.mulf %330, %334 : vector<2x32xf32>
    %336 = vector.extract_strided_slice %28 {offsets = [3, 0, 0], sizes = [1, 2, 32], strides = [1, 1, 1]} : vector<8x2x32xf32> to vector<1x2x32xf32>
    %337 = vector.shape_cast %336 : vector<1x2x32xf32> to vector<2x32xf32>
    %338 = vector.extract_strided_slice %28 {offsets = [4, 0, 0], sizes = [1, 2, 32], strides = [1, 1, 1]} : vector<8x2x32xf32> to vector<1x2x32xf32>
    %339 = vector.shape_cast %338 : vector<1x2x32xf32> to vector<2x32xf32>
    %340 = arith.subf %310, %260 : vector<2x32xf32>
    %341 = arith.mulf %337, %340 : vector<2x32xf32>
    %342 = arith.addf %260, %341 : vector<2x32xf32>
    %343 = arith.subf %308, %263 : vector<2x32xf32>
    %344 = arith.mulf %337, %343 : vector<2x32xf32>
    %345 = arith.addf %263, %344 : vector<2x32xf32>
    %346 = arith.subf %335, %266 : vector<2x32xf32>
    %347 = arith.mulf %339, %346 : vector<2x32xf32>
    %348 = arith.addf %266, %347 : vector<2x32xf32>
    %349 = arith.subf %333, %269 : vector<2x32xf32>
    %350 = arith.mulf %339, %349 : vector<2x32xf32>
    %351 = arith.addf %269, %350 : vector<2x32xf32>
    %352 = arith.mulf %342, %337 : vector<2x32xf32>
    %c3_77 = arith.constant 3 : index
    %c0_78 = arith.constant 0 : index
    %c0_79 = arith.constant 0 : index
    %353 = vector.load %arg12[%c3_77, %c0_78, %c0_79] : memref<8x2x32xf32, #tpu.memory_space<vmem>>, vector<1x2x32xf32>
    %354 = vector.shape_cast %353 : vector<1x2x32xf32> to vector<2x32xf32>
    %355 = vector.shape_cast %352 : vector<2x32xf32> to vector<1x2x32xf32>
    tpu.vector_store %arg12[%c3_77, %c0_78, %c0_79], %355 {strides = array<i32>} : memref<8x2x32xf32, #tpu.memory_space<vmem>>, vector<1x2x32xf32>,
    %356 = arith.mulf %348, %339 : vector<2x32xf32>
    %c4_80 = arith.constant 4 : index
    %c0_81 = arith.constant 0 : index
    %c0_82 = arith.constant 0 : index
    %357 = vector.load %arg13[%c4_80, %c0_81, %c0_82] : memref<8x2x32xf32, #tpu.memory_space<vmem>>, vector<1x2x32xf32>
    %358 = vector.shape_cast %357 : vector<1x2x32xf32> to vector<2x32xf32>
    %359 = vector.shape_cast %356 : vector<2x32xf32> to vector<1x2x32xf32>
    tpu.vector_store %arg13[%c4_80, %c0_81, %c0_82], %359 {strides = array<i32>} : memref<8x2x32xf32, #tpu.memory_space<vmem>>, vector<1x2x32xf32>,
    %360 = vector.extract_strided_slice %22 {offsets = [8, 0], sizes = [2, 128], strides = [1, 1]} : vector<16x256xf32> to vector<2x128xf32>
    %361 = vector.extract_strided_slice %22 {offsets = [6, 128], sizes = [2, 128], strides = [1, 1]} : vector<16x256xf32> to vector<2x128xf32>
    %362 = arith.truncf %342 : vector<2x32xf32> to vector<2x32xbf16>
    %cst_83 = arith.constant dense<0.000000e+00> : vector<2x128xf32>
    %363 = tpu.matmul %362, %29, %cst_83 {dimension_numbers = #tpu.dot_dimension_numbers<[1], [0], [0], [1], [0, 0, 1, 1], [], []>} : vector<2x32xbf16>, vector<32x128xbf16>, vector<2x128xf32> -> vector<2x128xf32>
    %364 = arith.addf %360, %363 : vector<2x128xf32>
    %365 = arith.truncf %348 : vector<2x32xf32> to vector<2x32xbf16>
    %cst_84 = arith.constant dense<0.000000e+00> : vector<2x128xf32>
    %366 = tpu.matmul %365, %30, %cst_84 {dimension_numbers = #tpu.dot_dimension_numbers<[1], [0], [0], [1], [0, 0, 1, 1], [], []>} : vector<2x32xbf16>, vector<32x128xbf16>, vector<2x128xf32> -> vector<2x128xf32>
    %367 = arith.addf %361, %366 : vector<2x128xf32>
    %368 = vector.extract_strided_slice %364 {offsets = [0, 0], sizes = [2, 32], strides = [1, 1]} : vector<2x128xf32> to vector<2x32xf32>
    %369 = arith.negf %368 : vector<2x32xf32>
    %370 = math.exp %369 : vector<2x32xf32>
    %cst_85 = arith.constant 1.000000e+00 : f32
    %371 = vector.broadcast %cst_85 : f32 to vector<2x32xf32>
    %372 = arith.addf %371, %370 : vector<2x32xf32>
    %373 = arith.divf %371, %372 : vector<2x32xf32>
    %374 = vector.extract_strided_slice %364 {offsets = [0, 32], sizes = [2, 32], strides = [1, 1]} : vector<2x128xf32> to vector<2x32xf32>
    %375 = arith.negf %374 : vector<2x32xf32>
    %376 = math.exp %375 : vector<2x32xf32>
    %cst_86 = arith.constant 1.000000e+00 : f32
    %377 = vector.broadcast %cst_86 : f32 to vector<2x32xf32>
    %378 = arith.addf %377, %376 : vector<2x32xf32>
    %379 = arith.divf %377, %378 : vector<2x32xf32>
    %380 = vector.extract_strided_slice %364 {offsets = [0, 64], sizes = [2, 32], strides = [1, 1]} : vector<2x128xf32> to vector<2x32xf32>
    %381 = math.tanh %380 : vector<2x32xf32>
    %382 = vector.extract_strided_slice %364 {offsets = [0, 96], sizes = [2, 32], strides = [1, 1]} : vector<2x128xf32> to vector<2x32xf32>
    %383 = arith.negf %382 : vector<2x32xf32>
    %384 = math.exp %383 : vector<2x32xf32>
    %cst_87 = arith.constant 1.000000e+00 : f32
    %385 = vector.broadcast %cst_87 : f32 to vector<2x32xf32>
    %386 = arith.addf %385, %384 : vector<2x32xf32>
    %387 = arith.divf %385, %386 : vector<2x32xf32>
    %388 = arith.mulf %379, %345 : vector<2x32xf32>
    %389 = arith.mulf %373, %381 : vector<2x32xf32>
    %390 = arith.addf %388, %389 : vector<2x32xf32>
    %391 = math.tanh %390 : vector<2x32xf32>
    %392 = arith.mulf %387, %391 : vector<2x32xf32>
    %393 = vector.extract_strided_slice %367 {offsets = [0, 0], sizes = [2, 32], strides = [1, 1]} : vector<2x128xf32> to vector<2x32xf32>
    %394 = arith.negf %393 : vector<2x32xf32>
    %395 = math.exp %394 : vector<2x32xf32>
    %cst_88 = arith.constant 1.000000e+00 : f32
    %396 = vector.broadcast %cst_88 : f32 to vector<2x32xf32>
    %397 = arith.addf %396, %395 : vector<2x32xf32>
    %398 = arith.divf %396, %397 : vector<2x32xf32>
    %399 = vector.extract_strided_slice %367 {offsets = [0, 32], sizes = [2, 32], strides = [1, 1]} : vector<2x128xf32> to vector<2x32xf32>
    %400 = arith.negf %399 : vector<2x32xf32>
    %401 = math.exp %400 : vector<2x32xf32>
    %cst_89 = arith.constant 1.000000e+00 : f32
    %402 = vector.broadcast %cst_89 : f32 to vector<2x32xf32>
    %403 = arith.addf %402, %401 : vector<2x32xf32>
    %404 = arith.divf %402, %403 : vector<2x32xf32>
    %405 = vector.extract_strided_slice %367 {offsets = [0, 64], sizes = [2, 32], strides = [1, 1]} : vector<2x128xf32> to vector<2x32xf32>
    %406 = math.tanh %405 : vector<2x32xf32>
    %407 = vector.extract_strided_slice %367 {offsets = [0, 96], sizes = [2, 32], strides = [1, 1]} : vector<2x128xf32> to vector<2x32xf32>
    %408 = arith.negf %407 : vector<2x32xf32>
    %409 = math.exp %408 : vector<2x32xf32>
    %cst_90 = arith.constant 1.000000e+00 : f32
    %410 = vector.broadcast %cst_90 : f32 to vector<2x32xf32>
    %411 = arith.addf %410, %409 : vector<2x32xf32>
    %412 = arith.divf %410, %411 : vector<2x32xf32>
    %413 = arith.mulf %404, %351 : vector<2x32xf32>
    %414 = arith.mulf %398, %406 : vector<2x32xf32>
    %415 = arith.addf %413, %414 : vector<2x32xf32>
    %416 = math.tanh %415 : vector<2x32xf32>
    %417 = arith.mulf %412, %416 : vector<2x32xf32>
    %418 = vector.extract_strided_slice %28 {offsets = [4, 0, 0], sizes = [1, 2, 32], strides = [1, 1, 1]} : vector<8x2x32xf32> to vector<1x2x32xf32>
    %419 = vector.shape_cast %418 : vector<1x2x32xf32> to vector<2x32xf32>
    %420 = vector.extract_strided_slice %28 {offsets = [3, 0, 0], sizes = [1, 2, 32], strides = [1, 1, 1]} : vector<8x2x32xf32> to vector<1x2x32xf32>
    %421 = vector.shape_cast %420 : vector<1x2x32xf32> to vector<2x32xf32>
    %422 = arith.subf %392, %342 : vector<2x32xf32>
    %423 = arith.mulf %419, %422 : vector<2x32xf32>
    %424 = arith.addf %342, %423 : vector<2x32xf32>
    %425 = arith.subf %390, %345 : vector<2x32xf32>
    %426 = arith.mulf %419, %425 : vector<2x32xf32>
    %427 = arith.addf %345, %426 : vector<2x32xf32>
    %428 = arith.subf %417, %348 : vector<2x32xf32>
    %429 = arith.mulf %421, %428 : vector<2x32xf32>
    %430 = arith.addf %348, %429 : vector<2x32xf32>
    %431 = arith.subf %415, %351 : vector<2x32xf32>
    %432 = arith.mulf %421, %431 : vector<2x32xf32>
    %433 = arith.addf %351, %432 : vector<2x32xf32>
    %434 = arith.mulf %424, %419 : vector<2x32xf32>
    %c4_91 = arith.constant 4 : index
    %c0_92 = arith.constant 0 : index
    %c0_93 = arith.constant 0 : index
    %435 = vector.load %arg12[%c4_91, %c0_92, %c0_93] : memref<8x2x32xf32, #tpu.memory_space<vmem>>, vector<1x2x32xf32>
    %436 = vector.shape_cast %435 : vector<1x2x32xf32> to vector<2x32xf32>
    %437 = vector.shape_cast %434 : vector<2x32xf32> to vector<1x2x32xf32>
    tpu.vector_store %arg12[%c4_91, %c0_92, %c0_93], %437 {strides = array<i32>} : memref<8x2x32xf32, #tpu.memory_space<vmem>>, vector<1x2x32xf32>,
    %438 = arith.mulf %430, %421 : vector<2x32xf32>
    %c3_94 = arith.constant 3 : index
    %c0_95 = arith.constant 0 : index
    %c0_96 = arith.constant 0 : index
    %439 = vector.load %arg13[%c3_94, %c0_95, %c0_96] : memref<8x2x32xf32, #tpu.memory_space<vmem>>, vector<1x2x32xf32>
    %440 = vector.shape_cast %439 : vector<1x2x32xf32> to vector<2x32xf32>
    %441 = vector.shape_cast %438 : vector<2x32xf32> to vector<1x2x32xf32>
    tpu.vector_store %arg13[%c3_94, %c0_95, %c0_96], %441 {strides = array<i32>} : memref<8x2x32xf32, #tpu.memory_space<vmem>>, vector<1x2x32xf32>,
    %442 = vector.extract_strided_slice %22 {offsets = [10, 0], sizes = [2, 128], strides = [1, 1]} : vector<16x256xf32> to vector<2x128xf32>
    %443 = vector.extract_strided_slice %22 {offsets = [4, 128], sizes = [2, 128], strides = [1, 1]} : vector<16x256xf32> to vector<2x128xf32>
    %444 = arith.truncf %424 : vector<2x32xf32> to vector<2x32xbf16>
    %cst_97 = arith.constant dense<0.000000e+00> : vector<2x128xf32>
    %445 = tpu.matmul %444, %29, %cst_97 {dimension_numbers = #tpu.dot_dimension_numbers<[1], [0], [0], [1], [0, 0, 1, 1], [], []>} : vector<2x32xbf16>, vector<32x128xbf16>, vector<2x128xf32> -> vector<2x128xf32>
    %446 = arith.addf %442, %445 : vector<2x128xf32>
    %447 = arith.truncf %430 : vector<2x32xf32> to vector<2x32xbf16>
    %cst_98 = arith.constant dense<0.000000e+00> : vector<2x128xf32>
    %448 = tpu.matmul %447, %30, %cst_98 {dimension_numbers = #tpu.dot_dimension_numbers<[1], [0], [0], [1], [0, 0, 1, 1], [], []>} : vector<2x32xbf16>, vector<32x128xbf16>, vector<2x128xf32> -> vector<2x128xf32>
    %449 = arith.addf %443, %448 : vector<2x128xf32>
    %450 = vector.extract_strided_slice %446 {offsets = [0, 0], sizes = [2, 32], strides = [1, 1]} : vector<2x128xf32> to vector<2x32xf32>
    %451 = arith.negf %450 : vector<2x32xf32>
    %452 = math.exp %451 : vector<2x32xf32>
    %cst_99 = arith.constant 1.000000e+00 : f32
    %453 = vector.broadcast %cst_99 : f32 to vector<2x32xf32>
    %454 = arith.addf %453, %452 : vector<2x32xf32>
    %455 = arith.divf %453, %454 : vector<2x32xf32>
    %456 = vector.extract_strided_slice %446 {offsets = [0, 32], sizes = [2, 32], strides = [1, 1]} : vector<2x128xf32> to vector<2x32xf32>
    %457 = arith.negf %456 : vector<2x32xf32>
    %458 = math.exp %457 : vector<2x32xf32>
    %cst_100 = arith.constant 1.000000e+00 : f32
    %459 = vector.broadcast %cst_100 : f32 to vector<2x32xf32>
    %460 = arith.addf %459, %458 : vector<2x32xf32>
    %461 = arith.divf %459, %460 : vector<2x32xf32>
    %462 = vector.extract_strided_slice %446 {offsets = [0, 64], sizes = [2, 32], strides = [1, 1]} : vector<2x128xf32> to vector<2x32xf32>
    %463 = math.tanh %462 : vector<2x32xf32>
    %464 = vector.extract_strided_slice %446 {offsets = [0, 96], sizes = [2, 32], strides = [1, 1]} : vector<2x128xf32> to vector<2x32xf32>
    %465 = arith.negf %464 : vector<2x32xf32>
    %466 = math.exp %465 : vector<2x32xf32>
    %cst_101 = arith.constant 1.000000e+00 : f32
    %467 = vector.broadcast %cst_101 : f32 to vector<2x32xf32>
    %468 = arith.addf %467, %466 : vector<2x32xf32>
    %469 = arith.divf %467, %468 : vector<2x32xf32>
    %470 = arith.mulf %461, %427 : vector<2x32xf32>
    %471 = arith.mulf %455, %463 : vector<2x32xf32>
    %472 = arith.addf %470, %471 : vector<2x32xf32>
    %473 = math.tanh %472 : vector<2x32xf32>
    %474 = arith.mulf %469, %473 : vector<2x32xf32>
    %475 = vector.extract_strided_slice %449 {offsets = [0, 0], sizes = [2, 32], strides = [1, 1]} : vector<2x128xf32> to vector<2x32xf32>
    %476 = arith.negf %475 : vector<2x32xf32>
    %477 = math.exp %476 : vector<2x32xf32>
    %cst_102 = arith.constant 1.000000e+00 : f32
    %478 = vector.broadcast %cst_102 : f32 to vector<2x32xf32>
    %479 = arith.addf %478, %477 : vector<2x32xf32>
    %480 = arith.divf %478, %479 : vector<2x32xf32>
    %481 = vector.extract_strided_slice %449 {offsets = [0, 32], sizes = [2, 32], strides = [1, 1]} : vector<2x128xf32> to vector<2x32xf32>
    %482 = arith.negf %481 : vector<2x32xf32>
    %483 = math.exp %482 : vector<2x32xf32>
    %cst_103 = arith.constant 1.000000e+00 : f32
    %484 = vector.broadcast %cst_103 : f32 to vector<2x32xf32>
    %485 = arith.addf %484, %483 : vector<2x32xf32>
    %486 = arith.divf %484, %485 : vector<2x32xf32>
    %487 = vector.extract_strided_slice %449 {offsets = [0, 64], sizes = [2, 32], strides = [1, 1]} : vector<2x128xf32> to vector<2x32xf32>
    %488 = math.tanh %487 : vector<2x32xf32>
    %489 = vector.extract_strided_slice %449 {offsets = [0, 96], sizes = [2, 32], strides = [1, 1]} : vector<2x128xf32> to vector<2x32xf32>
    %490 = arith.negf %489 : vector<2x32xf32>
    %491 = math.exp %490 : vector<2x32xf32>
    %cst_104 = arith.constant 1.000000e+00 : f32
    %492 = vector.broadcast %cst_104 : f32 to vector<2x32xf32>
    %493 = arith.addf %492, %491 : vector<2x32xf32>
    %494 = arith.divf %492, %493 : vector<2x32xf32>
    %495 = arith.mulf %486, %433 : vector<2x32xf32>
    %496 = arith.mulf %480, %488 : vector<2x32xf32>
    %497 = arith.addf %495, %496 : vector<2x32xf32>
    %498 = math.tanh %497 : vector<2x32xf32>
    %499 = arith.mulf %494, %498 : vector<2x32xf32>
    %500 = vector.extract_strided_slice %28 {offsets = [5, 0, 0], sizes = [1, 2, 32], strides = [1, 1, 1]} : vector<8x2x32xf32> to vector<1x2x32xf32>
    %501 = vector.shape_cast %500 : vector<1x2x32xf32> to vector<2x32xf32>
    %502 = vector.extract_strided_slice %28 {offsets = [2, 0, 0], sizes = [1, 2, 32], strides = [1, 1, 1]} : vector<8x2x32xf32> to vector<1x2x32xf32>
    %503 = vector.shape_cast %502 : vector<1x2x32xf32> to vector<2x32xf32>
    %504 = arith.subf %474, %424 : vector<2x32xf32>
    %505 = arith.mulf %501, %504 : vector<2x32xf32>
    %506 = arith.addf %424, %505 : vector<2x32xf32>
    %507 = arith.subf %472, %427 : vector<2x32xf32>
    %508 = arith.mulf %501, %507 : vector<2x32xf32>
    %509 = arith.addf %427, %508 : vector<2x32xf32>
    %510 = arith.subf %499, %430 : vector<2x32xf32>
    %511 = arith.mulf %503, %510 : vector<2x32xf32>
    %512 = arith.addf %430, %511 : vector<2x32xf32>
    %513 = arith.subf %497, %433 : vector<2x32xf32>
    %514 = arith.mulf %503, %513 : vector<2x32xf32>
    %515 = arith.addf %433, %514 : vector<2x32xf32>
    %516 = arith.mulf %506, %501 : vector<2x32xf32>
    %c5_105 = arith.constant 5 : index
    %c0_106 = arith.constant 0 : index
    %c0_107 = arith.constant 0 : index
    %517 = vector.load %arg12[%c5_105, %c0_106, %c0_107] : memref<8x2x32xf32, #tpu.memory_space<vmem>>, vector<1x2x32xf32>
    %518 = vector.shape_cast %517 : vector<1x2x32xf32> to vector<2x32xf32>
    %519 = vector.shape_cast %516 : vector<2x32xf32> to vector<1x2x32xf32>
    tpu.vector_store %arg12[%c5_105, %c0_106, %c0_107], %519 {strides = array<i32>} : memref<8x2x32xf32, #tpu.memory_space<vmem>>, vector<1x2x32xf32>,
    %520 = arith.mulf %512, %503 : vector<2x32xf32>
    %c2_108 = arith.constant 2 : index
    %c0_109 = arith.constant 0 : index
    %c0_110 = arith.constant 0 : index
    %521 = vector.load %arg13[%c2_108, %c0_109, %c0_110] : memref<8x2x32xf32, #tpu.memory_space<vmem>>, vector<1x2x32xf32>
    %522 = vector.shape_cast %521 : vector<1x2x32xf32> to vector<2x32xf32>
    %523 = vector.shape_cast %520 : vector<2x32xf32> to vector<1x2x32xf32>
    tpu.vector_store %arg13[%c2_108, %c0_109, %c0_110], %523 {strides = array<i32>} : memref<8x2x32xf32, #tpu.memory_space<vmem>>, vector<1x2x32xf32>,
    %524 = vector.extract_strided_slice %22 {offsets = [12, 0], sizes = [2, 128], strides = [1, 1]} : vector<16x256xf32> to vector<2x128xf32>
    %525 = vector.extract_strided_slice %22 {offsets = [2, 128], sizes = [2, 128], strides = [1, 1]} : vector<16x256xf32> to vector<2x128xf32>
    %526 = arith.truncf %506 : vector<2x32xf32> to vector<2x32xbf16>
    %cst_111 = arith.constant dense<0.000000e+00> : vector<2x128xf32>
    %527 = tpu.matmul %526, %29, %cst_111 {dimension_numbers = #tpu.dot_dimension_numbers<[1], [0], [0], [1], [0, 0, 1, 1], [], []>} : vector<2x32xbf16>, vector<32x128xbf16>, vector<2x128xf32> -> vector<2x128xf32>
    %528 = arith.addf %524, %527 : vector<2x128xf32>
    %529 = arith.truncf %512 : vector<2x32xf32> to vector<2x32xbf16>
    %cst_112 = arith.constant dense<0.000000e+00> : vector<2x128xf32>
    %530 = tpu.matmul %529, %30, %cst_112 {dimension_numbers = #tpu.dot_dimension_numbers<[1], [0], [0], [1], [0, 0, 1, 1], [], []>} : vector<2x32xbf16>, vector<32x128xbf16>, vector<2x128xf32> -> vector<2x128xf32>
    %531 = arith.addf %525, %530 : vector<2x128xf32>
    %532 = vector.extract_strided_slice %528 {offsets = [0, 0], sizes = [2, 32], strides = [1, 1]} : vector<2x128xf32> to vector<2x32xf32>
    %533 = arith.negf %532 : vector<2x32xf32>
    %534 = math.exp %533 : vector<2x32xf32>
    %cst_113 = arith.constant 1.000000e+00 : f32
    %535 = vector.broadcast %cst_113 : f32 to vector<2x32xf32>
    %536 = arith.addf %535, %534 : vector<2x32xf32>
    %537 = arith.divf %535, %536 : vector<2x32xf32>
    %538 = vector.extract_strided_slice %528 {offsets = [0, 32], sizes = [2, 32], strides = [1, 1]} : vector<2x128xf32> to vector<2x32xf32>
    %539 = arith.negf %538 : vector<2x32xf32>
    %540 = math.exp %539 : vector<2x32xf32>
    %cst_114 = arith.constant 1.000000e+00 : f32
    %541 = vector.broadcast %cst_114 : f32 to vector<2x32xf32>
    %542 = arith.addf %541, %540 : vector<2x32xf32>
    %543 = arith.divf %541, %542 : vector<2x32xf32>
    %544 = vector.extract_strided_slice %528 {offsets = [0, 64], sizes = [2, 32], strides = [1, 1]} : vector<2x128xf32> to vector<2x32xf32>
    %545 = math.tanh %544 : vector<2x32xf32>
    %546 = vector.extract_strided_slice %528 {offsets = [0, 96], sizes = [2, 32], strides = [1, 1]} : vector<2x128xf32> to vector<2x32xf32>
    %547 = arith.negf %546 : vector<2x32xf32>
    %548 = math.exp %547 : vector<2x32xf32>
    %cst_115 = arith.constant 1.000000e+00 : f32
    %549 = vector.broadcast %cst_115 : f32 to vector<2x32xf32>
    %550 = arith.addf %549, %548 : vector<2x32xf32>
    %551 = arith.divf %549, %550 : vector<2x32xf32>
    %552 = arith.mulf %543, %509 : vector<2x32xf32>
    %553 = arith.mulf %537, %545 : vector<2x32xf32>
    %554 = arith.addf %552, %553 : vector<2x32xf32>
    %555 = math.tanh %554 : vector<2x32xf32>
    %556 = arith.mulf %551, %555 : vector<2x32xf32>
    %557 = vector.extract_strided_slice %531 {offsets = [0, 0], sizes = [2, 32], strides = [1, 1]} : vector<2x128xf32> to vector<2x32xf32>
    %558 = arith.negf %557 : vector<2x32xf32>
    %559 = math.exp %558 : vector<2x32xf32>
    %cst_116 = arith.constant 1.000000e+00 : f32
    %560 = vector.broadcast %cst_116 : f32 to vector<2x32xf32>
    %561 = arith.addf %560, %559 : vector<2x32xf32>
    %562 = arith.divf %560, %561 : vector<2x32xf32>
    %563 = vector.extract_strided_slice %531 {offsets = [0, 32], sizes = [2, 32], strides = [1, 1]} : vector<2x128xf32> to vector<2x32xf32>
    %564 = arith.negf %563 : vector<2x32xf32>
    %565 = math.exp %564 : vector<2x32xf32>
    %cst_117 = arith.constant 1.000000e+00 : f32
    %566 = vector.broadcast %cst_117 : f32 to vector<2x32xf32>
    %567 = arith.addf %566, %565 : vector<2x32xf32>
    %568 = arith.divf %566, %567 : vector<2x32xf32>
    %569 = vector.extract_strided_slice %531 {offsets = [0, 64], sizes = [2, 32], strides = [1, 1]} : vector<2x128xf32> to vector<2x32xf32>
    %570 = math.tanh %569 : vector<2x32xf32>
    %571 = vector.extract_strided_slice %531 {offsets = [0, 96], sizes = [2, 32], strides = [1, 1]} : vector<2x128xf32> to vector<2x32xf32>
    %572 = arith.negf %571 : vector<2x32xf32>
    %573 = math.exp %572 : vector<2x32xf32>
    %cst_118 = arith.constant 1.000000e+00 : f32
    %574 = vector.broadcast %cst_118 : f32 to vector<2x32xf32>
    %575 = arith.addf %574, %573 : vector<2x32xf32>
    %576 = arith.divf %574, %575 : vector<2x32xf32>
    %577 = arith.mulf %568, %515 : vector<2x32xf32>
    %578 = arith.mulf %562, %570 : vector<2x32xf32>
    %579 = arith.addf %577, %578 : vector<2x32xf32>
    %580 = math.tanh %579 : vector<2x32xf32>
    %581 = arith.mulf %576, %580 : vector<2x32xf32>
    %582 = vector.extract_strided_slice %28 {offsets = [6, 0, 0], sizes = [1, 2, 32], strides = [1, 1, 1]} : vector<8x2x32xf32> to vector<1x2x32xf32>
    %583 = vector.shape_cast %582 : vector<1x2x32xf32> to vector<2x32xf32>
    %584 = vector.extract_strided_slice %28 {offsets = [1, 0, 0], sizes = [1, 2, 32], strides = [1, 1, 1]} : vector<8x2x32xf32> to vector<1x2x32xf32>
    %585 = vector.shape_cast %584 : vector<1x2x32xf32> to vector<2x32xf32>
    %586 = arith.subf %556, %506 : vector<2x32xf32>
    %587 = arith.mulf %583, %586 : vector<2x32xf32>
    %588 = arith.addf %506, %587 : vector<2x32xf32>
    %589 = arith.subf %554, %509 : vector<2x32xf32>
    %590 = arith.mulf %583, %589 : vector<2x32xf32>
    %591 = arith.addf %509, %590 : vector<2x32xf32>
    %592 = arith.subf %581, %512 : vector<2x32xf32>
    %593 = arith.mulf %585, %592 : vector<2x32xf32>
    %594 = arith.addf %512, %593 : vector<2x32xf32>
    %595 = arith.subf %579, %515 : vector<2x32xf32>
    %596 = arith.mulf %585, %595 : vector<2x32xf32>
    %597 = arith.addf %515, %596 : vector<2x32xf32>
    %598 = arith.mulf %588, %583 : vector<2x32xf32>
    %c6_119 = arith.constant 6 : index
    %c0_120 = arith.constant 0 : index
    %c0_121 = arith.constant 0 : index
    %599 = vector.load %arg12[%c6_119, %c0_120, %c0_121] : memref<8x2x32xf32, #tpu.memory_space<vmem>>, vector<1x2x32xf32>
    %600 = vector.shape_cast %599 : vector<1x2x32xf32> to vector<2x32xf32>
    %601 = vector.shape_cast %598 : vector<2x32xf32> to vector<1x2x32xf32>
    tpu.vector_store %arg12[%c6_119, %c0_120, %c0_121], %601 {strides = array<i32>} : memref<8x2x32xf32, #tpu.memory_space<vmem>>, vector<1x2x32xf32>,
    %602 = arith.mulf %594, %585 : vector<2x32xf32>
    %c1_122 = arith.constant 1 : index
    %c0_123 = arith.constant 0 : index
    %c0_124 = arith.constant 0 : index
    %603 = vector.load %arg13[%c1_122, %c0_123, %c0_124] : memref<8x2x32xf32, #tpu.memory_space<vmem>>, vector<1x2x32xf32>
    %604 = vector.shape_cast %603 : vector<1x2x32xf32> to vector<2x32xf32>
    %605 = vector.shape_cast %602 : vector<2x32xf32> to vector<1x2x32xf32>
    tpu.vector_store %arg13[%c1_122, %c0_123, %c0_124], %605 {strides = array<i32>} : memref<8x2x32xf32, #tpu.memory_space<vmem>>, vector<1x2x32xf32>,
    %606 = vector.extract_strided_slice %22 {offsets = [14, 0], sizes = [2, 128], strides = [1, 1]} : vector<16x256xf32> to vector<2x128xf32>
    %607 = vector.extract_strided_slice %22 {offsets = [0, 128], sizes = [2, 128], strides = [1, 1]} : vector<16x256xf32> to vector<2x128xf32>
    %608 = arith.truncf %588 : vector<2x32xf32> to vector<2x32xbf16>
    %cst_125 = arith.constant dense<0.000000e+00> : vector<2x128xf32>
    %609 = tpu.matmul %608, %29, %cst_125 {dimension_numbers = #tpu.dot_dimension_numbers<[1], [0], [0], [1], [0, 0, 1, 1], [], []>} : vector<2x32xbf16>, vector<32x128xbf16>, vector<2x128xf32> -> vector<2x128xf32>
    %610 = arith.addf %606, %609 : vector<2x128xf32>
    %611 = arith.truncf %594 : vector<2x32xf32> to vector<2x32xbf16>
    %cst_126 = arith.constant dense<0.000000e+00> : vector<2x128xf32>
    %612 = tpu.matmul %611, %30, %cst_126 {dimension_numbers = #tpu.dot_dimension_numbers<[1], [0], [0], [1], [0, 0, 1, 1], [], []>} : vector<2x32xbf16>, vector<32x128xbf16>, vector<2x128xf32> -> vector<2x128xf32>
    %613 = arith.addf %607, %612 : vector<2x128xf32>
    %614 = vector.extract_strided_slice %610 {offsets = [0, 0], sizes = [2, 32], strides = [1, 1]} : vector<2x128xf32> to vector<2x32xf32>
    %615 = arith.negf %614 : vector<2x32xf32>
    %616 = math.exp %615 : vector<2x32xf32>
    %cst_127 = arith.constant 1.000000e+00 : f32
    %617 = vector.broadcast %cst_127 : f32 to vector<2x32xf32>
    %618 = arith.addf %617, %616 : vector<2x32xf32>
    %619 = arith.divf %617, %618 : vector<2x32xf32>
    %620 = vector.extract_strided_slice %610 {offsets = [0, 32], sizes = [2, 32], strides = [1, 1]} : vector<2x128xf32> to vector<2x32xf32>
    %621 = arith.negf %620 : vector<2x32xf32>
    %622 = math.exp %621 : vector<2x32xf32>
    %cst_128 = arith.constant 1.000000e+00 : f32
    %623 = vector.broadcast %cst_128 : f32 to vector<2x32xf32>
    %624 = arith.addf %623, %622 : vector<2x32xf32>
    %625 = arith.divf %623, %624 : vector<2x32xf32>
    %626 = vector.extract_strided_slice %610 {offsets = [0, 64], sizes = [2, 32], strides = [1, 1]} : vector<2x128xf32> to vector<2x32xf32>
    %627 = math.tanh %626 : vector<2x32xf32>
    %628 = vector.extract_strided_slice %610 {offsets = [0, 96], sizes = [2, 32], strides = [1, 1]} : vector<2x128xf32> to vector<2x32xf32>
    %629 = arith.negf %628 : vector<2x32xf32>
    %630 = math.exp %629 : vector<2x32xf32>
    %cst_129 = arith.constant 1.000000e+00 : f32
    %631 = vector.broadcast %cst_129 : f32 to vector<2x32xf32>
    %632 = arith.addf %631, %630 : vector<2x32xf32>
    %633 = arith.divf %631, %632 : vector<2x32xf32>
    %634 = arith.mulf %625, %591 : vector<2x32xf32>
    %635 = arith.mulf %619, %627 : vector<2x32xf32>
    %636 = arith.addf %634, %635 : vector<2x32xf32>
    %637 = math.tanh %636 : vector<2x32xf32>
    %638 = arith.mulf %633, %637 : vector<2x32xf32>
    %639 = vector.extract_strided_slice %613 {offsets = [0, 0], sizes = [2, 32], strides = [1, 1]} : vector<2x128xf32> to vector<2x32xf32>
    %640 = arith.negf %639 : vector<2x32xf32>
    %641 = math.exp %640 : vector<2x32xf32>
    %cst_130 = arith.constant 1.000000e+00 : f32
    %642 = vector.broadcast %cst_130 : f32 to vector<2x32xf32>
    %643 = arith.addf %642, %641 : vector<2x32xf32>
    %644 = arith.divf %642, %643 : vector<2x32xf32>
    %645 = vector.extract_strided_slice %613 {offsets = [0, 32], sizes = [2, 32], strides = [1, 1]} : vector<2x128xf32> to vector<2x32xf32>
    %646 = arith.negf %645 : vector<2x32xf32>
    %647 = math.exp %646 : vector<2x32xf32>
    %cst_131 = arith.constant 1.000000e+00 : f32
    %648 = vector.broadcast %cst_131 : f32 to vector<2x32xf32>
    %649 = arith.addf %648, %647 : vector<2x32xf32>
    %650 = arith.divf %648, %649 : vector<2x32xf32>
    %651 = vector.extract_strided_slice %613 {offsets = [0, 64], sizes = [2, 32], strides = [1, 1]} : vector<2x128xf32> to vector<2x32xf32>
    %652 = math.tanh %651 : vector<2x32xf32>
    %653 = vector.extract_strided_slice %613 {offsets = [0, 96], sizes = [2, 32], strides = [1, 1]} : vector<2x128xf32> to vector<2x32xf32>
    %654 = arith.negf %653 : vector<2x32xf32>
    %655 = math.exp %654 : vector<2x32xf32>
    %cst_132 = arith.constant 1.000000e+00 : f32
    %656 = vector.broadcast %cst_132 : f32 to vector<2x32xf32>
    %657 = arith.addf %656, %655 : vector<2x32xf32>
    %658 = arith.divf %656, %657 : vector<2x32xf32>
    %659 = arith.mulf %650, %597 : vector<2x32xf32>
    %660 = arith.mulf %644, %652 : vector<2x32xf32>
    %661 = arith.addf %659, %660 : vector<2x32xf32>
    %662 = math.tanh %661 : vector<2x32xf32>
    %663 = arith.mulf %658, %662 : vector<2x32xf32>
    %664 = vector.extract_strided_slice %28 {offsets = [7, 0, 0], sizes = [1, 2, 32], strides = [1, 1, 1]} : vector<8x2x32xf32> to vector<1x2x32xf32>
    %665 = vector.shape_cast %664 : vector<1x2x32xf32> to vector<2x32xf32>
    %666 = vector.extract_strided_slice %28 {offsets = [0, 0, 0], sizes = [1, 2, 32], strides = [1, 1, 1]} : vector<8x2x32xf32> to vector<1x2x32xf32>
    %667 = vector.shape_cast %666 : vector<1x2x32xf32> to vector<2x32xf32>
    %668 = arith.subf %638, %588 : vector<2x32xf32>
    %669 = arith.mulf %665, %668 : vector<2x32xf32>
    %670 = arith.addf %588, %669 : vector<2x32xf32>
    %671 = arith.subf %663, %594 : vector<2x32xf32>
    %672 = arith.mulf %667, %671 : vector<2x32xf32>
    %673 = arith.addf %594, %672 : vector<2x32xf32>
    %674 = arith.mulf %670, %665 : vector<2x32xf32>
    %c7_133 = arith.constant 7 : index
    %c0_134 = arith.constant 0 : index
    %c0_135 = arith.constant 0 : index
    %675 = vector.load %arg12[%c7_133, %c0_134, %c0_135] : memref<8x2x32xf32, #tpu.memory_space<vmem>>, vector<1x2x32xf32>
    %676 = vector.shape_cast %675 : vector<1x2x32xf32> to vector<2x32xf32>
    %677 = vector.shape_cast %674 : vector<2x32xf32> to vector<1x2x32xf32>
    tpu.vector_store %arg12[%c7_133, %c0_134, %c0_135], %677 {strides = array<i32>} : memref<8x2x32xf32, #tpu.memory_space<vmem>>, vector<1x2x32xf32>,
    %678 = arith.mulf %673, %667 : vector<2x32xf32>
    %c0_136 = arith.constant 0 : index
    %c0_137 = arith.constant 0 : index
    %c0_138 = arith.constant 0 : index
    %679 = vector.load %arg13[%c0_136, %c0_137, %c0_138] : memref<8x2x32xf32, #tpu.memory_space<vmem>>, vector<1x2x32xf32>
    %680 = vector.shape_cast %679 : vector<1x2x32xf32> to vector<2x32xf32>
    %681 = vector.shape_cast %678 : vector<2x32xf32> to vector<1x2x32xf32>
    tpu.vector_store %arg13[%c0_136, %c0_137, %c0_138], %681 {strides = array<i32>} : memref<8x2x32xf32, #tpu.memory_space<vmem>>, vector<1x2x32xf32>,
    %c0_139 = arith.constant 0 : index
    %c0_140 = arith.constant 0 : index
    %c0_141 = arith.constant 0 : index
    %682 = vector.load %arg12[%c0_139, %c0_140, %c0_141] : memref<8x2x32xf32, #tpu.memory_space<vmem>>, vector<1x2x32xf32>
    %683 = vector.shape_cast %682 : vector<1x2x32xf32> to vector<2x32xf32>
    %c1_142 = arith.constant 1 : index
    %c0_143 = arith.constant 0 : index
    %c0_144 = arith.constant 0 : index
    %684 = vector.load %arg12[%c1_142, %c0_143, %c0_144] : memref<8x2x32xf32, #tpu.memory_space<vmem>>, vector<1x2x32xf32>
    %685 = vector.shape_cast %684 : vector<1x2x32xf32> to vector<2x32xf32>
    %c2_145 = arith.constant 2 : index
    %c0_146 = arith.constant 0 : index
    %c0_147 = arith.constant 0 : index
    %686 = vector.load %arg12[%c2_145, %c0_146, %c0_147] : memref<8x2x32xf32, #tpu.memory_space<vmem>>, vector<1x2x32xf32>
    %687 = vector.shape_cast %686 : vector<1x2x32xf32> to vector<2x32xf32>
    %c3_148 = arith.constant 3 : index
    %c0_149 = arith.constant 0 : index
    %c0_150 = arith.constant 0 : index
    %688 = vector.load %arg12[%c3_148, %c0_149, %c0_150] : memref<8x2x32xf32, #tpu.memory_space<vmem>>, vector<1x2x32xf32>
    %689 = vector.shape_cast %688 : vector<1x2x32xf32> to vector<2x32xf32>
    %c4_151 = arith.constant 4 : index
    %c0_152 = arith.constant 0 : index
    %c0_153 = arith.constant 0 : index
    %690 = vector.load %arg12[%c4_151, %c0_152, %c0_153] : memref<8x2x32xf32, #tpu.memory_space<vmem>>, vector<1x2x32xf32>
    %691 = vector.shape_cast %690 : vector<1x2x32xf32> to vector<2x32xf32>
    %c5_154 = arith.constant 5 : index
    %c0_155 = arith.constant 0 : index
    %c0_156 = arith.constant 0 : index
    %692 = vector.load %arg12[%c5_154, %c0_155, %c0_156] : memref<8x2x32xf32, #tpu.memory_space<vmem>>, vector<1x2x32xf32>
    %693 = vector.shape_cast %692 : vector<1x2x32xf32> to vector<2x32xf32>
    %c6_157 = arith.constant 6 : index
    %c0_158 = arith.constant 0 : index
    %c0_159 = arith.constant 0 : index
    %694 = vector.load %arg12[%c6_157, %c0_158, %c0_159] : memref<8x2x32xf32, #tpu.memory_space<vmem>>, vector<1x2x32xf32>
    %695 = vector.shape_cast %694 : vector<1x2x32xf32> to vector<2x32xf32>
    %c7_160 = arith.constant 7 : index
    %c0_161 = arith.constant 0 : index
    %c0_162 = arith.constant 0 : index
    %696 = vector.load %arg12[%c7_160, %c0_161, %c0_162] : memref<8x2x32xf32, #tpu.memory_space<vmem>>, vector<1x2x32xf32>
    %697 = vector.shape_cast %696 : vector<1x2x32xf32> to vector<2x32xf32>
    %698 = tpu.concatenate %683, %685, %687, %689, %691, %693, %695, %697 in 0 : vector<2x32xf32>, vector<2x32xf32>, vector<2x32xf32>, vector<2x32xf32>, vector<2x32xf32>, vector<2x32xf32>, vector<2x32xf32>, vector<2x32xf32> -> vector<16x32xf32>
    %c0_163 = arith.constant 0 : index
    %c0_164 = arith.constant 0 : index
    %c0_165 = arith.constant 0 : index
    %699 = vector.load %arg13[%c0_163, %c0_164, %c0_165] : memref<8x2x32xf32, #tpu.memory_space<vmem>>, vector<1x2x32xf32>
    %700 = vector.shape_cast %699 : vector<1x2x32xf32> to vector<2x32xf32>
    %c1_166 = arith.constant 1 : index
    %c0_167 = arith.constant 0 : index
    %c0_168 = arith.constant 0 : index
    %701 = vector.load %arg13[%c1_166, %c0_167, %c0_168] : memref<8x2x32xf32, #tpu.memory_space<vmem>>, vector<1x2x32xf32>
    %702 = vector.shape_cast %701 : vector<1x2x32xf32> to vector<2x32xf32>
    %c2_169 = arith.constant 2 : index
    %c0_170 = arith.constant 0 : index
    %c0_171 = arith.constant 0 : index
    %703 = vector.load %arg13[%c2_169, %c0_170, %c0_171] : memref<8x2x32xf32, #tpu.memory_space<vmem>>, vector<1x2x32xf32>
    %704 = vector.shape_cast %703 : vector<1x2x32xf32> to vector<2x32xf32>
    %c3_172 = arith.constant 3 : index
    %c0_173 = arith.constant 0 : index
    %c0_174 = arith.constant 0 : index
    %705 = vector.load %arg13[%c3_172, %c0_173, %c0_174] : memref<8x2x32xf32, #tpu.memory_space<vmem>>, vector<1x2x32xf32>
    %706 = vector.shape_cast %705 : vector<1x2x32xf32> to vector<2x32xf32>
    %c4_175 = arith.constant 4 : index
    %c0_176 = arith.constant 0 : index
    %c0_177 = arith.constant 0 : index
    %707 = vector.load %arg13[%c4_175, %c0_176, %c0_177] : memref<8x2x32xf32, #tpu.memory_space<vmem>>, vector<1x2x32xf32>
    %708 = vector.shape_cast %707 : vector<1x2x32xf32> to vector<2x32xf32>
    %c5_178 = arith.constant 5 : index
    %c0_179 = arith.constant 0 : index
    %c0_180 = arith.constant 0 : index
    %709 = vector.load %arg13[%c5_178, %c0_179, %c0_180] : memref<8x2x32xf32, #tpu.memory_space<vmem>>, vector<1x2x32xf32>
    %710 = vector.shape_cast %709 : vector<1x2x32xf32> to vector<2x32xf32>
    %c6_181 = arith.constant 6 : index
    %c0_182 = arith.constant 0 : index
    %c0_183 = arith.constant 0 : index
    %711 = vector.load %arg13[%c6_181, %c0_182, %c0_183] : memref<8x2x32xf32, #tpu.memory_space<vmem>>, vector<1x2x32xf32>
    %712 = vector.shape_cast %711 : vector<1x2x32xf32> to vector<2x32xf32>
    %c7_184 = arith.constant 7 : index
    %c0_185 = arith.constant 0 : index
    %c0_186 = arith.constant 0 : index
    %713 = vector.load %arg13[%c7_184, %c0_185, %c0_186] : memref<8x2x32xf32, #tpu.memory_space<vmem>>, vector<1x2x32xf32>
    %714 = vector.shape_cast %713 : vector<1x2x32xf32> to vector<2x32xf32>
    %715 = tpu.concatenate %700, %702, %704, %706, %708, %710, %712, %714 in 0 : vector<2x32xf32>, vector<2x32xf32>, vector<2x32xf32>, vector<2x32xf32>, vector<2x32xf32>, vector<2x32xf32>, vector<2x32xf32>, vector<2x32xf32> -> vector<16x32xf32>
    %716 = arith.truncf %698 : vector<16x32xf32> to vector<16x32xbf16>
    %c0_187 = arith.constant 0 : index
    %c0_188 = arith.constant 0 : index
    %717 = vector.load %arg7[%c0_187, %c0_188] : memref<32x64xbf16, #tpu.memory_space<vmem>>, vector<32x64xbf16>
    %cst_189 = arith.constant dense<0.000000e+00> : vector<16x64xf32>
    %718 = tpu.matmul %716, %717, %cst_189 {dimension_numbers = #tpu.dot_dimension_numbers<[1], [0], [0], [1], [0, 0, 1, 1], [], []>} : vector<16x32xbf16>, vector<32x64xbf16>, vector<16x64xf32> -> vector<16x64xf32>
    %719 = arith.truncf %715 : vector<16x32xf32> to vector<16x32xbf16>
    %c0_190 = arith.constant 0 : index
    %c0_191 = arith.constant 0 : index
    %720 = vector.load %arg8[%c0_190, %c0_191] : memref<32x64xbf16, #tpu.memory_space<vmem>>, vector<32x64xbf16>
    %cst_192 = arith.constant dense<0.000000e+00> : vector<16x64xf32>
    %721 = tpu.matmul %719, %720, %cst_192 {dimension_numbers = #tpu.dot_dimension_numbers<[1], [0], [0], [1], [0, 0, 1, 1], [], []>} : vector<16x32xbf16>, vector<32x64xbf16>, vector<16x64xf32> -> vector<16x64xf32>
    %722 = arith.addf %718, %721 : vector<16x64xf32>
    %c0_193 = arith.constant 0 : index
    %c0_194 = arith.constant 0 : index
    %723 = vector.load %arg9[%c0_193, %c0_194] : memref<1x64xf32, #tpu.memory_space<vmem>>, vector<1x64xf32>
    %724 = vector.broadcast %723 : vector<1x64xf32> to vector<16x64xf32>
    %725 = arith.addf %722, %724 : vector<16x64xf32>
    %726 = math.tanh %725 : vector<16x64xf32>
    %c0_195 = arith.constant 0 : index
    %c0_196 = arith.constant 0 : index
    %727 = vector.load %arg10[%c0_195, %c0_196] : memref<1x64xf32, #tpu.memory_space<vmem>>, vector<1x64xf32>
    %728 = vector.broadcast %727 : vector<1x64xf32> to vector<16x64xf32>
    %729 = arith.mulf %726, %728 : vector<16x64xf32>
    %cst_197 = arith.constant dense<0.000000e+00> : vector<16xf32>
    %730 = vector.multi_reduction <add>, %729, %cst_197 [1] : vector<16x64xf32> to vector<16xf32>
    %731 = vector.shape_cast %730 : vector<16xf32> to vector<16x1xf32>
    %732 = vector.extract_strided_slice %731 {offsets = [0, 0], sizes = [2, 1], strides = [1, 1]} : vector<16x1xf32> to vector<2x1xf32>
    %733 = vector.extract_strided_slice %28 {offsets = [0, 0, 0], sizes = [1, 2, 32], strides = [1, 1, 1]} : vector<8x2x32xf32> to vector<1x2x32xf32>
    %734 = vector.shape_cast %733 : vector<1x2x32xf32> to vector<2x32xf32>
    %735 = vector.extract_strided_slice %734 {offsets = [0, 0], sizes = [2, 1], strides = [1, 1]} : vector<2x32xf32> to vector<2x1xf32>
    %cst_198 = arith.constant 0.000000e+00 : f32
    %736 = vector.broadcast %cst_198 : f32 to vector<2x1xf32>
    %737 = arith.cmpf ogt, %735, %736 : vector<2x1xf32>
    %cst_199 = arith.constant -1.000000e+32 : f32
    %738 = vector.broadcast %cst_199 : f32 to vector<2x1xf32>
    %739 = arith.select %737, %732, %738 : vector<2x1xi1>, vector<2x1xf32>
    %740 = vector.extract_strided_slice %731 {offsets = [2, 0], sizes = [2, 1], strides = [1, 1]} : vector<16x1xf32> to vector<2x1xf32>
    %741 = vector.extract_strided_slice %28 {offsets = [1, 0, 0], sizes = [1, 2, 32], strides = [1, 1, 1]} : vector<8x2x32xf32> to vector<1x2x32xf32>
    %742 = vector.shape_cast %741 : vector<1x2x32xf32> to vector<2x32xf32>
    %743 = vector.extract_strided_slice %742 {offsets = [0, 0], sizes = [2, 1], strides = [1, 1]} : vector<2x32xf32> to vector<2x1xf32>
    %cst_200 = arith.constant 0.000000e+00 : f32
    %744 = vector.broadcast %cst_200 : f32 to vector<2x1xf32>
    %745 = arith.cmpf ogt, %743, %744 : vector<2x1xf32>
    %cst_201 = arith.constant -1.000000e+32 : f32
    %746 = vector.broadcast %cst_201 : f32 to vector<2x1xf32>
    %747 = arith.select %745, %740, %746 : vector<2x1xi1>, vector<2x1xf32>
    %748 = vector.extract_strided_slice %731 {offsets = [4, 0], sizes = [2, 1], strides = [1, 1]} : vector<16x1xf32> to vector<2x1xf32>
    %749 = vector.extract_strided_slice %28 {offsets = [2, 0, 0], sizes = [1, 2, 32], strides = [1, 1, 1]} : vector<8x2x32xf32> to vector<1x2x32xf32>
    %750 = vector.shape_cast %749 : vector<1x2x32xf32> to vector<2x32xf32>
    %751 = vector.extract_strided_slice %750 {offsets = [0, 0], sizes = [2, 1], strides = [1, 1]} : vector<2x32xf32> to vector<2x1xf32>
    %cst_202 = arith.constant 0.000000e+00 : f32
    %752 = vector.broadcast %cst_202 : f32 to vector<2x1xf32>
    %753 = arith.cmpf ogt, %751, %752 : vector<2x1xf32>
    %cst_203 = arith.constant -1.000000e+32 : f32
    %754 = vector.broadcast %cst_203 : f32 to vector<2x1xf32>
    %755 = arith.select %753, %748, %754 : vector<2x1xi1>, vector<2x1xf32>
    %756 = vector.extract_strided_slice %731 {offsets = [6, 0], sizes = [2, 1], strides = [1, 1]} : vector<16x1xf32> to vector<2x1xf32>
    %757 = vector.extract_strided_slice %28 {offsets = [3, 0, 0], sizes = [1, 2, 32], strides = [1, 1, 1]} : vector<8x2x32xf32> to vector<1x2x32xf32>
    %758 = vector.shape_cast %757 : vector<1x2x32xf32> to vector<2x32xf32>
    %759 = vector.extract_strided_slice %758 {offsets = [0, 0], sizes = [2, 1], strides = [1, 1]} : vector<2x32xf32> to vector<2x1xf32>
    %cst_204 = arith.constant 0.000000e+00 : f32
    %760 = vector.broadcast %cst_204 : f32 to vector<2x1xf32>
    %761 = arith.cmpf ogt, %759, %760 : vector<2x1xf32>
    %cst_205 = arith.constant -1.000000e+32 : f32
    %762 = vector.broadcast %cst_205 : f32 to vector<2x1xf32>
    %763 = arith.select %761, %756, %762 : vector<2x1xi1>, vector<2x1xf32>
    %764 = vector.extract_strided_slice %731 {offsets = [8, 0], sizes = [2, 1], strides = [1, 1]} : vector<16x1xf32> to vector<2x1xf32>
    %765 = vector.extract_strided_slice %28 {offsets = [4, 0, 0], sizes = [1, 2, 32], strides = [1, 1, 1]} : vector<8x2x32xf32> to vector<1x2x32xf32>
    %766 = vector.shape_cast %765 : vector<1x2x32xf32> to vector<2x32xf32>
    %767 = vector.extract_strided_slice %766 {offsets = [0, 0], sizes = [2, 1], strides = [1, 1]} : vector<2x32xf32> to vector<2x1xf32>
    %cst_206 = arith.constant 0.000000e+00 : f32
    %768 = vector.broadcast %cst_206 : f32 to vector<2x1xf32>
    %769 = arith.cmpf ogt, %767, %768 : vector<2x1xf32>
    %cst_207 = arith.constant -1.000000e+32 : f32
    %770 = vector.broadcast %cst_207 : f32 to vector<2x1xf32>
    %771 = arith.select %769, %764, %770 : vector<2x1xi1>, vector<2x1xf32>
    %772 = vector.extract_strided_slice %731 {offsets = [10, 0], sizes = [2, 1], strides = [1, 1]} : vector<16x1xf32> to vector<2x1xf32>
    %773 = vector.extract_strided_slice %28 {offsets = [5, 0, 0], sizes = [1, 2, 32], strides = [1, 1, 1]} : vector<8x2x32xf32> to vector<1x2x32xf32>
    %774 = vector.shape_cast %773 : vector<1x2x32xf32> to vector<2x32xf32>
    %775 = vector.extract_strided_slice %774 {offsets = [0, 0], sizes = [2, 1], strides = [1, 1]} : vector<2x32xf32> to vector<2x1xf32>
    %cst_208 = arith.constant 0.000000e+00 : f32
    %776 = vector.broadcast %cst_208 : f32 to vector<2x1xf32>
    %777 = arith.cmpf ogt, %775, %776 : vector<2x1xf32>
    %cst_209 = arith.constant -1.000000e+32 : f32
    %778 = vector.broadcast %cst_209 : f32 to vector<2x1xf32>
    %779 = arith.select %777, %772, %778 : vector<2x1xi1>, vector<2x1xf32>
    %780 = vector.extract_strided_slice %731 {offsets = [12, 0], sizes = [2, 1], strides = [1, 1]} : vector<16x1xf32> to vector<2x1xf32>
    %781 = vector.extract_strided_slice %28 {offsets = [6, 0, 0], sizes = [1, 2, 32], strides = [1, 1, 1]} : vector<8x2x32xf32> to vector<1x2x32xf32>
    %782 = vector.shape_cast %781 : vector<1x2x32xf32> to vector<2x32xf32>
    %783 = vector.extract_strided_slice %782 {offsets = [0, 0], sizes = [2, 1], strides = [1, 1]} : vector<2x32xf32> to vector<2x1xf32>
    %cst_210 = arith.constant 0.000000e+00 : f32
    %784 = vector.broadcast %cst_210 : f32 to vector<2x1xf32>
    %785 = arith.cmpf ogt, %783, %784 : vector<2x1xf32>
    %cst_211 = arith.constant -1.000000e+32 : f32
    %786 = vector.broadcast %cst_211 : f32 to vector<2x1xf32>
    %787 = arith.select %785, %780, %786 : vector<2x1xi1>, vector<2x1xf32>
    %788 = vector.extract_strided_slice %731 {offsets = [14, 0], sizes = [2, 1], strides = [1, 1]} : vector<16x1xf32> to vector<2x1xf32>
    %789 = vector.extract_strided_slice %28 {offsets = [7, 0, 0], sizes = [1, 2, 32], strides = [1, 1, 1]} : vector<8x2x32xf32> to vector<1x2x32xf32>
    %790 = vector.shape_cast %789 : vector<1x2x32xf32> to vector<2x32xf32>
    %791 = vector.extract_strided_slice %790 {offsets = [0, 0], sizes = [2, 1], strides = [1, 1]} : vector<2x32xf32> to vector<2x1xf32>
    %cst_212 = arith.constant 0.000000e+00 : f32
    %792 = vector.broadcast %cst_212 : f32 to vector<2x1xf32>
    %793 = arith.cmpf ogt, %791, %792 : vector<2x1xf32>
    %cst_213 = arith.constant -1.000000e+32 : f32
    %794 = vector.broadcast %cst_213 : f32 to vector<2x1xf32>
    %795 = arith.select %793, %788, %794 : vector<2x1xi1>, vector<2x1xf32>
    %796 = arith.maximumf %739, %747 : vector<2x1xf32>
    %797 = arith.maximumf %796, %755 : vector<2x1xf32>
    %798 = arith.maximumf %797, %763 : vector<2x1xf32>
    %799 = arith.maximumf %798, %771 : vector<2x1xf32>
    %800 = arith.maximumf %799, %779 : vector<2x1xf32>
    %801 = arith.maximumf %800, %787 : vector<2x1xf32>
    %802 = arith.maximumf %801, %795 : vector<2x1xf32>
    %803 = arith.subf %739, %802 : vector<2x1xf32>
    %804 = math.exp %803 : vector<2x1xf32>
    %805 = arith.subf %747, %802 : vector<2x1xf32>
    %806 = math.exp %805 : vector<2x1xf32>
    %807 = arith.subf %755, %802 : vector<2x1xf32>
    %808 = math.exp %807 : vector<2x1xf32>
    %809 = arith.subf %763, %802 : vector<2x1xf32>
    %810 = math.exp %809 : vector<2x1xf32>
    %811 = arith.subf %771, %802 : vector<2x1xf32>
    %812 = math.exp %811 : vector<2x1xf32>
    %813 = arith.subf %779, %802 : vector<2x1xf32>
    %814 = math.exp %813 : vector<2x1xf32>
    %815 = arith.subf %787, %802 : vector<2x1xf32>
    %816 = math.exp %815 : vector<2x1xf32>
    %817 = arith.subf %795, %802 : vector<2x1xf32>
    %818 = math.exp %817 : vector<2x1xf32>
    %819 = arith.addf %804, %806 : vector<2x1xf32>
    %820 = arith.addf %819, %808 : vector<2x1xf32>
    %821 = arith.addf %820, %810 : vector<2x1xf32>
    %822 = arith.addf %821, %812 : vector<2x1xf32>
    %823 = arith.addf %822, %814 : vector<2x1xf32>
    %824 = arith.addf %823, %816 : vector<2x1xf32>
    %825 = arith.addf %824, %818 : vector<2x1xf32>
    %826 = tpu.reciprocal %825 {approx = true} : vector<2x1xf32> -> vector<2x1xf32>
    %cst_214 = arith.constant 0.000000e+00 : f32
    %827 = vector.broadcast %cst_214 : f32 to vector<2x32xf32>
    %cst_215 = arith.constant 0.000000e+00 : f32
    %828 = vector.broadcast %cst_215 : f32 to vector<2x32xf32>
    %829 = arith.mulf %804, %826 : vector<2x1xf32>
    %c0_216 = arith.constant 0 : index
    %c0_217 = arith.constant 0 : index
    %c0_218 = arith.constant 0 : index
    %830 = vector.load %arg12[%c0_216, %c0_217, %c0_218] : memref<8x2x32xf32, #tpu.memory_space<vmem>>, vector<1x2x32xf32>
    %831 = vector.shape_cast %830 : vector<1x2x32xf32> to vector<2x32xf32>
    %832 = vector.broadcast %829 : vector<2x1xf32> to vector<2x32xf32>
    %833 = arith.mulf %832, %831 : vector<2x32xf32>
    %834 = arith.addf %827, %833 : vector<2x32xf32>
    %c0_219 = arith.constant 0 : index
    %c0_220 = arith.constant 0 : index
    %c0_221 = arith.constant 0 : index
    %835 = vector.load %arg13[%c0_219, %c0_220, %c0_221] : memref<8x2x32xf32, #tpu.memory_space<vmem>>, vector<1x2x32xf32>
    %836 = vector.shape_cast %835 : vector<1x2x32xf32> to vector<2x32xf32>
    %837 = vector.broadcast %829 : vector<2x1xf32> to vector<2x32xf32>
    %838 = arith.mulf %837, %836 : vector<2x32xf32>
    %839 = arith.addf %828, %838 : vector<2x32xf32>
    %840 = arith.mulf %806, %826 : vector<2x1xf32>
    %c1_222 = arith.constant 1 : index
    %c0_223 = arith.constant 0 : index
    %c0_224 = arith.constant 0 : index
    %841 = vector.load %arg12[%c1_222, %c0_223, %c0_224] : memref<8x2x32xf32, #tpu.memory_space<vmem>>, vector<1x2x32xf32>
    %842 = vector.shape_cast %841 : vector<1x2x32xf32> to vector<2x32xf32>
    %843 = vector.broadcast %840 : vector<2x1xf32> to vector<2x32xf32>
    %844 = arith.mulf %843, %842 : vector<2x32xf32>
    %845 = arith.addf %834, %844 : vector<2x32xf32>
    %c1_225 = arith.constant 1 : index
    %c0_226 = arith.constant 0 : index
    %c0_227 = arith.constant 0 : index
    %846 = vector.load %arg13[%c1_225, %c0_226, %c0_227] : memref<8x2x32xf32, #tpu.memory_space<vmem>>, vector<1x2x32xf32>
    %847 = vector.shape_cast %846 : vector<1x2x32xf32> to vector<2x32xf32>
    %848 = vector.broadcast %840 : vector<2x1xf32> to vector<2x32xf32>
    %849 = arith.mulf %848, %847 : vector<2x32xf32>
    %850 = arith.addf %839, %849 : vector<2x32xf32>
    %851 = arith.mulf %808, %826 : vector<2x1xf32>
    %c2_228 = arith.constant 2 : index
    %c0_229 = arith.constant 0 : index
    %c0_230 = arith.constant 0 : index
    %852 = vector.load %arg12[%c2_228, %c0_229, %c0_230] : memref<8x2x32xf32, #tpu.memory_space<vmem>>, vector<1x2x32xf32>
    %853 = vector.shape_cast %852 : vector<1x2x32xf32> to vector<2x32xf32>
    %854 = vector.broadcast %851 : vector<2x1xf32> to vector<2x32xf32>
    %855 = arith.mulf %854, %853 : vector<2x32xf32>
    %856 = arith.addf %845, %855 : vector<2x32xf32>
    %c2_231 = arith.constant 2 : index
    %c0_232 = arith.constant 0 : index
    %c0_233 = arith.constant 0 : index
    %857 = vector.load %arg13[%c2_231, %c0_232, %c0_233] : memref<8x2x32xf32, #tpu.memory_space<vmem>>, vector<1x2x32xf32>
    %858 = vector.shape_cast %857 : vector<1x2x32xf32> to vector<2x32xf32>
    %859 = vector.broadcast %851 : vector<2x1xf32> to vector<2x32xf32>
    %860 = arith.mulf %859, %858 : vector<2x32xf32>
    %861 = arith.addf %850, %860 : vector<2x32xf32>
    %862 = arith.mulf %810, %826 : vector<2x1xf32>
    %c3_234 = arith.constant 3 : index
    %c0_235 = arith.constant 0 : index
    %c0_236 = arith.constant 0 : index
    %863 = vector.load %arg12[%c3_234, %c0_235, %c0_236] : memref<8x2x32xf32, #tpu.memory_space<vmem>>, vector<1x2x32xf32>
    %864 = vector.shape_cast %863 : vector<1x2x32xf32> to vector<2x32xf32>
    %865 = vector.broadcast %862 : vector<2x1xf32> to vector<2x32xf32>
    %866 = arith.mulf %865, %864 : vector<2x32xf32>
    %867 = arith.addf %856, %866 : vector<2x32xf32>
    %c3_237 = arith.constant 3 : index
    %c0_238 = arith.constant 0 : index
    %c0_239 = arith.constant 0 : index
    %868 = vector.load %arg13[%c3_237, %c0_238, %c0_239] : memref<8x2x32xf32, #tpu.memory_space<vmem>>, vector<1x2x32xf32>
    %869 = vector.shape_cast %868 : vector<1x2x32xf32> to vector<2x32xf32>
    %870 = vector.broadcast %862 : vector<2x1xf32> to vector<2x32xf32>
    %871 = arith.mulf %870, %869 : vector<2x32xf32>
    %872 = arith.addf %861, %871 : vector<2x32xf32>
    %873 = arith.mulf %812, %826 : vector<2x1xf32>
    %c4_240 = arith.constant 4 : index
    %c0_241 = arith.constant 0 : index
    %c0_242 = arith.constant 0 : index
    %874 = vector.load %arg12[%c4_240, %c0_241, %c0_242] : memref<8x2x32xf32, #tpu.memory_space<vmem>>, vector<1x2x32xf32>
    %875 = vector.shape_cast %874 : vector<1x2x32xf32> to vector<2x32xf32>
    %876 = vector.broadcast %873 : vector<2x1xf32> to vector<2x32xf32>
    %877 = arith.mulf %876, %875 : vector<2x32xf32>
    %878 = arith.addf %867, %877 : vector<2x32xf32>
    %c4_243 = arith.constant 4 : index
    %c0_244 = arith.constant 0 : index
    %c0_245 = arith.constant 0 : index
    %879 = vector.load %arg13[%c4_243, %c0_244, %c0_245] : memref<8x2x32xf32, #tpu.memory_space<vmem>>, vector<1x2x32xf32>
    %880 = vector.shape_cast %879 : vector<1x2x32xf32> to vector<2x32xf32>
    %881 = vector.broadcast %873 : vector<2x1xf32> to vector<2x32xf32>
    %882 = arith.mulf %881, %880 : vector<2x32xf32>
    %883 = arith.addf %872, %882 : vector<2x32xf32>
    %884 = arith.mulf %814, %826 : vector<2x1xf32>
    %c5_246 = arith.constant 5 : index
    %c0_247 = arith.constant 0 : index
    %c0_248 = arith.constant 0 : index
    %885 = vector.load %arg12[%c5_246, %c0_247, %c0_248] : memref<8x2x32xf32, #tpu.memory_space<vmem>>, vector<1x2x32xf32>
    %886 = vector.shape_cast %885 : vector<1x2x32xf32> to vector<2x32xf32>
    %887 = vector.broadcast %884 : vector<2x1xf32> to vector<2x32xf32>
    %888 = arith.mulf %887, %886 : vector<2x32xf32>
    %889 = arith.addf %878, %888 : vector<2x32xf32>
    %c5_249 = arith.constant 5 : index
    %c0_250 = arith.constant 0 : index
    %c0_251 = arith.constant 0 : index
    %890 = vector.load %arg13[%c5_249, %c0_250, %c0_251] : memref<8x2x32xf32, #tpu.memory_space<vmem>>, vector<1x2x32xf32>
    %891 = vector.shape_cast %890 : vector<1x2x32xf32> to vector<2x32xf32>
    %892 = vector.broadcast %884 : vector<2x1xf32> to vector<2x32xf32>
    %893 = arith.mulf %892, %891 : vector<2x32xf32>
    %894 = arith.addf %883, %893 : vector<2x32xf32>
    %895 = arith.mulf %816, %826 : vector<2x1xf32>
    %c6_252 = arith.constant 6 : index
    %c0_253 = arith.constant 0 : index
    %c0_254 = arith.constant 0 : index
    %896 = vector.load %arg12[%c6_252, %c0_253, %c0_254] : memref<8x2x32xf32, #tpu.memory_space<vmem>>, vector<1x2x32xf32>
    %897 = vector.shape_cast %896 : vector<1x2x32xf32> to vector<2x32xf32>
    %898 = vector.broadcast %895 : vector<2x1xf32> to vector<2x32xf32>
    %899 = arith.mulf %898, %897 : vector<2x32xf32>
    %900 = arith.addf %889, %899 : vector<2x32xf32>
    %c6_255 = arith.constant 6 : index
    %c0_256 = arith.constant 0 : index
    %c0_257 = arith.constant 0 : index
    %901 = vector.load %arg13[%c6_255, %c0_256, %c0_257] : memref<8x2x32xf32, #tpu.memory_space<vmem>>, vector<1x2x32xf32>
    %902 = vector.shape_cast %901 : vector<1x2x32xf32> to vector<2x32xf32>
    %903 = vector.broadcast %895 : vector<2x1xf32> to vector<2x32xf32>
    %904 = arith.mulf %903, %902 : vector<2x32xf32>
    %905 = arith.addf %894, %904 : vector<2x32xf32>
    %906 = arith.mulf %818, %826 : vector<2x1xf32>
    %c7_258 = arith.constant 7 : index
    %c0_259 = arith.constant 0 : index
    %c0_260 = arith.constant 0 : index
    %907 = vector.load %arg12[%c7_258, %c0_259, %c0_260] : memref<8x2x32xf32, #tpu.memory_space<vmem>>, vector<1x2x32xf32>
    %908 = vector.shape_cast %907 : vector<1x2x32xf32> to vector<2x32xf32>
    %909 = vector.broadcast %906 : vector<2x1xf32> to vector<2x32xf32>
    %910 = arith.mulf %909, %908 : vector<2x32xf32>
    %911 = arith.addf %900, %910 : vector<2x32xf32>
    %c7_261 = arith.constant 7 : index
    %c0_262 = arith.constant 0 : index
    %c0_263 = arith.constant 0 : index
    %912 = vector.load %arg13[%c7_261, %c0_262, %c0_263] : memref<8x2x32xf32, #tpu.memory_space<vmem>>, vector<1x2x32xf32>
    %913 = vector.shape_cast %912 : vector<1x2x32xf32> to vector<2x32xf32>
    %914 = vector.broadcast %906 : vector<2x1xf32> to vector<2x32xf32>
    %915 = arith.mulf %914, %913 : vector<2x32xf32>
    %916 = arith.addf %905, %915 : vector<2x32xf32>
    %c0_264 = arith.constant 0 : index
    %c0_265 = arith.constant 0 : index
    %917 = vector.load %arg11[%c0_264, %c0_265] : memref<2x64xf32, #tpu.memory_space<vmem>>, vector<2x32xf32>
    tpu.vector_store %arg11[%c0_264, %c0_265], %911 {strides = array<i32>} : memref<2x64xf32, #tpu.memory_space<vmem>>, vector<2x32xf32>,
    %c0_266 = arith.constant 0 : index
    %c32 = arith.constant 32 : index
    %918 = vector.load %arg11[%c0_266, %c32] : memref<2x64xf32, #tpu.memory_space<vmem>>, vector<2x32xf32>
    tpu.vector_store %arg11[%c0_266, %c32], %916 {strides = array<i32>} : memref<2x64xf32, #tpu.memory_space<vmem>>, vector<2x32xf32>,
    return
  }
  func.func @transform_0(%arg0: i32) -> (i32, i32, i32) {
    %c0_i32 = arith.constant 0 : i32
    %c0_i32_0 = arith.constant 0 : i32
    %c0_i32_1 = arith.constant 0 : i32
    return %c0_i32, %arg0, %c0_i32_0 : i32, i32, i32
  }
  func.func @transform_1(%arg0: i32) -> (i32, i32) {
    %c0_i32 = arith.constant 0 : i32
    %c0_i32_0 = arith.constant 0 : i32
    return %arg0, %c0_i32 : i32, i32
  }
  func.func @transform_2(%arg0: i32) -> (i32, i32) {
    %c0_i32 = arith.constant 0 : i32
    %c0_i32_0 = arith.constant 0 : i32
    %c0_i32_1 = arith.constant 0 : i32
    return %c0_i32, %c0_i32_0 : i32, i32
  }
  func.func @transform_3(%arg0: i32) -> (i32, i32) {
    %c0_i32 = arith.constant 0 : i32
    %c0_i32_0 = arith.constant 0 : i32
    %c0_i32_1 = arith.constant 0 : i32
    return %c0_i32, %c0_i32_0 : i32, i32
  }
  func.func @transform_4(%arg0: i32) -> (i32, i32) {
    %c0_i32 = arith.constant 0 : i32
    %c0_i32_0 = arith.constant 0 : i32
    %c0_i32_1 = arith.constant 0 : i32
    return %c0_i32, %c0_i32_0 : i32, i32
  }
  func.func @transform_5(%arg0: i32) -> (i32, i32) {
    %c0_i32 = arith.constant 0 : i32
    %c0_i32_0 = arith.constant 0 : i32
    %c0_i32_1 = arith.constant 0 : i32
    return %c0_i32, %c0_i32_0 : i32, i32
  }
  func.func @transform_6(%arg0: i32) -> (i32, i32) {
    %c0_i32 = arith.constant 0 : i32
    %c0_i32_0 = arith.constant 0 : i32
    %c0_i32_1 = arith.constant 0 : i32
    return %c0_i32, %c0_i32_0 : i32, i32
  }
  func.func @transform_7(%arg0: i32) -> (i32, i32) {
    %c0_i32 = arith.constant 0 : i32
    %c0_i32_0 = arith.constant 0 : i32
    %c0_i32_1 = arith.constant 0 : i32
    return %c0_i32, %c0_i32_0 : i32, i32
  }
  func.func @transform_8(%arg0: i32) -> (i32, i32) {
    %c0_i32 = arith.constant 0 : i32
    %c0_i32_0 = arith.constant 0 : i32
    %c0_i32_1 = arith.constant 0 : i32
    return %c0_i32, %c0_i32_0 : i32, i32
  }
  func.func @transform_9(%arg0: i32) -> (i32, i32) {
    %c0_i32 = arith.constant 0 : i32
    %c0_i32_0 = arith.constant 0 : i32
    %c0_i32_1 = arith.constant 0 : i32
    return %c0_i32, %c0_i32_0 : i32, i32
  }
  func.func @transform_10(%arg0: i32) -> (i32, i32) {
    %c0_i32 = arith.constant 0 : i32
    %c0_i32_0 = arith.constant 0 : i32
    return %arg0, %c0_i32 : i32, i32
  }
}

</mosaic_0001>

<llo_original>
// kernel: tpu_custom_call.1
$region0: #{tpu_custom_call.1}
  #allocation0 [shape = 'u32[]', space=smem, size = 0x4, offset = 0x4, fixed_abs, tag = 'smem constant byte address 0x4 - core index']
  #allocation1 [shape = 'u32[144,128]{1,0:T(1,128)}', space=vmem, size = 0x12000, scoped, tag = 'internal scratch']
  #allocation2 [shape = 'f32[8,2,32]{2,1,0:T(2,128)}', space=vmem, size = 0x2000, scoped, tag = 'scratch operand']
  #allocation3 [shape = 'f32[8,2,32]{2,1,0:T(2,128)}', space=vmem, size = 0x2000, scoped, tag = 'scratch operand']
  %s0 = inlined_call_operand.hbm [shape: bf16[8,2,32], index: 0, kind: input, shape index: {}]
  %s1 = inlined_call_operand.vmem [shape: s32[2,1], index: 1, kind: input, shape index: {}]
  %s2 = inlined_call_operand.hbm [shape: bf16[32,256], index: 2, kind: input, shape index: {}]
  %s3 = inlined_call_operand.vmem [shape: f32[1,256], index: 3, kind: input, shape index: {}]
  %s4 = inlined_call_operand.vmem [shape: bf16[32,128], index: 4, kind: input, shape index: {}]
  %s5 = inlined_call_operand.hbm [shape: bf16[32,128], index: 5, kind: input, shape index: {}]
  %s6 = inlined_call_operand.hbm [shape: bf16[32,64], index: 6, kind: input, shape index: {}]
  %s7 = inlined_call_operand.hbm [shape: bf16[32,64], index: 7, kind: input, shape index: {}]
  %s8 = inlined_call_operand.vmem [shape: f32[1,64], index: 8, kind: input, shape index: {}]
  %s9 = inlined_call_operand.vmem [shape: f32[1,64], index: 9, kind: input, shape index: {}]
  %s10 = inlined_call_operand.hbm [shape: f32[2,64], index: 10, kind: output, shape index: {}]
  %s11 = sld [smem:[#allocation0]]
  $region70: #{tpu_custom_call.1} parent=0
    _
  %s13 = ssub.s32 1, %s11
  %s14 = scalar_select 0, %s13, %s11
  $region1: #{tpu_custom_call.1} parent=0
    #allocation4 [shape = 'u8[4096]{0}', space=vmem, size = 0x1000, scoped, tag = 'input window, operand 0, single buffered']
    #allocation5 [shape = 's32[1]{0}', space=sflag, size = 0x4, scoped, tag = 'scoped memory for tpu_custom_call.1']
    #allocation6 [shape = 's32[1]{0}', space=sflag, size = 0x4, scoped, tag = 'scoped memory for tpu_custom_call.1']
    #allocation7 [shape = 'u8[16384]{0}', space=vmem, size = 0x4000, scoped, tag = 'input window, operand 2, single buffered']
    #allocation8 [shape = 's32[1]{0}', space=sflag, size = 0x4, scoped, tag = 'scoped memory for tpu_custom_call.1']
    #allocation9 [shape = 'u8[8192]{0}', space=vmem, size = 0x2000, scoped, tag = 'input window, operand 5, single buffered']
    #allocation10 [shape = 'u8[8192]{0}', space=vmem, size = 0x2000, scoped, tag = 'input window, operand 6, single buffered']
    #allocation11 [shape = 's32[1]{0}', space=sflag, size = 0x4, scoped, tag = 'scoped memory for tpu_custom_call.1']
    #allocation12 [shape = 'u8[8192]{0}', space=vmem, size = 0x2000, scoped, tag = 'input window, operand 7, single buffered']
    #allocation13 [shape = 'u8[1024]{0}', space=vmem, size = 0x400, scoped, tag = 'output window, operand 0, single buffered']
    %15 = vsyncpa [#allocation5], 0
    %16 = vsyncpa [#allocation8], 0
    %17 = vsyncpa [#allocation11], 0
    %18 = vsyncpa [#allocation6], 0
    // Predicated region
    $region2: #{tpu_custom_call.1} parent=1 // pred_check
      _
    $region3: #{tpu_custom_call.1} parent=1 // pred_check_branch
      %20 = sbr.rel (0) target = $region5
    $region4: #{tpu_custom_call.1} parent=1 // pred_region
      %s22 = ssub.s32 128, 128
      %23 = vsyncadd [#allocation5], %s22
      %s24 = sshll.u32 [#allocation4], 4
      %s25 = int_to_ptr.vmem [resolvable:$true] %s24
      %30 = dma.hbm_to_vmem [thread:$0]  %s0, 128, %s25, [#allocation5], 16, 16, 1
    $region5: #{tpu_custom_call.1} parent=1 // pred_fallthru
      _
    // Predicated region
    $region6: #{tpu_custom_call.1} parent=1 // pred_check
      _
    $region7: #{tpu_custom_call.1} parent=1 // pred_check_branch
      %32 = sbr.rel (0) target = $region9
    $region8: #{tpu_custom_call.1} parent=1 // pred_region
      _
    $region9: #{tpu_custom_call.1} parent=1 // pred_fallthru
      _
    // Predicated region
    $region10: #{tpu_custom_call.1} parent=1 // pred_check
      _
    $region11: #{tpu_custom_call.1} parent=1 // pred_check_branch
      %34 = sbr.rel (0) target = $region13
    $region12: #{tpu_custom_call.1} parent=1 // pred_region
      %s36 = ssub.s32 512, 512
      %37 = vsyncadd [#allocation8], %s36
      %s38 = sshll.u32 [#allocation7], 4
      %s39 = int_to_ptr.vmem [resolvable:$true] %s38
      %44 = dma.hbm_to_vmem [thread:$0]  %s2, 512, %s39, [#allocation8], 128, 128, 8
    $region13: #{tpu_custom_call.1} parent=1 // pred_fallthru
      _
    // Predicated region
    $region14: #{tpu_custom_call.1} parent=1 // pred_check
      _
    $region15: #{tpu_custom_call.1} parent=1 // pred_check_branch
      %46 = sbr.rel (0) target = $region17
    $region16: #{tpu_custom_call.1} parent=1 // pred_region
      _
    $region17: #{tpu_custom_call.1} parent=1 // pred_fallthru
      _
    // Predicated region
    $region18: #{tpu_custom_call.1} parent=1 // pred_check
      _
    $region19: #{tpu_custom_call.1} parent=1 // pred_check_branch
      %48 = sbr.rel (0) target = $region21
    $region20: #{tpu_custom_call.1} parent=1 // pred_region
      _
    $region21: #{tpu_custom_call.1} parent=1 // pred_fallthru
      _
    // Predicated region
    $region22: #{tpu_custom_call.1} parent=1 // pred_check
      _
    $region23: #{tpu_custom_call.1} parent=1 // pred_check_branch
      %50 = sbr.rel (0) target = $region25
    $region24: #{tpu_custom_call.1} parent=1 // pred_region
      %s52 = ssub.s32 256, 256
      %53 = vsyncadd [#allocation8], %s52
      %s54 = sshll.u32 [#allocation9], 4
      %s55 = int_to_ptr.vmem [resolvable:$true] %s54
      %60 = dma.hbm_to_vmem [thread:$0]  %s5, 256, %s55, [#allocation8], 64, 64, 4
    $region25: #{tpu_custom_call.1} parent=1 // pred_fallthru
      _
    // Predicated region
    $region26: #{tpu_custom_call.1} parent=1 // pred_check
      _
    $region27: #{tpu_custom_call.1} parent=1 // pred_check_branch
      %62 = sbr.rel (0) target = $region29
    $region28: #{tpu_custom_call.1} parent=1 // pred_region
      %s64 = ssub.s32 256, 256
      %65 = vsyncadd [#allocation11], %s64
      %s66 = sshll.u32 [#allocation10], 4
      %s67 = int_to_ptr.vmem [resolvable:$true] %s66
      %72 = dma.hbm_to_vmem [thread:$0]  %s6, 256, %s67, [#allocation11], 64, 64, 4
    $region29: #{tpu_custom_call.1} parent=1 // pred_fallthru
      _
    // Predicated region
    $region30: #{tpu_custom_call.1} parent=1 // pred_check
      _
    $region31: #{tpu_custom_call.1} parent=1 // pred_check_branch
      %74 = sbr.rel (0) target = $region33
    $region32: #{tpu_custom_call.1} parent=1 // pred_region
      %s76 = ssub.s32 256, 256
      %77 = vsyncadd [#allocation11], %s76
      %s78 = sshll.u32 [#allocation12], 4
      %s79 = int_to_ptr.vmem [resolvable:$true] %s78
      %84 = dma.hbm_to_vmem [thread:$0]  %s7, 256, %s79, [#allocation11], 64, 64, 4
    $region33: #{tpu_custom_call.1} parent=1 // pred_fallthru
      _
    // Predicated region
    $region34: #{tpu_custom_call.1} parent=1 // pred_check
      _
    $region35: #{tpu_custom_call.1} parent=1 // pred_check_branch
      %86 = sbr.rel (0) target = $region37
    $region36: #{tpu_custom_call.1} parent=1 // pred_region
      _
    $region37: #{tpu_custom_call.1} parent=1 // pred_fallthru
      _
    // Predicated region
    $region38: #{tpu_custom_call.1} parent=1 // pred_check
      _
    $region39: #{tpu_custom_call.1} parent=1 // pred_check_branch
      %88 = sbr.rel (0) target = $region41
    $region40: #{tpu_custom_call.1} parent=1 // pred_region
      _
    $region41: #{tpu_custom_call.1} parent=1 // pred_fallthru
      _
    // Predicated region
    $region42: #{tpu_custom_call.1} parent=1 // pred_check
      _
    $region43: #{tpu_custom_call.1} parent=1 // pred_check_branch
      %90 = sbr.rel (0) target = $region45
    $region44: #{tpu_custom_call.1} parent=1 // pred_region
      %91 = dma.done [#allocation5], 128
    $region45: #{tpu_custom_call.1} parent=1 // pred_fallthru
      _
    // Predicated region
    $region46: #{tpu_custom_call.1} parent=1 // pred_check
      _
    $region47: #{tpu_custom_call.1} parent=1 // pred_check_branch
      %93 = sbr.rel (0) target = $region49
    $region48: #{tpu_custom_call.1} parent=1 // pred_region
      %94 = dma.done [#allocation8], 512
    $region49: #{tpu_custom_call.1} parent=1 // pred_fallthru
      _
    // Predicated region
    $region50: #{tpu_custom_call.1} parent=1 // pred_check
      _
    $region51: #{tpu_custom_call.1} parent=1 // pred_check_branch
      %96 = sbr.rel (0) target = $region53
    $region52: #{tpu_custom_call.1} parent=1 // pred_region
      %97 = dma.done [#allocation8], 256
    $region53: #{tpu_custom_call.1} parent=1 // pred_fallthru
      _
    // Predicated region
    $region54: #{tpu_custom_call.1} parent=1 // pred_check
      _
    $region55: #{tpu_custom_call.1} parent=1 // pred_check_branch
      %99 = sbr.rel (0) target = $region57
    $region56: #{tpu_custom_call.1} parent=1 // pred_region
      %100 = dma.done [#allocation11], 256
    $region57: #{tpu_custom_call.1} parent=1 // pred_fallthru
      _
    // Predicated region
    $region58: #{tpu_custom_call.1} parent=1 // pred_check
      _
    $region59: #{tpu_custom_call.1} parent=1 // pred_check_branch
      %102 = sbr.rel (0) target = $region61
    $region60: #{tpu_custom_call.1} parent=1 // pred_region
      %103 = dma.done [#allocation11], 256
    $region61: #{tpu_custom_call.1} parent=1 // pred_fallthru
      _
    %v105 = vld [vmem:[%s1] sm:$0x3]
    %v106 = vld [vmem:[#allocation4] sm:$0x1]
    %s107 = scalar_lea.vmem [#allocation4], 1
    %v108 = vld [vmem:[%s107] sm:$0x1]
    %s109 = scalar_lea.vmem [#allocation4], 2
    %v110 = vld [vmem:[%s109] sm:$0x1]
    %s111 = scalar_lea.vmem [#allocation4], 3
    %v112 = vld [vmem:[%s111] sm:$0x1]
    %s113 = scalar_lea.vmem [#allocation4], 4
    %v114 = vld [vmem:[%s113] sm:$0x1]
    %s115 = scalar_lea.vmem [#allocation4], 5
    %v116 = vld [vmem:[%s115] sm:$0x1]
    %s117 = scalar_lea.vmem [#allocation4], 6
    %v118 = vld [vmem:[%s117] sm:$0x1]
    %s119 = scalar_lea.vmem [#allocation4], 7
    %v120 = vld [vmem:[%s119] sm:$0x1]
    %v122 = vcombine.low %v108, %v108
    %v124 = vunpack.c.l.s4 1966171168
    %v125 = vunpack.c.0.s8 %v124
    %v126 = vlaneseq
    %v127 = vshrl.u32 %v126, 7
    %v128 = vsub.s32 %v125, %v127
    %v129 = vrot.slane %v122, %v128
    %v131 = vunpack.c.l.s4 1966171168
    %v132 = vunpack.c.0.s8 %v131
    %v133 = vlaneseq
    %v134 = vshrl.u32 %v133, 7
    %v135 = vsub.s32 %v132, %v134
    %v136 = vrot.slane %v129, %v135
    %v139 = vunpack.c.l.s4 1966171168
    %v140 = vunpack.c.0.s8 %v139
    %v141 = vlaneseq
    %v142 = vshrl.u32 %v141, 7
    %v143 = vsub.s32 %v140, %v142
    %v144 = vrot.slane %v110, %v143
    %v145 = vcombine.low %v144, %v144
    %v147 = vunpack.c.l.s4 1966171168
    %v148 = vunpack.c.0.s8 %v147
    %v149 = vlaneseq
    %v150 = vshrl.u32 %v149, 7
    %v151 = vsub.s32 %v148, %v150
    %v152 = vrot.slane %v145, %v151
    %v154 = vcombine.low %v112, %v112
    %v156 = vunpack.c.l.s4 1966171168
    %v157 = vunpack.c.0.s8 %v156
    %v158 = vlaneseq
    %v159 = vshrl.u32 %v158, 7
    %v160 = vsub.s32 %v157, %v159
    %v161 = vrot.slane %v154, %v160
    %v162 = vcombine.low %v161, %v161
    %v164 = vunpack.c.l.s4 1966171168
    %v165 = vunpack.c.0.s8 %v164
    %v166 = vlaneseq
    %v167 = vshrl.u32 %v166, 7
    %v168 = vsub.s32 %v165, %v167
    %v169 = vrot.slane %v162, %v168
    %v172 = vunpack.c.l.s4 1966171168
    %v173 = vunpack.c.0.s8 %v172
    %v174 = vlaneseq
    %v175 = vshrl.u32 %v174, 7
    %v176 = vsub.s32 %v173, %v175
    %v177 = vrot.slane %v114, %v176
    %v179 = vunpack.c.l.s4 1966171168
    %v180 = vunpack.c.0.s8 %v179
    %v181 = vlaneseq
    %v182 = vshrl.u32 %v181, 7
    %v183 = vsub.s32 %v180, %v182
    %v184 = vrot.slane %v177, %v183
    %v185 = vcombine.low %v184, %v184
    %v187 = vcombine.low %v116, %v116
    %v189 = vunpack.c.l.s4 1966171168
    %v190 = vunpack.c.0.s8 %v189
    %v191 = vlaneseq
    %v192 = vshrl.u32 %v191, 7
    %v193 = vsub.s32 %v190, %v192
    %v194 = vrot.slane %v187, %v193
    %v196 = vunpack.c.l.s4 1966171168
    %v197 = vunpack.c.0.s8 %v196
    %v198 = vlaneseq
    %v199 = vshrl.u32 %v198, 7
    %v200 = vsub.s32 %v197, %v199
    %v201 = vrot.slane %v194, %v200
    %v202 = vcombine.low %v201, %v201
    %v205 = vunpack.c.l.s4 1966171168
    %v206 = vunpack.c.0.s8 %v205
    %v207 = vlaneseq
    %v208 = vshrl.u32 %v207, 7
    %v209 = vsub.s32 %v206, %v208
    %v210 = vrot.slane %v118, %v209
    %v211 = vcombine.low %v210, %v210
    %v213 = vunpack.c.l.s4 1966171168
    %v214 = vunpack.c.0.s8 %v213
    %v215 = vlaneseq
    %v216 = vshrl.u32 %v215, 7
    %v217 = vsub.s32 %v214, %v216
    %v218 = vrot.slane %v211, %v217
    %v219 = vcombine.low %v218, %v218
    %v221 = vcombine.low %v120, %v120
    %v223 = vunpack.c.l.s4 1966171168
    %v224 = vunpack.c.0.s8 %v223
    %v225 = vlaneseq
    %v226 = vshrl.u32 %v225, 7
    %v227 = vsub.s32 %v224, %v226
    %v228 = vrot.slane %v221, %v227
    %v229 = vcombine.low %v228, %v228
    %v231 = vunpack.c.l.s4 1966171168
    %v232 = vunpack.c.0.s8 %v231
    %v233 = vlaneseq
    %v234 = vshrl.u32 %v233, 7
    %v235 = vsub.s32 %v232, %v234
    %v236 = vrot.slane %v229, %v235
    %v237 = vcombine.low %v236, %v236
    %vm238 = vcmask 1040384
    %v241 = vsel %vm238, %v106, %v136
    %vm242 = vcmask 1041408
    %v244 = vsel %vm242, %v241, %v152
    %vm245 = vcmask 1042432
    %v247 = vsel %vm245, %v244, %v169
    %vm248 = vcmask 1043456
    %v250 = vsel %vm248, %v247, %v185
    %vm251 = vcmask 1044480
    %v253 = vsel %vm251, %v250, %v202
    %vm254 = vcmask 1045504
    %v256 = vsel %vm254, %v253, %v219
    %vm257 = vcmask 1046528
    %v259 = vsel %vm257, %v256, %v237
    %v260 = vld [vmem:[#allocation7] sm:$0xff]
    %v261 = vld [vmem:[#allocation7 + $0x8] sm:$0xff]
    %v262 = vld [vmem:[#allocation7 + $0x10] sm:$0xff]
    %v263 = vld [vmem:[#allocation7 + $0x18] sm:$0xff]
    %v264 = vld [vmem:[%s3] sm:$0x3]
    %v266 = vlaneseq
    %v267 = vshrl.u32 %v266, 7
    %v268 = vsub.s32 0, %v267
    %v269 = vrot.slane %v264, %v268
    %v270 = vlaneseq
    %v271 = vshrl.u32 %v270, 7
    %v272 = vsub.s32 1, %v271
    %v273 = vrot.slane %v264, %v272
    %v280 = vunpack.c.l.b16 %v260
    %v281 = vunpack.c.h.b16 %v260
    %v282 = vunpack.c.l.b16 %v261
    %v283 = vunpack.c.h.b16 %v261
    %v284 = vunpack.c.l.b16 %v262
    %v285 = vunpack.c.h.b16 %v262
    %v286 = vunpack.c.l.b16 %v263
    %v287 = vunpack.c.h.b16 %v263
    %v288 = vpack.c.b16 %v282, %v280
    %v289 = vpack.c.b16 %v283, %v281
    %v290 = vpack.c.b16 %v286, %v284
    %v291 = vpack.c.b16 %v287, %v285
    %vm296 = vcmask 261120
    %v297 = vsel %vm296, %v259, 0
    %299 = vmatprep.subr.bf16.mxu0 %v289
    %300 = vmatpush1.bf16.msra.mxu0 %v288
    %301 = vmatprep.subr.bf16.mxu0 %v291
    %302 = vmatpush1.bf16.msra.mxu0 %v290
    %303 = vmatprep.subr.bf16.mxu0 0
    %304 = vmatpush1.bf16.msra.mxu0 0
    %305 = vmatprep.subr.bf16.mxu0 0
    %306 = vmatpush1.bf16.msra.mxu0 0
    %307 = vmatprep.subr.bf16.mxu0 0
    %308 = vmatpush1.bf16.msra.mxu0 0
    %309 = vmatprep.subr.bf16.mxu0 0
    %310 = vmatpush1.bf16.msra.mxu0 0
    %311 = vmatprep.subr.bf16.mxu0 0
    %312 = vmatpush1.bf16.msra.mxu0 0
    %313 = vmatprep.subr.bf16.mxu0 0
    %314 = vmatpush1.bf16.msra.mxu0 0
    %315 = vmatprep.subr.bf16.mxu0 0
    %316 = vmatpush1.bf16.msra.mxu0 0
    %317 = vmatprep.subr.bf16.mxu0 0
    %318 = vmatpush1.bf16.msra.mxu0 0
    %319 = vmatprep.subr.bf16.mxu0 0
    %320 = vmatpush1.bf16.msra.mxu0 0
    %321 = vmatprep.subr.bf16.mxu0 0
    %322 = vmatpush1.bf16.msra.mxu0 0
    %323 = vmatprep.subr.bf16.mxu0 0
    %324 = vmatpush1.bf16.msra.mxu0 0
    %325 = vmatprep.subr.bf16.mxu0 0
    %326 = vmatpush1.bf16.msra.mxu0 0
    %327 = vmatprep.subr.bf16.mxu0 0
    %328 = vmatpush1.bf16.msra.mxu0 0
    %329 = vmatprep.subr.bf16.mxu0 0
    %330 = vmatpush1.bf16.msra.mxu0 0
    %331 = vmatprep.mubr.bf16.mxu0 0
    %332 = vmatmul.mubr.bf16.gmra.mrb[0].mxu0 %v297
    %v333 = vpop.f32.mrb[0].mxu0
    %v334 = vadd.f32 %v269, %v333
    %v335 = vpop.f32.mrb[0].mxu0
    %v336 = vadd.f32 %v273, %v335
    %v337 = vpop.f32.mrb[0].mxu0
    %v338 = vadd.f32 %v269, %v337
    %v339 = vpop.f32.mrb[0].mxu0
    %v340 = vadd.f32 %v273, %v339
    %341 = vdwg.mxu0
    %342 = vset.pattern.permute.xlu0 0
    %343 = vperm.xlu0 %342, %v105
    %v344 = vpop.permute.xlu0 %343
    %vm345 = vcmp.gt.s32.totalorder %v344, 0
    %vm346 = vcmp.gt.s32.totalorder %v344, 1
    %vm347 = vcmp.gt.s32.totalorder %v344, 2
    %vm348 = vcmp.gt.s32.totalorder %v344, 3
    %vm349 = vcmp.gt.s32.totalorder %v344, 4
    %vm350 = vcmp.gt.s32.totalorder %v344, 5
    %vm351 = vcmp.gt.s32.totalorder %v344, 6
    %vm352 = vcmp.gt.s32.totalorder %v344, 7
    %v353 = vsel %vm345, 1, 0
    %v354 = vsel %vm346, 1, 0
    %v355 = vsel %vm347, 1, 0
    %v356 = vsel %vm348, 1, 0
    %v357 = vsel %vm349, 1, 0
    %v358 = vsel %vm350, 1, 0
    %v359 = vsel %vm351, 1, 0
    %v360 = vsel %vm352, 1, 0
    %v361 = vcvt.s32.f32 %v353
    %v362 = vcvt.s32.f32 %v354
    %v363 = vcvt.s32.f32 %v355
    %v364 = vcvt.s32.f32 %v356
    %v365 = vcvt.s32.f32 %v357
    %v366 = vcvt.s32.f32 %v358
    %v367 = vcvt.s32.f32 %v359
    %v368 = vcvt.s32.f32 %v360
    %v369 = vld [vmem:[%s4] sm:$0xf]
    %v370 = vld [vmem:[%s4 + $0x4] sm:$0xf]
    %v371 = vld [vmem:[%s4 + $0x8] sm:$0xf]
    %v372 = vld [vmem:[%s4 + $0xc] sm:$0xf]
    %v373 = vld [vmem:[#allocation9] sm:$0xf]
    %v374 = vld [vmem:[#allocation9 + $0x4] sm:$0xf]
    %v375 = vld [vmem:[#allocation9 + $0x8] sm:$0xf]
    %v376 = vld [vmem:[#allocation9 + $0xc] sm:$0xf]
    %v381 = vunpack.c.l.b16 %v369
    %v382 = vunpack.c.l.b16 %v370
    %v383 = vunpack.c.l.b16 %v371
    %v384 = vunpack.c.l.b16 %v372
    %v385 = vpack.c.b16 %v382, %v381
    %v386 = vpack.c.b16 %v384, %v383
    %v390 = vsel %vm296, 0, 0
    %392 = vmatprep.subr.bf16.mxu0 0
    %393 = vmatpush1.bf16.msra.mxu0 %v385
    %394 = vmatprep.subr.bf16.mxu0 0
    %395 = vmatpush1.bf16.msra.mxu0 %v386
    %396 = vmatprep.subr.bf16.mxu0 0
    %397 = vmatpush1.bf16.msra.mxu0 0
    %398 = vmatprep.subr.bf16.mxu0 0
    %399 = vmatpush1.bf16.msra.mxu0 0
    %400 = vmatprep.subr.bf16.mxu0 0
    %401 = vmatpush1.bf16.msra.mxu0 0
    %402 = vmatprep.subr.bf16.mxu0 0
    %403 = vmatpush1.bf16.msra.mxu0 0
    %404 = vmatprep.subr.bf16.mxu0 0
    %405 = vmatpush1.bf16.msra.mxu0 0
    %406 = vmatprep.subr.bf16.mxu0 0
    %407 = vmatpush1.bf16.msra.mxu0 0
    %408 = vmatprep.subr.bf16.mxu0 0
    %409 = vmatpush1.bf16.msra.mxu0 0
    %410 = vmatprep.subr.bf16.mxu0 0
    %411 = vmatpush1.bf16.msra.mxu0 0
    %412 = vmatprep.subr.bf16.mxu0 0
    %413 = vmatpush1.bf16.msra.mxu0 0
    %414 = vmatprep.subr.bf16.mxu0 0
    %415 = vmatpush1.bf16.msra.mxu0 0
    %416 = vmatprep.subr.bf16.mxu0 0
    %417 = vmatpush1.bf16.msra.mxu0 0
    %418 = vmatprep.subr.bf16.mxu0 0
    %419 = vmatpush1.bf16.msra.mxu0 0
    %420 = vmatprep.subr.bf16.mxu0 0
    %421 = vmatpush1.bf16.msra.mxu0 0
    %422 = vmatprep.subr.bf16.mxu0 0
    %423 = vmatpush1.bf16.msra.mxu0 0
    %424 = vmatprep.mubr.bf16.mxu0 0
    %425 = vmatmul.mubr.bf16.gmra.mrb[0].mxu0 %v390
    %v426 = vpop.f32.mrb[0].mxu0
    %v427 = vadd.f32 0.0, %v426
    %v428 = vpop.f32.mrb[0].mxu0
    %v429 = vpop.f32.mrb[0].mxu0
    %v430 = vpop.f32.mrb[0].mxu0
    %431 = vdwg.mxu0
    %v432 = vadd.f32 %v334, %v427
    %v437 = vunpack.c.l.b16 %v373
    %v438 = vunpack.c.l.b16 %v374
    %v439 = vunpack.c.l.b16 %v375
    %v440 = vunpack.c.l.b16 %v376
    %v441 = vpack.c.b16 %v438, %v437
    %v442 = vpack.c.b16 %v440, %v439
    %445 = vmatprep.subr.bf16.mxu0 0
    %446 = vmatpush1.bf16.msra.mxu0 %v441
    %447 = vmatprep.subr.bf16.mxu0 0
    %448 = vmatpush1.bf16.msra.mxu0 %v442
    %449 = vmatprep.subr.bf16.mxu0 0
    %450 = vmatpush1.bf16.msra.mxu0 0
    %451 = vmatprep.subr.bf16.mxu0 0
    %452 = vmatpush1.bf16.msra.mxu0 0
    %453 = vmatprep.subr.bf16.mxu0 0
    %454 = vmatpush1.bf16.msra.mxu0 0
    %455 = vmatprep.subr.bf16.mxu0 0
    %456 = vmatpush1.bf16.msra.mxu0 0
    %457 = vmatprep.subr.bf16.mxu0 0
    %458 = vmatpush1.bf16.msra.mxu0 0
    %459 = vmatprep.subr.bf16.mxu0 0
    %460 = vmatpush1.bf16.msra.mxu0 0
    %461 = vmatprep.subr.bf16.mxu0 0
    %462 = vmatpush1.bf16.msra.mxu0 0
    %463 = vmatprep.subr.bf16.mxu0 0
    %464 = vmatpush1.bf16.msra.mxu0 0
    %465 = vmatprep.subr.bf16.mxu0 0
    %466 = vmatpush1.bf16.msra.mxu0 0
    %467 = vmatprep.subr.bf16.mxu0 0
    %468 = vmatpush1.bf16.msra.mxu0 0
    %469 = vmatprep.subr.bf16.mxu0 0
    %470 = vmatpush1.bf16.msra.mxu0 0
    %471 = vmatprep.subr.bf16.mxu0 0
    %472 = vmatpush1.bf16.msra.mxu0 0
    %473 = vmatprep.subr.bf16.mxu0 0
    %474 = vmatpush1.bf16.msra.mxu0 0
    %475 = vmatprep.subr.bf16.mxu0 0
    %476 = vmatpush1.bf16.msra.mxu0 0
    %477 = vmatprep.mubr.bf16.mxu0 0
    %478 = vmatmul.mubr.bf16.gmra.mrb[0].mxu0 %v390
    %v479 = vpop.f32.mrb[0].mxu0
    %v480 = vadd.f32 0.0, %v479
    %v481 = vpop.f32.mrb[0].mxu0
    %v482 = vpop.f32.mrb[0].mxu0
    %v483 = vpop.f32.mrb[0].mxu0
    %484 = vdwg.mxu0
    %v486 = vrot.slane %v480, 2
    %v488 = vadd.f32 %v340, %v486
    %v489 = vxor.u32 %v432, 2147483648
    %v490 = vmul.f32 %v489, 1.442695
    %v491 = vpow.pop %v490
    %v492 = vadd.f32 %v491, 1.0
    %v493 = vrcp.pop %v492
    %v494 = vmul.f32 1.0, %v493
    %v495 = vtanh.pop %v432
    %v496 = vmul.f32 %v494, 0.0
    %498 = vrot.lane.b32.xlu0 %v495, 64
    %v499 = vpop.permute.xlu0 %498
    %v501 = vmul.f32 %v494, %v499
    %503 = vrot.lane.b32.xlu0 %v501, 32
    %v504 = vpop.permute.xlu0 %503
    %v506 = vadd.f32 %v496, %v504
    %v507 = vtanh.pop %v506
    %509 = vrot.lane.b32.xlu0 %v507, 64
    %v510 = vpop.permute.xlu0 %509
    %v512 = vmul.f32 %v494, %v510
    %v513 = vxor.u32 %v488, 2147483648
    %v514 = vmul.f32 %v513, 1.442695
    %v515 = vpow.pop %v514
    %v516 = vadd.f32 %v515, 1.0
    %v517 = vrcp.pop %v516
    %v518 = vmul.f32 1.0, %v517
    %v519 = vtanh.pop %v488
    %v520 = vmul.f32 %v518, 0.0
    %522 = vrot.lane.b32.xlu0 %v519, 64
    %v523 = vpop.permute.xlu0 %522
    %v525 = vmul.f32 %v518, %v523
    %527 = vrot.lane.b32.xlu0 %v525, 32
    %v528 = vpop.permute.xlu0 %527
    %v530 = vadd.f32 %v520, %v528
    %v531 = vtanh.pop %v530
    %533 = vrot.lane.b32.xlu0 %v531, 64
    %v534 = vpop.permute.xlu0 %533
    %v536 = vmul.f32 %v518, %v534
    %v537 = vmul.f32 %v361, %v512
    %v538 = vadd.f32 %v537, 0.0
    %v539 = vmul.f32 %v361, %v506
    %v540 = vadd.f32 %v539, 0.0
    %v542 = vrot.slane %v536, 6
    %543 = vrot.lane.b32.xlu0 %v542, 32
    %v544 = vpop.permute.xlu0 %543
    %v546 = vmul.f32 %v368, %v544
    %v547 = vadd.f32 %v546, 0.0
    %v549 = vrot.slane %v530, 6
    %550 = vrot.lane.b32.xlu0 %v549, 96
    %v551 = vpop.permute.xlu0 %550
    %v553 = vmul.f32 %v368, %v551
    %v554 = vadd.f32 %v553, 0.0
    %v555 = vmul.f32 %v538, %v361
    %557 = vrot.lane.b32.xlu0 %v555, 32
    %v558 = vpop.permute.xlu0 %557
    %vm560 = vcmask 254976
    %561 = vst.msk [vmem:[#allocation2] sm:$0x3] %vm560, %v558
    %v562 = vmul.f32 %v547, %v368
    %s563 = scalar_lea.vmem [#allocation3], 14
    %564 = vst.msk [vmem:[%s563] sm:$0x3] %vm560, %v562
    %v565 = vpack.c.bf16 %v538, %v538
    %567 = vrot.lane.b32.xlu0 %v565, 32
    %v568 = vpop.permute.xlu0 %567
    %v570 = vsel %vm296, %v568, 0
    %572 = vmatprep.subr.bf16.mxu0 0
    %573 = vmatpush1.bf16.msra.mxu0 %v385
    %574 = vmatprep.subr.bf16.mxu0 0
    %575 = vmatpush1.bf16.msra.mxu0 %v386
    %576 = vmatprep.subr.bf16.mxu0 0
    %577 = vmatpush1.bf16.msra.mxu0 0
    %578 = vmatprep.subr.bf16.mxu0 0
    %579 = vmatpush1.bf16.msra.mxu0 0
    %580 = vmatprep.subr.bf16.mxu0 0
    %581 = vmatpush1.bf16.msra.mxu0 0
    %582 = vmatprep.subr.bf16.mxu0 0
    %583 = vmatpush1.bf16.msra.mxu0 0
    %584 = vmatprep.subr.bf16.mxu0 0
    %585 = vmatpush1.bf16.msra.mxu0 0
    %586 = vmatprep.subr.bf16.mxu0 0
    %587 = vmatpush1.bf16.msra.mxu0 0
    %588 = vmatprep.subr.bf16.mxu0 0
    %589 = vmatpush1.bf16.msra.mxu0 0
    %590 = vmatprep.subr.bf16.mxu0 0
    %591 = vmatpush1.bf16.msra.mxu0 0
    %592 = vmatprep.subr.bf16.mxu0 0
    %593 = vmatpush1.bf16.msra.mxu0 0
    %594 = vmatprep.subr.bf16.mxu0 0
    %595 = vmatpush1.bf16.msra.mxu0 0
    %596 = vmatprep.subr.bf16.mxu0 0
    %597 = vmatpush1.bf16.msra.mxu0 0
    %598 = vmatprep.subr.bf16.mxu0 0
    %599 = vmatpush1.bf16.msra.mxu0 0
    %600 = vmatprep.subr.bf16.mxu0 0
    %601 = vmatpush1.bf16.msra.mxu0 0
    %602 = vmatprep.subr.bf16.mxu0 0
    %603 = vmatpush1.bf16.msra.mxu0 0
    %604 = vmatprep.mubr.bf16.mxu0 0
    %605 = vmatmul.mubr.bf16.gmra.mrb[0].mxu0 %v570
    %v606 = vpop.f32.mrb[0].mxu0
    %v607 = vadd.f32 0.0, %v606
    %v608 = vpop.f32.mrb[0].mxu0
    %v609 = vpop.f32.mrb[0].mxu0
    %v610 = vpop.f32.mrb[0].mxu0
    %611 = vdwg.mxu0
    %v613 = vrot.slane %v607, 6
    %v615 = vadd.f32 %v334, %v613
    %v616 = vpack.c.bf16 %v547, %v547
    %v618 = vsel %vm296, %v616, 0
    %620 = vmatprep.subr.bf16.mxu0 0
    %621 = vmatpush1.bf16.msra.mxu0 %v441
    %622 = vmatprep.subr.bf16.mxu0 0
    %623 = vmatpush1.bf16.msra.mxu0 %v442
    %624 = vmatprep.subr.bf16.mxu0 0
    %625 = vmatpush1.bf16.msra.mxu0 0
    %626 = vmatprep.subr.bf16.mxu0 0
    %627 = vmatpush1.bf16.msra.mxu0 0
    %628 = vmatprep.subr.bf16.mxu0 0
    %629 = vmatpush1.bf16.msra.mxu0 0
    %630 = vmatprep.subr.bf16.mxu0 0
    %631 = vmatpush1.bf16.msra.mxu0 0
    %632 = vmatprep.subr.bf16.mxu0 0
    %633 = vmatpush1.bf16.msra.mxu0 0
    %634 = vmatprep.subr.bf16.mxu0 0
    %635 = vmatpush1.bf16.msra.mxu0 0
    %636 = vmatprep.subr.bf16.mxu0 0
    %637 = vmatpush1.bf16.msra.mxu0 0
    %638 = vmatprep.subr.bf16.mxu0 0
    %639 = vmatpush1.bf16.msra.mxu0 0
    %640 = vmatprep.subr.bf16.mxu0 0
    %641 = vmatpush1.bf16.msra.mxu0 0
    %642 = vmatprep.subr.bf16.mxu0 0
    %643 = vmatpush1.bf16.msra.mxu0 0
    %644 = vmatprep.subr.bf16.mxu0 0
    %645 = vmatpush1.bf16.msra.mxu0 0
    %646 = vmatprep.subr.bf16.mxu0 0
    %647 = vmatpush1.bf16.msra.mxu0 0
    %648 = vmatprep.subr.bf16.mxu0 0
    %649 = vmatpush1.bf16.msra.mxu0 0
    %650 = vmatprep.subr.bf16.mxu0 0
    %651 = vmatpush1.bf16.msra.mxu0 0
    %652 = vmatprep.mubr.bf16.mxu0 0
    %653 = vmatmul.mubr.bf16.gmra.mrb[0].mxu0 %v618
    %v654 = vpop.f32.mrb[0].mxu0
    %v655 = vadd.f32 0.0, %v654
    %v656 = vpop.f32.mrb[0].mxu0
    %v657 = vpop.f32.mrb[0].mxu0
    %v658 = vpop.f32.mrb[0].mxu0
    %659 = vdwg.mxu0
    %v661 = vrot.slane %v655, 4
    %v663 = vadd.f32 %v340, %v661
    %v664 = vxor.u32 %v615, 2147483648
    %v665 = vmul.f32 %v664, 1.442695
    %v666 = vpow.pop %v665
    %v667 = vadd.f32 %v666, 1.0
    %v668 = vrcp.pop %v667
    %v669 = vmul.f32 1.0, %v668
    %v670 = vtanh.pop %v615
    %v672 = vrot.slane %v540, 6
    %v674 = vmul.f32 %v669, %v672
    %676 = vrot.lane.b32.xlu0 %v670, 64
    %v677 = vpop.permute.xlu0 %676
    %v679 = vmul.f32 %v669, %v677
    %681 = vrot.lane.b32.xlu0 %v679, 32
    %v682 = vpop.permute.xlu0 %681
    %v684 = vadd.f32 %v674, %v682
    %v685 = vtanh.pop %v684
    %687 = vrot.lane.b32.xlu0 %v685, 64
    %v688 = vpop.permute.xlu0 %687
    %v690 = vmul.f32 %v669, %v688
    %v691 = vxor.u32 %v663, 2147483648
    %v692 = vmul.f32 %v691, 1.442695
    %v693 = vpow.pop %v692
    %v694 = vadd.f32 %v693, 1.0
    %v695 = vrcp.pop %v694
    %v696 = vmul.f32 1.0, %v695
    %v697 = vtanh.pop %v663
    %v699 = vrot.slane %v554, 4
    %700 = vrot.lane.b32.xlu0 %v699, 32
    %v701 = vpop.permute.xlu0 %700
    %v703 = vmul.f32 %v696, %v701
    %705 = vrot.lane.b32.xlu0 %v697, 64
    %v706 = vpop.permute.xlu0 %705
    %v708 = vmul.f32 %v696, %v706
    %710 = vrot.lane.b32.xlu0 %v708, 32
    %v711 = vpop.permute.xlu0 %710
    %v713 = vadd.f32 %v703, %v711
    %v714 = vtanh.pop %v713
    %716 = vrot.lane.b32.xlu0 %v714, 64
    %v717 = vpop.permute.xlu0 %716
    %v719 = vmul.f32 %v696, %v717
    %v721 = vrot.slane %v538, 6
    %v723 = vsub.f32 %v690, %v721
    %v725 = vrot.slane %v723, 2
    %726 = vrot.lane.b32.xlu0 %v725, 32
    %v727 = vpop.permute.xlu0 %726
    %v729 = vmul.f32 %v362, %v727
    %731 = vrot.lane.b32.xlu0 %v729, 96
    %v732 = vpop.permute.xlu0 %731
    %v734 = vadd.f32 %v538, %v732
    %v735 = vsub.f32 %v684, %v672
    %v737 = vrot.slane %v735, 2
    %738 = vrot.lane.b32.xlu0 %v737, 96
    %v739 = vpop.permute.xlu0 %738
    %v741 = vmul.f32 %v362, %v739
    %743 = vrot.lane.b32.xlu0 %v741, 32
    %v744 = vpop.permute.xlu0 %743
    %v746 = vadd.f32 %v540, %v744
    %v748 = vrot.slane %v547, 4
    %749 = vrot.lane.b32.xlu0 %v748, 96
    %v750 = vpop.permute.xlu0 %749
    %v752 = vsub.f32 %v719, %v750
    %v754 = vrot.slane %v752, 4
    %755 = vrot.lane.b32.xlu0 %v754, 32
    %v756 = vpop.permute.xlu0 %755
    %v758 = vmul.f32 %v367, %v756
    %v759 = vadd.f32 %v547, %v758
    %v760 = vsub.f32 %v713, %v701
    %v762 = vrot.slane %v760, 4
    %763 = vrot.lane.b32.xlu0 %v762, 96
    %v764 = vpop.permute.xlu0 %763
    %v766 = vmul.f32 %v367, %v764
    %v767 = vadd.f32 %v554, %v766
    %v768 = vmul.f32 %v734, %v362
    %770 = vrot.lane.b32.xlu0 %v768, 32
    %v771 = vpop.permute.xlu0 %770
    %s773 = scalar_lea.vmem [#allocation2], 2
    %774 = vst.msk [vmem:[%s773] sm:$0x3] %vm560, %v771
    %v775 = vmul.f32 %v759, %v367
    %s776 = scalar_lea.vmem [#allocation3], 12
    %777 = vst.msk [vmem:[%s776] sm:$0x3] %vm560, %v775
    %v778 = vpack.c.bf16 %v734, %v734
    %780 = vrot.lane.b32.xlu0 %v778, 32
    %v781 = vpop.permute.xlu0 %780
    %v783 = vsel %vm296, %v781, 0
    %785 = vmatprep.subr.bf16.mxu0 0
    %786 = vmatpush1.bf16.msra.mxu0 %v385
    %787 = vmatprep.subr.bf16.mxu0 0
    %788 = vmatpush1.bf16.msra.mxu0 %v386
    %789 = vmatprep.subr.bf16.mxu0 0
    %790 = vmatpush1.bf16.msra.mxu0 0
    %791 = vmatprep.subr.bf16.mxu0 0
    %792 = vmatpush1.bf16.msra.mxu0 0
    %793 = vmatprep.subr.bf16.mxu0 0
    %794 = vmatpush1.bf16.msra.mxu0 0
    %795 = vmatprep.subr.bf16.mxu0 0
    %796 = vmatpush1.bf16.msra.mxu0 0
    %797 = vmatprep.subr.bf16.mxu0 0
    %798 = vmatpush1.bf16.msra.mxu0 0
    %799 = vmatprep.subr.bf16.mxu0 0
    %800 = vmatpush1.bf16.msra.mxu0 0
    %801 = vmatprep.subr.bf16.mxu0 0
    %802 = vmatpush1.bf16.msra.mxu0 0
    %803 = vmatprep.subr.bf16.mxu0 0
    %804 = vmatpush1.bf16.msra.mxu0 0
    %805 = vmatprep.subr.bf16.mxu0 0
    %806 = vmatpush1.bf16.msra.mxu0 0
    %807 = vmatprep.subr.bf16.mxu0 0
    %808 = vmatpush1.bf16.msra.mxu0 0
    %809 = vmatprep.subr.bf16.mxu0 0
    %810 = vmatpush1.bf16.msra.mxu0 0
    %811 = vmatprep.subr.bf16.mxu0 0
    %812 = vmatpush1.bf16.msra.mxu0 0
    %813 = vmatprep.subr.bf16.mxu0 0
    %814 = vmatpush1.bf16.msra.mxu0 0
    %815 = vmatprep.subr.bf16.mxu0 0
    %816 = vmatpush1.bf16.msra.mxu0 0
    %817 = vmatprep.mubr.bf16.mxu0 0
    %818 = vmatmul.mubr.bf16.gmra.mrb[0].mxu0 %v783
    %v819 = vpop.f32.mrb[0].mxu0
    %v820 = vadd.f32 0.0, %v819
    %v821 = vpop.f32.mrb[0].mxu0
    %v822 = vpop.f32.mrb[0].mxu0
    %v823 = vpop.f32.mrb[0].mxu0
    %824 = vdwg.mxu0
    %v826 = vrot.slane %v820, 4
    %v828 = vadd.f32 %v334, %v826
    %v829 = vpack.c.bf16 %v759, %v759
    %v831 = vsel %vm296, %v829, 0
    %833 = vmatprep.subr.bf16.mxu0 0
    %834 = vmatpush1.bf16.msra.mxu0 %v441
    %835 = vmatprep.subr.bf16.mxu0 0
    %836 = vmatpush1.bf16.msra.mxu0 %v442
    %837 = vmatprep.subr.bf16.mxu0 0
    %838 = vmatpush1.bf16.msra.mxu0 0
    %839 = vmatprep.subr.bf16.mxu0 0
    %840 = vmatpush1.bf16.msra.mxu0 0
    %841 = vmatprep.subr.bf16.mxu0 0
    %842 = vmatpush1.bf16.msra.mxu0 0
    %843 = vmatprep.subr.bf16.mxu0 0
    %844 = vmatpush1.bf16.msra.mxu0 0
    %845 = vmatprep.subr.bf16.mxu0 0
    %846 = vmatpush1.bf16.msra.mxu0 0
    %847 = vmatprep.subr.bf16.mxu0 0
    %848 = vmatpush1.bf16.msra.mxu0 0
    %849 = vmatprep.subr.bf16.mxu0 0
    %850 = vmatpush1.bf16.msra.mxu0 0
    %851 = vmatprep.subr.bf16.mxu0 0
    %852 = vmatpush1.bf16.msra.mxu0 0
    %853 = vmatprep.subr.bf16.mxu0 0
    %854 = vmatpush1.bf16.msra.mxu0 0
    %855 = vmatprep.subr.bf16.mxu0 0
    %856 = vmatpush1.bf16.msra.mxu0 0
    %857 = vmatprep.subr.bf16.mxu0 0
    %858 = vmatpush1.bf16.msra.mxu0 0
    %859 = vmatprep.subr.bf16.mxu0 0
    %860 = vmatpush1.bf16.msra.mxu0 0
    %861 = vmatprep.subr.bf16.mxu0 0
    %862 = vmatpush1.bf16.msra.mxu0 0
    %863 = vmatprep.subr.bf16.mxu0 0
    %864 = vmatpush1.bf16.msra.mxu0 0
    %865 = vmatprep.mubr.bf16.mxu0 0
    %866 = vmatmul.mubr.bf16.gmra.mrb[0].mxu0 %v831
    %v867 = vpop.f32.mrb[0].mxu0
    %v868 = vadd.f32 0.0, %v867
    %v869 = vpop.f32.mrb[0].mxu0
    %v870 = vpop.f32.mrb[0].mxu0
    %v871 = vpop.f32.mrb[0].mxu0
    %872 = vdwg.mxu0
    %v874 = vrot.slane %v868, 6
    %v876 = vadd.f32 %v340, %v874
    %v877 = vxor.u32 %v828, 2147483648
    %v878 = vmul.f32 %v877, 1.442695
    %v879 = vpow.pop %v878
    %v880 = vadd.f32 %v879, 1.0
    %v881 = vrcp.pop %v880
    %v882 = vmul.f32 1.0, %v881
    %v883 = vtanh.pop %v828
    %v885 = vrot.slane %v746, 4
    %v887 = vmul.f32 %v882, %v885
    %889 = vrot.lane.b32.xlu0 %v883, 64
    %v890 = vpop.permute.xlu0 %889
    %v892 = vmul.f32 %v882, %v890
    %894 = vrot.lane.b32.xlu0 %v892, 32
    %v895 = vpop.permute.xlu0 %894
    %v897 = vadd.f32 %v887, %v895
    %v898 = vtanh.pop %v897
    %900 = vrot.lane.b32.xlu0 %v898, 64
    %v901 = vpop.permute.xlu0 %900
    %v903 = vmul.f32 %v882, %v901
    %v904 = vxor.u32 %v876, 2147483648
    %v905 = vmul.f32 %v904, 1.442695
    %v906 = vpow.pop %v905
    %v907 = vadd.f32 %v906, 1.0
    %v908 = vrcp.pop %v907
    %v909 = vmul.f32 1.0, %v908
    %v910 = vtanh.pop %v876
    %v912 = vrot.slane %v767, 6
    %913 = vrot.lane.b32.xlu0 %v912, 32
    %v914 = vpop.permute.xlu0 %913
    %v916 = vmul.f32 %v909, %v914
    %918 = vrot.lane.b32.xlu0 %v910, 64
    %v919 = vpop.permute.xlu0 %918
    %v921 = vmul.f32 %v909, %v919
    %923 = vrot.lane.b32.xlu0 %v921, 32
    %v924 = vpop.permute.xlu0 %923
    %v926 = vadd.f32 %v916, %v924
    %v927 = vtanh.pop %v926
    %929 = vrot.lane.b32.xlu0 %v927, 64
    %v930 = vpop.permute.xlu0 %929
    %v932 = vmul.f32 %v909, %v930
    %v934 = vrot.slane %v734, 4
    %v936 = vsub.f32 %v903, %v934
    %v938 = vrot.slane %v936, 4
    %939 = vrot.lane.b32.xlu0 %v938, 32
    %v940 = vpop.permute.xlu0 %939
    %v942 = vmul.f32 %v363, %v940
    %944 = vrot.lane.b32.xlu0 %v942, 96
    %v945 = vpop.permute.xlu0 %944
    %v947 = vadd.f32 %v734, %v945
    %v948 = vsub.f32 %v897, %v885
    %v950 = vrot.slane %v948, 4
    %951 = vrot.lane.b32.xlu0 %v950, 96
    %v952 = vpop.permute.xlu0 %951
    %v954 = vmul.f32 %v363, %v952
    %956 = vrot.lane.b32.xlu0 %v954, 32
    %v957 = vpop.permute.xlu0 %956
    %v959 = vadd.f32 %v746, %v957
    %v961 = vrot.slane %v759, 6
    %962 = vrot.lane.b32.xlu0 %v961, 96
    %v963 = vpop.permute.xlu0 %962
    %v965 = vsub.f32 %v932, %v963
    %v967 = vrot.slane %v965, 2
    %968 = vrot.lane.b32.xlu0 %v967, 32
    %v969 = vpop.permute.xlu0 %968
    %v971 = vmul.f32 %v366, %v969
    %v972 = vadd.f32 %v759, %v971
    %v973 = vsub.f32 %v926, %v914
    %v975 = vrot.slane %v973, 2
    %976 = vrot.lane.b32.xlu0 %v975, 96
    %v977 = vpop.permute.xlu0 %976
    %v979 = vmul.f32 %v366, %v977
    %v980 = vadd.f32 %v767, %v979
    %v981 = vmul.f32 %v947, %v363
    %983 = vrot.lane.b32.xlu0 %v981, 32
    %v984 = vpop.permute.xlu0 %983
    %s986 = scalar_lea.vmem [#allocation2], 4
    %987 = vst.msk [vmem:[%s986] sm:$0x3] %vm560, %v984
    %v988 = vmul.f32 %v972, %v366
    %s989 = scalar_lea.vmem [#allocation3], 10
    %990 = vst.msk [vmem:[%s989] sm:$0x3] %vm560, %v988
    %v991 = vpack.c.bf16 %v947, %v947
    %993 = vrot.lane.b32.xlu0 %v991, 32
    %v994 = vpop.permute.xlu0 %993
    %v996 = vsel %vm296, %v994, 0
    %998 = vmatprep.subr.bf16.mxu0 0
    %999 = vmatpush1.bf16.msra.mxu0 %v385
    %1000 = vmatprep.subr.bf16.mxu0 0
    %1001 = vmatpush1.bf16.msra.mxu0 %v386
    %1002 = vmatprep.subr.bf16.mxu0 0
    %1003 = vmatpush1.bf16.msra.mxu0 0
    %1004 = vmatprep.subr.bf16.mxu0 0
    %1005 = vmatpush1.bf16.msra.mxu0 0
    %1006 = vmatprep.subr.bf16.mxu0 0
    %1007 = vmatpush1.bf16.msra.mxu0 0
    %1008 = vmatprep.subr.bf16.mxu0 0
    %1009 = vmatpush1.bf16.msra.mxu0 0
    %1010 = vmatprep.subr.bf16.mxu0 0
    %1011 = vmatpush1.bf16.msra.mxu0 0
    %1012 = vmatprep.subr.bf16.mxu0 0
    %1013 = vmatpush1.bf16.msra.mxu0 0
    %1014 = vmatprep.subr.bf16.mxu0 0
    %1015 = vmatpush1.bf16.msra.mxu0 0
    %1016 = vmatprep.subr.bf16.mxu0 0
    %1017 = vmatpush1.bf16.msra.mxu0 0
    %1018 = vmatprep.subr.bf16.mxu0 0
    %1019 = vmatpush1.bf16.msra.mxu0 0
    %1020 = vmatprep.subr.bf16.mxu0 0
    %1021 = vmatpush1.bf16.msra.mxu0 0
    %1022 = vmatprep.subr.bf16.mxu0 0
    %1023 = vmatpush1.bf16.msra.mxu0 0
    %1024 = vmatprep.subr.bf16.mxu0 0
    %1025 = vmatpush1.bf16.msra.mxu0 0
    %1026 = vmatprep.subr.bf16.mxu0 0
    %1027 = vmatpush1.bf16.msra.mxu0 0
    %1028 = vmatprep.subr.bf16.mxu0 0
    %1029 = vmatpush1.bf16.msra.mxu0 0
    %1030 = vmatprep.mubr.bf16.mxu0 0
    %1031 = vmatmul.mubr.bf16.gmra.mrb[0].mxu0 %v996
    %v1032 = vpop.f32.mrb[0].mxu0
    %v1033 = vadd.f32 0.0, %v1032
    %v1034 = vpop.f32.mrb[0].mxu0
    %v1035 = vpop.f32.mrb[0].mxu0
    %v1036 = vpop.f32.mrb[0].mxu0
    %1037 = vdwg.mxu0
    %v1039 = vrot.slane %v1033, 2
    %v1041 = vadd.f32 %v334, %v1039
    %v1042 = vpack.c.bf16 %v972, %v972
    %v1044 = vsel %vm296, %v1042, 0
    %1046 = vmatprep.subr.bf16.mxu0 0
    %1047 = vmatpush1.bf16.msra.mxu0 %v441
    %1048 = vmatprep.subr.bf16.mxu0 0
    %1049 = vmatpush1.bf16.msra.mxu0 %v442
    %1050 = vmatprep.subr.bf16.mxu0 0
    %1051 = vmatpush1.bf16.msra.mxu0 0
    %1052 = vmatprep.subr.bf16.mxu0 0
    %1053 = vmatpush1.bf16.msra.mxu0 0
    %1054 = vmatprep.subr.bf16.mxu0 0
    %1055 = vmatpush1.bf16.msra.mxu0 0
    %1056 = vmatprep.subr.bf16.mxu0 0
    %1057 = vmatpush1.bf16.msra.mxu0 0
    %1058 = vmatprep.subr.bf16.mxu0 0
    %1059 = vmatpush1.bf16.msra.mxu0 0
    %1060 = vmatprep.subr.bf16.mxu0 0
    %1061 = vmatpush1.bf16.msra.mxu0 0
    %1062 = vmatprep.subr.bf16.mxu0 0
    %1063 = vmatpush1.bf16.msra.mxu0 0
    %1064 = vmatprep.subr.bf16.mxu0 0
    %1065 = vmatpush1.bf16.msra.mxu0 0
    %1066 = vmatprep.subr.bf16.mxu0 0
    %1067 = vmatpush1.bf16.msra.mxu0 0
    %1068 = vmatprep.subr.bf16.mxu0 0
    %1069 = vmatpush1.bf16.msra.mxu0 0
    %1070 = vmatprep.subr.bf16.mxu0 0
    %1071 = vmatpush1.bf16.msra.mxu0 0
    %1072 = vmatprep.subr.bf16.mxu0 0
    %1073 = vmatpush1.bf16.msra.mxu0 0
    %1074 = vmatprep.subr.bf16.mxu0 0
    %1075 = vmatpush1.bf16.msra.mxu0 0
    %1076 = vmatprep.subr.bf16.mxu0 0
    %1077 = vmatpush1.bf16.msra.mxu0 0
    %1078 = vmatprep.mubr.bf16.mxu0 0
    %1079 = vmatmul.mubr.bf16.gmra.mrb[0].mxu0 %v1044
    %v1080 = vpop.f32.mrb[0].mxu0
    %v1081 = vadd.f32 0.0, %v1080
    %v1082 = vpop.f32.mrb[0].mxu0
    %v1083 = vpop.f32.mrb[0].mxu0
    %v1084 = vpop.f32.mrb[0].mxu0
    %1085 = vdwg.mxu0
    %v1086 = vadd.f32 %v340, %v1081
    %v1087 = vxor.u32 %v1041, 2147483648
    %v1088 = vmul.f32 %v1087, 1.442695
    %v1089 = vpow.pop %v1088
    %v1090 = vadd.f32 %v1089, 1.0
    %v1091 = vrcp.pop %v1090
    %v1092 = vmul.f32 1.0, %v1091
    %v1093 = vtanh.pop %v1041
    %v1095 = vrot.slane %v959, 2
    %v1097 = vmul.f32 %v1092, %v1095
    %1099 = vrot.lane.b32.xlu0 %v1093, 64
    %v1100 = vpop.permute.xlu0 %1099
    %v1102 = vmul.f32 %v1092, %v1100
    %1104 = vrot.lane.b32.xlu0 %v1102, 32
    %v1105 = vpop.permute.xlu0 %1104
    %v1107 = vadd.f32 %v1097, %v1105
    %v1108 = vtanh.pop %v1107
    %1110 = vrot.lane.b32.xlu0 %v1108, 64
    %v1111 = vpop.permute.xlu0 %1110
    %v1113 = vmul.f32 %v1092, %v1111
    %v1114 = vxor.u32 %v1086, 2147483648
    %v1115 = vmul.f32 %v1114, 1.442695
    %v1116 = vpow.pop %v1115
    %v1117 = vadd.f32 %v1116, 1.0
    %v1118 = vrcp.pop %v1117
    %v1119 = vmul.f32 1.0, %v1118
    %v1120 = vtanh.pop %v1086
    %1122 = vrot.lane.b32.xlu0 %v980, 32
    %v1123 = vpop.permute.xlu0 %1122
    %v1125 = vmul.f32 %v1119, %v1123
    %1127 = vrot.lane.b32.xlu0 %v1120, 64
    %v1128 = vpop.permute.xlu0 %1127
    %v1130 = vmul.f32 %v1119, %v1128
    %1132 = vrot.lane.b32.xlu0 %v1130, 32
    %v1133 = vpop.permute.xlu0 %1132
    %v1135 = vadd.f32 %v1125, %v1133
    %v1136 = vtanh.pop %v1135
    %1138 = vrot.lane.b32.xlu0 %v1136, 64
    %v1139 = vpop.permute.xlu0 %1138
    %v1141 = vmul.f32 %v1119, %v1139
    %v1143 = vrot.slane %v947, 2
    %v1145 = vsub.f32 %v1113, %v1143
    %v1147 = vrot.slane %v1145, 6
    %1148 = vrot.lane.b32.xlu0 %v1147, 32
    %v1149 = vpop.permute.xlu0 %1148
    %v1151 = vmul.f32 %v364, %v1149
    %1153 = vrot.lane.b32.xlu0 %v1151, 96
    %v1154 = vpop.permute.xlu0 %1153
    %v1156 = vadd.f32 %v947, %v1154
    %v1157 = vsub.f32 %v1107, %v1095
    %v1159 = vrot.slane %v1157, 6
    %1160 = vrot.lane.b32.xlu0 %v1159, 96
    %v1161 = vpop.permute.xlu0 %1160
    %v1163 = vmul.f32 %v364, %v1161
    %1165 = vrot.lane.b32.xlu0 %v1163, 32
    %v1166 = vpop.permute.xlu0 %1165
    %v1168 = vadd.f32 %v959, %v1166
    %1170 = vrot.lane.b32.xlu0 %v972, 96
    %v1171 = vpop.permute.xlu0 %1170
    %v1173 = vsub.f32 %v1141, %v1171
    %v1174 = vmul.f32 %v365, %v1173
    %1176 = vrot.lane.b32.xlu0 %v1174, 32
    %v1177 = vpop.permute.xlu0 %1176
    %v1179 = vadd.f32 %v972, %v1177
    %v1180 = vsub.f32 %v1135, %v1123
    %v1181 = vmul.f32 %v365, %v1180
    %1183 = vrot.lane.b32.xlu0 %v1181, 96
    %v1184 = vpop.permute.xlu0 %1183
    %v1186 = vadd.f32 %v980, %v1184
    %v1187 = vmul.f32 %v1156, %v364
    %1189 = vrot.lane.b32.xlu0 %v1187, 32
    %v1190 = vpop.permute.xlu0 %1189
    %s1192 = scalar_lea.vmem [#allocation2], 6
    %1193 = vst.msk [vmem:[%s1192] sm:$0x3] %vm560, %v1190
    %v1194 = vmul.f32 %v1179, %v365
    %s1195 = scalar_lea.vmem [#allocation3], 8
    %1196 = vst.msk [vmem:[%s1195] sm:$0x3] %vm560, %v1194
    %v1197 = vpack.c.bf16 %v1156, %v1156
    %1199 = vrot.lane.b32.xlu0 %v1197, 32
    %v1200 = vpop.permute.xlu0 %1199
    %v1202 = vsel %vm296, %v1200, 0
    %1204 = vmatprep.subr.bf16.mxu0 0
    %1205 = vmatpush1.bf16.msra.mxu0 %v385
    %1206 = vmatprep.subr.bf16.mxu0 0
    %1207 = vmatpush1.bf16.msra.mxu0 %v386
    %1208 = vmatprep.subr.bf16.mxu0 0
    %1209 = vmatpush1.bf16.msra.mxu0 0
    %1210 = vmatprep.subr.bf16.mxu0 0
    %1211 = vmatpush1.bf16.msra.mxu0 0
    %1212 = vmatprep.subr.bf16.mxu0 0
    %1213 = vmatpush1.bf16.msra.mxu0 0
    %1214 = vmatprep.subr.bf16.mxu0 0
    %1215 = vmatpush1.bf16.msra.mxu0 0
    %1216 = vmatprep.subr.bf16.mxu0 0
    %1217 = vmatpush1.bf16.msra.mxu0 0
    %1218 = vmatprep.subr.bf16.mxu0 0
    %1219 = vmatpush1.bf16.msra.mxu0 0
    %1220 = vmatprep.subr.bf16.mxu0 0
    %1221 = vmatpush1.bf16.msra.mxu0 0
    %1222 = vmatprep.subr.bf16.mxu0 0
    %1223 = vmatpush1.bf16.msra.mxu0 0
    %1224 = vmatprep.subr.bf16.mxu0 0
    %1225 = vmatpush1.bf16.msra.mxu0 0
    %1226 = vmatprep.subr.bf16.mxu0 0
    %1227 = vmatpush1.bf16.msra.mxu0 0
    %1228 = vmatprep.subr.bf16.mxu0 0
    %1229 = vmatpush1.bf16.msra.mxu0 0
    %1230 = vmatprep.subr.bf16.mxu0 0
    %1231 = vmatpush1.bf16.msra.mxu0 0
    %1232 = vmatprep.subr.bf16.mxu0 0
    %1233 = vmatpush1.bf16.msra.mxu0 0
    %1234 = vmatprep.subr.bf16.mxu0 0
    %1235 = vmatpush1.bf16.msra.mxu0 0
    %1236 = vmatprep.mubr.bf16.mxu0 0
    %1237 = vmatmul.mubr.bf16.gmra.mrb[0].mxu0 %v1202
    %v1238 = vpop.f32.mrb[0].mxu0
    %v1239 = vadd.f32 0.0, %v1238
    %v1240 = vpop.f32.mrb[0].mxu0
    %v1241 = vpop.f32.mrb[0].mxu0
    %v1242 = vpop.f32.mrb[0].mxu0
    %1243 = vdwg.mxu0
    %v1244 = vadd.f32 %v338, %v1239
    %v1245 = vpack.c.bf16 %v1179, %v1179
    %v1247 = vsel %vm296, %v1245, 0
    %1249 = vmatprep.subr.bf16.mxu0 0
    %1250 = vmatpush1.bf16.msra.mxu0 %v441
    %1251 = vmatprep.subr.bf16.mxu0 0
    %1252 = vmatpush1.bf16.msra.mxu0 %v442
    %1253 = vmatprep.subr.bf16.mxu0 0
    %1254 = vmatpush1.bf16.msra.mxu0 0
    %1255 = vmatprep.subr.bf16.mxu0 0
    %1256 = vmatpush1.bf16.msra.mxu0 0
    %1257 = vmatprep.subr.bf16.mxu0 0
    %1258 = vmatpush1.bf16.msra.mxu0 0
    %1259 = vmatprep.subr.bf16.mxu0 0
    %1260 = vmatpush1.bf16.msra.mxu0 0
    %1261 = vmatprep.subr.bf16.mxu0 0
    %1262 = vmatpush1.bf16.msra.mxu0 0
    %1263 = vmatprep.subr.bf16.mxu0 0
    %1264 = vmatpush1.bf16.msra.mxu0 0
    %1265 = vmatprep.subr.bf16.mxu0 0
    %1266 = vmatpush1.bf16.msra.mxu0 0
    %1267 = vmatprep.subr.bf16.mxu0 0
    %1268 = vmatpush1.bf16.msra.mxu0 0
    %1269 = vmatprep.subr.bf16.mxu0 0
    %1270 = vmatpush1.bf16.msra.mxu0 0
    %1271 = vmatprep.subr.bf16.mxu0 0
    %1272 = vmatpush1.bf16.msra.mxu0 0
    %1273 = vmatprep.subr.bf16.mxu0 0
    %1274 = vmatpush1.bf16.msra.mxu0 0
    %1275 = vmatprep.subr.bf16.mxu0 0
    %1276 = vmatpush1.bf16.msra.mxu0 0
    %1277 = vmatprep.subr.bf16.mxu0 0
    %1278 = vmatpush1.bf16.msra.mxu0 0
    %1279 = vmatprep.subr.bf16.mxu0 0
    %1280 = vmatpush1.bf16.msra.mxu0 0
    %1281 = vmatprep.mubr.bf16.mxu0 0
    %1282 = vmatmul.mubr.bf16.gmra.mrb[0].mxu0 %v1247
    %v1283 = vpop.f32.mrb[0].mxu0
    %v1284 = vadd.f32 0.0, %v1283
    %v1285 = vpop.f32.mrb[0].mxu0
    %v1286 = vpop.f32.mrb[0].mxu0
    %v1287 = vpop.f32.mrb[0].mxu0
    %1288 = vdwg.mxu0
    %v1290 = vrot.slane %v1284, 2
    %v1292 = vadd.f32 %v336, %v1290
    %v1293 = vxor.u32 %v1244, 2147483648
    %v1294 = vmul.f32 %v1293, 1.442695
    %v1295 = vpow.pop %v1294
    %v1296 = vadd.f32 %v1295, 1.0
    %v1297 = vrcp.pop %v1296
    %v1298 = vmul.f32 1.0, %v1297
    %v1299 = vtanh.pop %v1244
    %v1300 = vmul.f32 %v1298, %v1168
    %1302 = vrot.lane.b32.xlu0 %v1299, 64
    %v1303 = vpop.permute.xlu0 %1302
    %v1305 = vmul.f32 %v1298, %v1303
    %1307 = vrot.lane.b32.xlu0 %v1305, 32
    %v1308 = vpop.permute.xlu0 %1307
    %v1310 = vadd.f32 %v1300, %v1308
    %v1311 = vtanh.pop %v1310
    %1313 = vrot.lane.b32.xlu0 %v1311, 64
    %v1314 = vpop.permute.xlu0 %1313
    %v1316 = vmul.f32 %v1298, %v1314
    %v1317 = vxor.u32 %v1292, 2147483648
    %v1318 = vmul.f32 %v1317, 1.442695
    %v1319 = vpow.pop %v1318
    %v1320 = vadd.f32 %v1319, 1.0
    %v1321 = vrcp.pop %v1320
    %v1322 = vmul.f32 1.0, %v1321
    %v1323 = vtanh.pop %v1292
    %v1325 = vrot.slane %v1186, 2
    %1326 = vrot.lane.b32.xlu0 %v1325, 32
    %v1327 = vpop.permute.xlu0 %1326
    %v1329 = vmul.f32 %v1322, %v1327
    %1331 = vrot.lane.b32.xlu0 %v1323, 64
    %v1332 = vpop.permute.xlu0 %1331
    %v1334 = vmul.f32 %v1322, %v1332
    %1336 = vrot.lane.b32.xlu0 %v1334, 32
    %v1337 = vpop.permute.xlu0 %1336
    %v1339 = vadd.f32 %v1329, %v1337
    %v1340 = vtanh.pop %v1339
    %1342 = vrot.lane.b32.xlu0 %v1340, 64
    %v1343 = vpop.permute.xlu0 %1342
    %v1345 = vmul.f32 %v1322, %v1343
    %v1346 = vsub.f32 %v1316, %v1156
    %v1347 = vmul.f32 %v365, %v1346
    %v1348 = vadd.f32 %v1156, %v1347
    %v1349 = vsub.f32 %v1310, %v1168
    %v1350 = vmul.f32 %v365, %v1349
    %v1351 = vadd.f32 %v1168, %v1350
    %v1353 = vrot.slane %v1179, 2
    %1354 = vrot.lane.b32.xlu0 %v1353, 96
    %v1355 = vpop.permute.xlu0 %1354
    %v1357 = vsub.f32 %v1345, %v1355
    %v1359 = vrot.slane %v1357, 6
    %1360 = vrot.lane.b32.xlu0 %v1359, 32
    %v1361 = vpop.permute.xlu0 %1360
    %v1363 = vmul.f32 %v364, %v1361
    %v1364 = vadd.f32 %v1179, %v1363
    %v1365 = vsub.f32 %v1339, %v1327
    %v1367 = vrot.slane %v1365, 6
    %1368 = vrot.lane.b32.xlu0 %v1367, 96
    %v1369 = vpop.permute.xlu0 %1368
    %v1371 = vmul.f32 %v364, %v1369
    %v1372 = vadd.f32 %v1186, %v1371
    %v1373 = vmul.f32 %v1348, %v365
    %1375 = vrot.lane.b32.xlu0 %v1373, 32
    %v1376 = vpop.permute.xlu0 %1375
    %s1378 = scalar_lea.vmem [#allocation2], 8
    %1379 = vst.msk [vmem:[%s1378] sm:$0x3] %vm560, %v1376
    %v1380 = vmul.f32 %v1364, %v364
    %s1381 = scalar_lea.vmem [#allocation3], 6
    %1382 = vst.msk [vmem:[%s1381] sm:$0x3] %vm560, %v1380
    %v1383 = vpack.c.bf16 %v1348, %v1348
    %1385 = vrot.lane.b32.xlu0 %v1383, 32
    %v1386 = vpop.permute.xlu0 %1385
    %v1388 = vsel %vm296, %v1386, 0
    %1390 = vmatprep.subr.bf16.mxu0 0
    %1391 = vmatpush1.bf16.msra.mxu0 %v385
    %1392 = vmatprep.subr.bf16.mxu0 0
    %1393 = vmatpush1.bf16.msra.mxu0 %v386
    %1394 = vmatprep.subr.bf16.mxu0 0
    %1395 = vmatpush1.bf16.msra.mxu0 0
    %1396 = vmatprep.subr.bf16.mxu0 0
    %1397 = vmatpush1.bf16.msra.mxu0 0
    %1398 = vmatprep.subr.bf16.mxu0 0
    %1399 = vmatpush1.bf16.msra.mxu0 0
    %1400 = vmatprep.subr.bf16.mxu0 0
    %1401 = vmatpush1.bf16.msra.mxu0 0
    %1402 = vmatprep.subr.bf16.mxu0 0
    %1403 = vmatpush1.bf16.msra.mxu0 0
    %1404 = vmatprep.subr.bf16.mxu0 0
    %1405 = vmatpush1.bf16.msra.mxu0 0
    %1406 = vmatprep.subr.bf16.mxu0 0
    %1407 = vmatpush1.bf16.msra.mxu0 0
    %1408 = vmatprep.subr.bf16.mxu0 0
    %1409 = vmatpush1.bf16.msra.mxu0 0
    %1410 = vmatprep.subr.bf16.mxu0 0
    %1411 = vmatpush1.bf16.msra.mxu0 0
    %1412 = vmatprep.subr.bf16.mxu0 0
    %1413 = vmatpush1.bf16.msra.mxu0 0
    %1414 = vmatprep.subr.bf16.mxu0 0
    %1415 = vmatpush1.bf16.msra.mxu0 0
    %1416 = vmatprep.subr.bf16.mxu0 0
    %1417 = vmatpush1.bf16.msra.mxu0 0
    %1418 = vmatprep.subr.bf16.mxu0 0
    %1419 = vmatpush1.bf16.msra.mxu0 0
    %1420 = vmatprep.subr.bf16.mxu0 0
    %1421 = vmatpush1.bf16.msra.mxu0 0
    %1422 = vmatprep.mubr.bf16.mxu0 0
    %1423 = vmatmul.mubr.bf16.gmra.mrb[0].mxu0 %v1388
    %v1424 = vpop.f32.mrb[0].mxu0
    %v1425 = vadd.f32 0.0, %v1424
    %v1426 = vpop.f32.mrb[0].mxu0
    %v1427 = vpop.f32.mrb[0].mxu0
    %v1428 = vpop.f32.mrb[0].mxu0
    %1429 = vdwg.mxu0
    %v1431 = vrot.slane %v1425, 6
    %v1433 = vadd.f32 %v338, %v1431
    %v1434 = vpack.c.bf16 %v1364, %v1364
    %v1436 = vsel %vm296, %v1434, 0
    %1438 = vmatprep.subr.bf16.mxu0 0
    %1439 = vmatpush1.bf16.msra.mxu0 %v441
    %1440 = vmatprep.subr.bf16.mxu0 0
    %1441 = vmatpush1.bf16.msra.mxu0 %v442
    %1442 = vmatprep.subr.bf16.mxu0 0
    %1443 = vmatpush1.bf16.msra.mxu0 0
    %1444 = vmatprep.subr.bf16.mxu0 0
    %1445 = vmatpush1.bf16.msra.mxu0 0
    %1446 = vmatprep.subr.bf16.mxu0 0
    %1447 = vmatpush1.bf16.msra.mxu0 0
    %1448 = vmatprep.subr.bf16.mxu0 0
    %1449 = vmatpush1.bf16.msra.mxu0 0
    %1450 = vmatprep.subr.bf16.mxu0 0
    %1451 = vmatpush1.bf16.msra.mxu0 0
    %1452 = vmatprep.subr.bf16.mxu0 0
    %1453 = vmatpush1.bf16.msra.mxu0 0
    %1454 = vmatprep.subr.bf16.mxu0 0
    %1455 = vmatpush1.bf16.msra.mxu0 0
    %1456 = vmatprep.subr.bf16.mxu0 0
    %1457 = vmatpush1.bf16.msra.mxu0 0
    %1458 = vmatprep.subr.bf16.mxu0 0
    %1459 = vmatpush1.bf16.msra.mxu0 0
    %1460 = vmatprep.subr.bf16.mxu0 0
    %1461 = vmatpush1.bf16.msra.mxu0 0
    %1462 = vmatprep.subr.bf16.mxu0 0
    %1463 = vmatpush1.bf16.msra.mxu0 0
    %1464 = vmatprep.subr.bf16.mxu0 0
    %1465 = vmatpush1.bf16.msra.mxu0 0
    %1466 = vmatprep.subr.bf16.mxu0 0
    %1467 = vmatpush1.bf16.msra.mxu0 0
    %1468 = vmatprep.subr.bf16.mxu0 0
    %1469 = vmatpush1.bf16.msra.mxu0 0
    %1470 = vmatprep.mubr.bf16.mxu0 0
    %1471 = vmatmul.mubr.bf16.gmra.mrb[0].mxu0 %v1436
    %v1472 = vpop.f32.mrb[0].mxu0
    %v1473 = vadd.f32 0.0, %v1472
    %v1474 = vpop.f32.mrb[0].mxu0
    %v1475 = vpop.f32.mrb[0].mxu0
    %v1476 = vpop.f32.mrb[0].mxu0
    %1477 = vdwg.mxu0
    %v1479 = vrot.slane %v1473, 4
    %v1481 = vadd.f32 %v336, %v1479
    %v1482 = vxor.u32 %v1433, 2147483648
    %v1483 = vmul.f32 %v1482, 1.442695
    %v1484 = vpow.pop %v1483
    %v1485 = vadd.f32 %v1484, 1.0
    %v1486 = vrcp.pop %v1485
    %v1487 = vmul.f32 1.0, %v1486
    %v1488 = vtanh.pop %v1433
    %v1490 = vrot.slane %v1351, 6
    %v1492 = vmul.f32 %v1487, %v1490
    %1494 = vrot.lane.b32.xlu0 %v1488, 64
    %v1495 = vpop.permute.xlu0 %1494
    %v1497 = vmul.f32 %v1487, %v1495
    %1499 = vrot.lane.b32.xlu0 %v1497, 32
    %v1500 = vpop.permute.xlu0 %1499
    %v1502 = vadd.f32 %v1492, %v1500
    %v1503 = vtanh.pop %v1502
    %1505 = vrot.lane.b32.xlu0 %v1503, 64
    %v1506 = vpop.permute.xlu0 %1505
    %v1508 = vmul.f32 %v1487, %v1506
    %v1509 = vxor.u32 %v1481, 2147483648
    %v1510 = vmul.f32 %v1509, 1.442695
    %v1511 = vpow.pop %v1510
    %v1512 = vadd.f32 %v1511, 1.0
    %v1513 = vrcp.pop %v1512
    %v1514 = vmul.f32 1.0, %v1513
    %v1515 = vtanh.pop %v1481
    %v1517 = vrot.slane %v1372, 4
    %1518 = vrot.lane.b32.xlu0 %v1517, 32
    %v1519 = vpop.permute.xlu0 %1518
    %v1521 = vmul.f32 %v1514, %v1519
    %1523 = vrot.lane.b32.xlu0 %v1515, 64
    %v1524 = vpop.permute.xlu0 %1523
    %v1526 = vmul.f32 %v1514, %v1524
    %1528 = vrot.lane.b32.xlu0 %v1526, 32
    %v1529 = vpop.permute.xlu0 %1528
    %v1531 = vadd.f32 %v1521, %v1529
    %v1532 = vtanh.pop %v1531
    %1534 = vrot.lane.b32.xlu0 %v1532, 64
    %v1535 = vpop.permute.xlu0 %1534
    %v1537 = vmul.f32 %v1514, %v1535
    %v1539 = vrot.slane %v1348, 6
    %v1541 = vsub.f32 %v1508, %v1539
    %v1543 = vrot.slane %v1541, 2
    %1544 = vrot.lane.b32.xlu0 %v1543, 32
    %v1545 = vpop.permute.xlu0 %1544
    %v1547 = vmul.f32 %v366, %v1545
    %1549 = vrot.lane.b32.xlu0 %v1547, 96
    %v1550 = vpop.permute.xlu0 %1549
    %v1552 = vadd.f32 %v1348, %v1550
    %v1553 = vsub.f32 %v1502, %v1490
    %v1555 = vrot.slane %v1553, 2
    %1556 = vrot.lane.b32.xlu0 %v1555, 96
    %v1557 = vpop.permute.xlu0 %1556
    %v1559 = vmul.f32 %v366, %v1557
    %1561 = vrot.lane.b32.xlu0 %v1559, 32
    %v1562 = vpop.permute.xlu0 %1561
    %v1564 = vadd.f32 %v1351, %v1562
    %v1566 = vrot.slane %v1364, 4
    %1567 = vrot.lane.b32.xlu0 %v1566, 96
    %v1568 = vpop.permute.xlu0 %1567
    %v1570 = vsub.f32 %v1537, %v1568
    %v1572 = vrot.slane %v1570, 4
    %1573 = vrot.lane.b32.xlu0 %v1572, 32
    %v1574 = vpop.permute.xlu0 %1573
    %v1576 = vmul.f32 %v363, %v1574
    %v1577 = vadd.f32 %v1364, %v1576
    %v1578 = vsub.f32 %v1531, %v1519
    %v1580 = vrot.slane %v1578, 4
    %1581 = vrot.lane.b32.xlu0 %v1580, 96
    %v1582 = vpop.permute.xlu0 %1581
    %v1584 = vmul.f32 %v363, %v1582
    %v1585 = vadd.f32 %v1372, %v1584
    %v1586 = vmul.f32 %v1552, %v366
    %1588 = vrot.lane.b32.xlu0 %v1586, 32
    %v1589 = vpop.permute.xlu0 %1588
    %s1591 = scalar_lea.vmem [#allocation2], 10
    %1592 = vst.msk [vmem:[%s1591] sm:$0x3] %vm560, %v1589
    %v1593 = vmul.f32 %v1577, %v363
    %s1594 = scalar_lea.vmem [#allocation3], 4
    %1595 = vst.msk [vmem:[%s1594] sm:$0x3] %vm560, %v1593
    %v1596 = vpack.c.bf16 %v1552, %v1552
    %1598 = vrot.lane.b32.xlu0 %v1596, 32
    %v1599 = vpop.permute.xlu0 %1598
    %v1601 = vsel %vm296, %v1599, 0
    %1603 = vmatprep.subr.bf16.mxu0 0
    %1604 = vmatpush1.bf16.msra.mxu0 %v385
    %1605 = vmatprep.subr.bf16.mxu0 0
    %1606 = vmatpush1.bf16.msra.mxu0 %v386
    %1607 = vmatprep.subr.bf16.mxu0 0
    %1608 = vmatpush1.bf16.msra.mxu0 0
    %1609 = vmatprep.subr.bf16.mxu0 0
    %1610 = vmatpush1.bf16.msra.mxu0 0
    %1611 = vmatprep.subr.bf16.mxu0 0
    %1612 = vmatpush1.bf16.msra.mxu0 0
    %1613 = vmatprep.subr.bf16.mxu0 0
    %1614 = vmatpush1.bf16.msra.mxu0 0
    %1615 = vmatprep.subr.bf16.mxu0 0
    %1616 = vmatpush1.bf16.msra.mxu0 0
    %1617 = vmatprep.subr.bf16.mxu0 0
    %1618 = vmatpush1.bf16.msra.mxu0 0
    %1619 = vmatprep.subr.bf16.mxu0 0
    %1620 = vmatpush1.bf16.msra.mxu0 0
    %1621 = vmatprep.subr.bf16.mxu0 0
    %1622 = vmatpush1.bf16.msra.mxu0 0
    %1623 = vmatprep.subr.bf16.mxu0 0
    %1624 = vmatpush1.bf16.msra.mxu0 0
    %1625 = vmatprep.subr.bf16.mxu0 0
    %1626 = vmatpush1.bf16.msra.mxu0 0
    %1627 = vmatprep.subr.bf16.mxu0 0
    %1628 = vmatpush1.bf16.msra.mxu0 0
    %1629 = vmatprep.subr.bf16.mxu0 0
    %1630 = vmatpush1.bf16.msra.mxu0 0
    %1631 = vmatprep.subr.bf16.mxu0 0
    %1632 = vmatpush1.bf16.msra.mxu0 0
    %1633 = vmatprep.subr.bf16.mxu0 0
    %1634 = vmatpush1.bf16.msra.mxu0 0
    %1635 = vmatprep.mubr.bf16.mxu0 0
    %1636 = vmatmul.mubr.bf16.gmra.mrb[0].mxu0 %v1601
    %v1637 = vpop.f32.mrb[0].mxu0
    %v1638 = vadd.f32 0.0, %v1637
    %v1639 = vpop.f32.mrb[0].mxu0
    %v1640 = vpop.f32.mrb[0].mxu0
    %v1641 = vpop.f32.mrb[0].mxu0
    %1642 = vdwg.mxu0
    %v1644 = vrot.slane %v1638, 4
    %v1646 = vadd.f32 %v338, %v1644
    %v1647 = vpack.c.bf16 %v1577, %v1577
    %v1649 = vsel %vm296, %v1647, 0
    %1651 = vmatprep.subr.bf16.mxu0 0
    %1652 = vmatpush1.bf16.msra.mxu0 %v441
    %1653 = vmatprep.subr.bf16.mxu0 0
    %1654 = vmatpush1.bf16.msra.mxu0 %v442
    %1655 = vmatprep.subr.bf16.mxu0 0
    %1656 = vmatpush1.bf16.msra.mxu0 0
    %1657 = vmatprep.subr.bf16.mxu0 0
    %1658 = vmatpush1.bf16.msra.mxu0 0
    %1659 = vmatprep.subr.bf16.mxu0 0
    %1660 = vmatpush1.bf16.msra.mxu0 0
    %1661 = vmatprep.subr.bf16.mxu0 0
    %1662 = vmatpush1.bf16.msra.mxu0 0
    %1663 = vmatprep.subr.bf16.mxu0 0
    %1664 = vmatpush1.bf16.msra.mxu0 0
    %1665 = vmatprep.subr.bf16.mxu0 0
    %1666 = vmatpush1.bf16.msra.mxu0 0
    %1667 = vmatprep.subr.bf16.mxu0 0
    %1668 = vmatpush1.bf16.msra.mxu0 0
    %1669 = vmatprep.subr.bf16.mxu0 0
    %1670 = vmatpush1.bf16.msra.mxu0 0
    %1671 = vmatprep.subr.bf16.mxu0 0
    %1672 = vmatpush1.bf16.msra.mxu0 0
    %1673 = vmatprep.subr.bf16.mxu0 0
    %1674 = vmatpush1.bf16.msra.mxu0 0
    %1675 = vmatprep.subr.bf16.mxu0 0
    %1676 = vmatpush1.bf16.msra.mxu0 0
    %1677 = vmatprep.subr.bf16.mxu0 0
    %1678 = vmatpush1.bf16.msra.mxu0 0
    %1679 = vmatprep.subr.bf16.mxu0 0
    %1680 = vmatpush1.bf16.msra.mxu0 0
    %1681 = vmatprep.subr.bf16.mxu0 0
    %1682 = vmatpush1.bf16.msra.mxu0 0
    %1683 = vmatprep.mubr.bf16.mxu0 0
    %1684 = vmatmul.mubr.bf16.gmra.mrb[0].mxu0 %v1649
    %v1685 = vpop.f32.mrb[0].mxu0
    %v1686 = vadd.f32 0.0, %v1685
    %v1687 = vpop.f32.mrb[0].mxu0
    %v1688 = vpop.f32.mrb[0].mxu0
    %v1689 = vpop.f32.mrb[0].mxu0
    %1690 = vdwg.mxu0
    %v1692 = vrot.slane %v1686, 6
    %v1694 = vadd.f32 %v336, %v1692
    %v1695 = vxor.u32 %v1646, 2147483648
    %v1696 = vmul.f32 %v1695, 1.442695
    %v1697 = vpow.pop %v1696
    %v1698 = vadd.f32 %v1697, 1.0
    %v1699 = vrcp.pop %v1698
    %v1700 = vmul.f32 1.0, %v1699
    %v1701 = vtanh.pop %v1646
    %v1703 = vrot.slane %v1564, 4
    %v1705 = vmul.f32 %v1700, %v1703
    %1707 = vrot.lane.b32.xlu0 %v1701, 64
    %v1708 = vpop.permute.xlu0 %1707
    %v1710 = vmul.f32 %v1700, %v1708
    %1712 = vrot.lane.b32.xlu0 %v1710, 32
    %v1713 = vpop.permute.xlu0 %1712
    %v1715 = vadd.f32 %v1705, %v1713
    %v1716 = vtanh.pop %v1715
    %1718 = vrot.lane.b32.xlu0 %v1716, 64
    %v1719 = vpop.permute.xlu0 %1718
    %v1721 = vmul.f32 %v1700, %v1719
    %v1722 = vxor.u32 %v1694, 2147483648
    %v1723 = vmul.f32 %v1722, 1.442695
    %v1724 = vpow.pop %v1723
    %v1725 = vadd.f32 %v1724, 1.0
    %v1726 = vrcp.pop %v1725
    %v1727 = vmul.f32 1.0, %v1726
    %v1728 = vtanh.pop %v1694
    %v1730 = vrot.slane %v1585, 6
    %1731 = vrot.lane.b32.xlu0 %v1730, 32
    %v1732 = vpop.permute.xlu0 %1731
    %v1734 = vmul.f32 %v1727, %v1732
    %1736 = vrot.lane.b32.xlu0 %v1728, 64
    %v1737 = vpop.permute.xlu0 %1736
    %v1739 = vmul.f32 %v1727, %v1737
    %1741 = vrot.lane.b32.xlu0 %v1739, 32
    %v1742 = vpop.permute.xlu0 %1741
    %v1744 = vadd.f32 %v1734, %v1742
    %v1745 = vtanh.pop %v1744
    %1747 = vrot.lane.b32.xlu0 %v1745, 64
    %v1748 = vpop.permute.xlu0 %1747
    %v1750 = vmul.f32 %v1727, %v1748
    %v1752 = vrot.slane %v1552, 4
    %v1754 = vsub.f32 %v1721, %v1752
    %v1756 = vrot.slane %v1754, 4
    %1757 = vrot.lane.b32.xlu0 %v1756, 32
    %v1758 = vpop.permute.xlu0 %1757
    %v1760 = vmul.f32 %v367, %v1758
    %1762 = vrot.lane.b32.xlu0 %v1760, 96
    %v1763 = vpop.permute.xlu0 %1762
    %v1765 = vadd.f32 %v1552, %v1763
    %v1766 = vsub.f32 %v1715, %v1703
    %v1768 = vrot.slane %v1766, 4
    %1769 = vrot.lane.b32.xlu0 %v1768, 96
    %v1770 = vpop.permute.xlu0 %1769
    %v1772 = vmul.f32 %v367, %v1770
    %1774 = vrot.lane.b32.xlu0 %v1772, 32
    %v1775 = vpop.permute.xlu0 %1774
    %v1777 = vadd.f32 %v1564, %v1775
    %v1779 = vrot.slane %v1577, 6
    %1780 = vrot.lane.b32.xlu0 %v1779, 96
    %v1781 = vpop.permute.xlu0 %1780
    %v1783 = vsub.f32 %v1750, %v1781
    %v1785 = vrot.slane %v1783, 2
    %1786 = vrot.lane.b32.xlu0 %v1785, 32
    %v1787 = vpop.permute.xlu0 %1786
    %v1789 = vmul.f32 %v362, %v1787
    %v1790 = vadd.f32 %v1577, %v1789
    %v1791 = vsub.f32 %v1744, %v1732
    %v1793 = vrot.slane %v1791, 2
    %1794 = vrot.lane.b32.xlu0 %v1793, 96
    %v1795 = vpop.permute.xlu0 %1794
    %v1797 = vmul.f32 %v362, %v1795
    %v1798 = vadd.f32 %v1585, %v1797
    %v1799 = vmul.f32 %v1765, %v367
    %1801 = vrot.lane.b32.xlu0 %v1799, 32
    %v1802 = vpop.permute.xlu0 %1801
    %s1804 = scalar_lea.vmem [#allocation2], 12
    %1805 = vst.msk [vmem:[%s1804] sm:$0x3] %vm560, %v1802
    %v1806 = vmul.f32 %v1790, %v362
    %s1807 = scalar_lea.vmem [#allocation3], 2
    %1808 = vst.msk [vmem:[%s1807] sm:$0x3] %vm560, %v1806
    %v1809 = vpack.c.bf16 %v1765, %v1765
    %1811 = vrot.lane.b32.xlu0 %v1809, 32
    %v1812 = vpop.permute.xlu0 %1811
    %v1814 = vsel %vm296, %v1812, 0
    %1816 = vmatprep.subr.bf16.mxu0 0
    %1817 = vmatpush1.bf16.msra.mxu0 %v385
    %1818 = vmatprep.subr.bf16.mxu0 0
    %1819 = vmatpush1.bf16.msra.mxu0 %v386
    %1820 = vmatprep.subr.bf16.mxu0 0
    %1821 = vmatpush1.bf16.msra.mxu0 0
    %1822 = vmatprep.subr.bf16.mxu0 0
    %1823 = vmatpush1.bf16.msra.mxu0 0
    %1824 = vmatprep.subr.bf16.mxu0 0
    %1825 = vmatpush1.bf16.msra.mxu0 0
    %1826 = vmatprep.subr.bf16.mxu0 0
    %1827 = vmatpush1.bf16.msra.mxu0 0
    %1828 = vmatprep.subr.bf16.mxu0 0
    %1829 = vmatpush1.bf16.msra.mxu0 0
    %1830 = vmatprep.subr.bf16.mxu0 0
    %1831 = vmatpush1.bf16.msra.mxu0 0
    %1832 = vmatprep.subr.bf16.mxu0 0
    %1833 = vmatpush1.bf16.msra.mxu0 0
    %1834 = vmatprep.subr.bf16.mxu0 0
    %1835 = vmatpush1.bf16.msra.mxu0 0
    %1836 = vmatprep.subr.bf16.mxu0 0
    %1837 = vmatpush1.bf16.msra.mxu0 0
    %1838 = vmatprep.subr.bf16.mxu0 0
    %1839 = vmatpush1.bf16.msra.mxu0 0
    %1840 = vmatprep.subr.bf16.mxu0 0
    %1841 = vmatpush1.bf16.msra.mxu0 0
    %1842 = vmatprep.subr.bf16.mxu0 0
    %1843 = vmatpush1.bf16.msra.mxu0 0
    %1844 = vmatprep.subr.bf16.mxu0 0
    %1845 = vmatpush1.bf16.msra.mxu0 0
    %1846 = vmatprep.subr.bf16.mxu0 0
    %1847 = vmatpush1.bf16.msra.mxu0 0
    %1848 = vmatprep.mubr.bf16.mxu0 0
    %1849 = vmatmul.mubr.bf16.gmra.mrb[0].mxu0 %v1814
    %v1850 = vpop.f32.mrb[0].mxu0
    %v1851 = vadd.f32 0.0, %v1850
    %v1852 = vpop.f32.mrb[0].mxu0
    %v1853 = vpop.f32.mrb[0].mxu0
    %v1854 = vpop.f32.mrb[0].mxu0
    %1855 = vdwg.mxu0
    %v1857 = vrot.slane %v1851, 2
    %v1859 = vadd.f32 %v338, %v1857
    %v1860 = vpack.c.bf16 %v1790, %v1790
    %v1862 = vsel %vm296, %v1860, 0
    %1864 = vmatprep.subr.bf16.mxu0 0
    %1865 = vmatpush1.bf16.msra.mxu0 %v441
    %1866 = vmatprep.subr.bf16.mxu0 0
    %1867 = vmatpush1.bf16.msra.mxu0 %v442
    %1868 = vmatprep.subr.bf16.mxu0 0
    %1869 = vmatpush1.bf16.msra.mxu0 0
    %1870 = vmatprep.subr.bf16.mxu0 0
    %1871 = vmatpush1.bf16.msra.mxu0 0
    %1872 = vmatprep.subr.bf16.mxu0 0
    %1873 = vmatpush1.bf16.msra.mxu0 0
    %1874 = vmatprep.subr.bf16.mxu0 0
    %1875 = vmatpush1.bf16.msra.mxu0 0
    %1876 = vmatprep.subr.bf16.mxu0 0
    %1877 = vmatpush1.bf16.msra.mxu0 0
    %1878 = vmatprep.subr.bf16.mxu0 0
    %1879 = vmatpush1.bf16.msra.mxu0 0
    %1880 = vmatprep.subr.bf16.mxu0 0
    %1881 = vmatpush1.bf16.msra.mxu0 0
    %1882 = vmatprep.subr.bf16.mxu0 0
    %1883 = vmatpush1.bf16.msra.mxu0 0
    %1884 = vmatprep.subr.bf16.mxu0 0
    %1885 = vmatpush1.bf16.msra.mxu0 0
    %1886 = vmatprep.subr.bf16.mxu0 0
    %1887 = vmatpush1.bf16.msra.mxu0 0
    %1888 = vmatprep.subr.bf16.mxu0 0
    %1889 = vmatpush1.bf16.msra.mxu0 0
    %1890 = vmatprep.subr.bf16.mxu0 0
    %1891 = vmatpush1.bf16.msra.mxu0 0
    %1892 = vmatprep.subr.bf16.mxu0 0
    %1893 = vmatpush1.bf16.msra.mxu0 0
    %1894 = vmatprep.subr.bf16.mxu0 0
    %1895 = vmatpush1.bf16.msra.mxu0 0
    %1896 = vmatprep.mubr.bf16.mxu0 0
    %1897 = vmatmul.mubr.bf16.gmra.mrb[0].mxu0 %v1862
    %v1898 = vpop.f32.mrb[0].mxu0
    %v1899 = vadd.f32 0.0, %v1898
    %v1900 = vpop.f32.mrb[0].mxu0
    %v1901 = vpop.f32.mrb[0].mxu0
    %v1902 = vpop.f32.mrb[0].mxu0
    %1903 = vdwg.mxu0
    %v1904 = vadd.f32 %v336, %v1899
    %v1905 = vxor.u32 %v1859, 2147483648
    %v1906 = vmul.f32 %v1905, 1.442695
    %v1907 = vpow.pop %v1906
    %v1908 = vadd.f32 %v1907, 1.0
    %v1909 = vrcp.pop %v1908
    %v1910 = vmul.f32 1.0, %v1909
    %v1911 = vtanh.pop %v1859
    %v1913 = vrot.slane %v1777, 2
    %v1915 = vmul.f32 %v1910, %v1913
    %1917 = vrot.lane.b32.xlu0 %v1911, 64
    %v1918 = vpop.permute.xlu0 %1917
    %v1920 = vmul.f32 %v1910, %v1918
    %1922 = vrot.lane.b32.xlu0 %v1920, 32
    %v1923 = vpop.permute.xlu0 %1922
    %v1925 = vadd.f32 %v1915, %v1923
    %v1926 = vtanh.pop %v1925
    %1928 = vrot.lane.b32.xlu0 %v1926, 64
    %v1929 = vpop.permute.xlu0 %1928
    %v1931 = vmul.f32 %v1910, %v1929
    %v1932 = vxor.u32 %v1904, 2147483648
    %v1933 = vmul.f32 %v1932, 1.442695
    %v1934 = vpow.pop %v1933
    %v1935 = vadd.f32 %v1934, 1.0
    %v1936 = vrcp.pop %v1935
    %v1937 = vmul.f32 1.0, %v1936
    %v1938 = vtanh.pop %v1904
    %1940 = vrot.lane.b32.xlu0 %v1798, 32
    %v1941 = vpop.permute.xlu0 %1940
    %v1943 = vmul.f32 %v1937, %v1941
    %1945 = vrot.lane.b32.xlu0 %v1938, 64
    %v1946 = vpop.permute.xlu0 %1945
    %v1948 = vmul.f32 %v1937, %v1946
    %1950 = vrot.lane.b32.xlu0 %v1948, 32
    %v1951 = vpop.permute.xlu0 %1950
    %v1953 = vadd.f32 %v1943, %v1951
    %v1954 = vtanh.pop %v1953
    %1956 = vrot.lane.b32.xlu0 %v1954, 64
    %v1957 = vpop.permute.xlu0 %1956
    %v1959 = vmul.f32 %v1937, %v1957
    %v1961 = vrot.slane %v1765, 2
    %v1963 = vsub.f32 %v1931, %v1961
    %v1965 = vrot.slane %v1963, 6
    %1966 = vrot.lane.b32.xlu0 %v1965, 32
    %v1967 = vpop.permute.xlu0 %1966
    %v1969 = vmul.f32 %v368, %v1967
    %1971 = vrot.lane.b32.xlu0 %v1969, 96
    %v1972 = vpop.permute.xlu0 %1971
    %v1974 = vadd.f32 %v1765, %v1972
    %1976 = vrot.lane.b32.xlu0 %v1790, 96
    %v1977 = vpop.permute.xlu0 %1976
    %v1979 = vsub.f32 %v1959, %v1977
    %v1980 = vmul.f32 %v361, %v1979
    %1982 = vrot.lane.b32.xlu0 %v1980, 32
    %v1983 = vpop.permute.xlu0 %1982
    %v1985 = vadd.f32 %v1790, %v1983
    %v1986 = vmul.f32 %v1974, %v368
    %1988 = vrot.lane.b32.xlu0 %v1986, 32
    %v1989 = vpop.permute.xlu0 %1988
    %s1991 = scalar_lea.vmem [#allocation2], 14
    %1992 = vst.msk [vmem:[%s1991] sm:$0x3] %vm560, %v1989
    %v1993 = vmul.f32 %v1985, %v361
    %1994 = vst.msk [vmem:[#allocation3] sm:$0x3] %vm560, %v1993
    %v1995 = vld [vmem:[#allocation2] sm:$0x3]
    %v1996 = vld [vmem:[%s773] sm:$0x3]
    %v1997 = vld [vmem:[%s986] sm:$0x3]
    %v1998 = vld [vmem:[%s1192] sm:$0x3]
    %v1999 = vld [vmem:[%s1378] sm:$0x3]
    %v2000 = vld [vmem:[%s1591] sm:$0x3]
    %v2001 = vld [vmem:[%s1804] sm:$0x3]
    %v2002 = vld [vmem:[%s1991] sm:$0x3]
    %v2004 = vrot.slane %v1996, 6
    %v2007 = vrot.slane %v1997, 4
    %v2010 = vrot.slane %v1998, 2
    %v2013 = vrot.slane %v2000, 6
    %v2016 = vrot.slane %v2001, 4
    %v2019 = vrot.slane %v2002, 2
    %v2021 = vsel %vm242, %v1995, %v2004
    %v2022 = vsel %vm248, %v2021, %v2007
    %v2023 = vsel %vm254, %v2022, %v2010
    %v2024 = vsel %vm242, %v1999, %v2013
    %v2025 = vsel %vm248, %v2024, %v2016
    %v2026 = vsel %vm254, %v2025, %v2019
    %v2027 = vld [vmem:[#allocation3] sm:$0x3]
    %v2028 = vld [vmem:[%s1807] sm:$0x3]
    %v2029 = vld [vmem:[%s1594] sm:$0x3]
    %v2030 = vld [vmem:[%s1381] sm:$0x3]
    %v2031 = vld [vmem:[%s1195] sm:$0x3]
    %v2032 = vld [vmem:[%s989] sm:$0x3]
    %v2033 = vld [vmem:[%s776] sm:$0x3]
    %v2034 = vld [vmem:[%s563] sm:$0x3]
    %v2036 = vrot.slane %v2028, 6
    %v2039 = vrot.slane %v2029, 4
    %v2042 = vrot.slane %v2030, 2
    %v2045 = vrot.slane %v2032, 6
    %v2048 = vrot.slane %v2033, 4
    %v2051 = vrot.slane %v2034, 2
    %v2053 = vsel %vm242, %v2027, %v2036
    %v2054 = vsel %vm248, %v2053, %v2039
    %v2055 = vsel %vm254, %v2054, %v2042
    %v2056 = vsel %vm242, %v2031, %v2045
    %v2057 = vsel %vm248, %v2056, %v2048
    %v2058 = vsel %vm254, %v2057, %v2051
    %v2059 = vpack.c.bf16 %v2026, %v2023
    %v2060 = vld [vmem:[#allocation10] sm:$0xf]
    %v2061 = vld [vmem:[#allocation10 + $0x4] sm:$0xf]
    %v2062 = vld [vmem:[#allocation10 + $0x8] sm:$0xf]
    %v2063 = vld [vmem:[#allocation10 + $0xc] sm:$0xf]
    %v2064 = vpack.c.bf16 %v2058, %v2055
    %v2065 = vld [vmem:[#allocation12] sm:$0xf]
    %v2066 = vld [vmem:[#allocation12 + $0x4] sm:$0xf]
    %v2067 = vld [vmem:[#allocation12 + $0x8] sm:$0xf]
    %v2068 = vld [vmem:[#allocation12 + $0xc] sm:$0xf]
    %v2073 = vunpack.c.l.b16 %v2065
    %v2074 = vunpack.c.l.b16 %v2066
    %v2075 = vunpack.c.l.b16 %v2067
    %v2076 = vunpack.c.l.b16 %v2068
    %v2077 = vpack.c.b16 %v2074, %v2073
    %v2078 = vpack.c.b16 %v2076, %v2075
    %v2082 = vsel %vm296, %v2064, 0
    %2084 = vmatprep.subr.bf16.mxu0 0
    %2085 = vmatpush1.bf16.msra.mxu0 %v2077
    %2086 = vmatprep.subr.bf16.mxu0 0
    %2087 = vmatpush1.bf16.msra.mxu0 %v2078
    %2088 = vmatprep.subr.bf16.mxu0 0
    %2089 = vmatpush1.bf16.msra.mxu0 0
    %2090 = vmatprep.subr.bf16.mxu0 0
    %2091 = vmatpush1.bf16.msra.mxu0 0
    %2092 = vmatprep.subr.bf16.mxu0 0
    %2093 = vmatpush1.bf16.msra.mxu0 0
    %2094 = vmatprep.subr.bf16.mxu0 0
    %2095 = vmatpush1.bf16.msra.mxu0 0
    %2096 = vmatprep.subr.bf16.mxu0 0
    %2097 = vmatpush1.bf16.msra.mxu0 0
    %2098 = vmatprep.subr.bf16.mxu0 0
    %2099 = vmatpush1.bf16.msra.mxu0 0
    %2100 = vmatprep.subr.bf16.mxu0 0
    %2101 = vmatpush1.bf16.msra.mxu0 0
    %2102 = vmatprep.subr.bf16.mxu0 0
    %2103 = vmatpush1.bf16.msra.mxu0 0
    %2104 = vmatprep.subr.bf16.mxu0 0
    %2105 = vmatpush1.bf16.msra.mxu0 0
    %2106 = vmatprep.subr.bf16.mxu0 0
    %2107 = vmatpush1.bf16.msra.mxu0 0
    %2108 = vmatprep.subr.bf16.mxu0 0
    %2109 = vmatpush1.bf16.msra.mxu0 0
    %2110 = vmatprep.subr.bf16.mxu0 0
    %2111 = vmatpush1.bf16.msra.mxu0 0
    %2112 = vmatprep.subr.bf16.mxu0 0
    %2113 = vmatpush1.bf16.msra.mxu0 0
    %2114 = vmatprep.subr.bf16.mxu0 0
    %2115 = vmatpush1.bf16.msra.mxu0 0
    %2116 = vmatprep.mubr.bf16.mxu0 0
    %2117 = vmatmul.mubr.bf16.gmra.mrb[0].mxu0 %v2082
    %v2118 = vpop.f32.mrb[0].mxu0
    %v2119 = vadd.f32 0.0, %v2118
    %v2120 = vpop.f32.mrb[0].mxu0
    %v2121 = vpop.f32.mrb[0].mxu0
    %v2122 = vadd.f32 0.0, %v2121
    %v2123 = vpop.f32.mrb[0].mxu0
    %2124 = vdwg.mxu0
    %v2129 = vunpack.c.l.b16 %v2060
    %v2130 = vunpack.c.l.b16 %v2061
    %v2131 = vunpack.c.l.b16 %v2062
    %v2132 = vunpack.c.l.b16 %v2063
    %v2133 = vpack.c.b16 %v2130, %v2129
    %v2134 = vpack.c.b16 %v2132, %v2131
    %v2138 = vsel %vm296, %v2059, 0
    %2140 = vmatprep.subr.bf16.mxu0 0
    %2141 = vmatpush1.bf16.msra.mxu0 %v2133
    %2142 = vmatprep.subr.bf16.mxu0 0
    %2143 = vmatpush1.bf16.msra.mxu0 %v2134
    %2144 = vmatprep.subr.bf16.mxu0 0
    %2145 = vmatpush1.bf16.msra.mxu0 0
    %2146 = vmatprep.subr.bf16.mxu0 0
    %2147 = vmatpush1.bf16.msra.mxu0 0
    %2148 = vmatprep.subr.bf16.mxu0 0
    %2149 = vmatpush1.bf16.msra.mxu0 0
    %2150 = vmatprep.subr.bf16.mxu0 0
    %2151 = vmatpush1.bf16.msra.mxu0 0
    %2152 = vmatprep.subr.bf16.mxu0 0
    %2153 = vmatpush1.bf16.msra.mxu0 0
    %2154 = vmatprep.subr.bf16.mxu0 0
    %2155 = vmatpush1.bf16.msra.mxu0 0
    %2156 = vmatprep.subr.bf16.mxu0 0
    %2157 = vmatpush1.bf16.msra.mxu0 0
    %2158 = vmatprep.subr.bf16.mxu0 0
    %2159 = vmatpush1.bf16.msra.mxu0 0
    %2160 = vmatprep.subr.bf16.mxu0 0
    %2161 = vmatpush1.bf16.msra.mxu0 0
    %2162 = vmatprep.subr.bf16.mxu0 0
    %2163 = vmatpush1.bf16.msra.mxu0 0
    %2164 = vmatprep.subr.bf16.mxu0 0
    %2165 = vmatpush1.bf16.msra.mxu0 0
    %2166 = vmatprep.subr.bf16.mxu0 0
    %2167 = vmatpush1.bf16.msra.mxu0 0
    %2168 = vmatprep.subr.bf16.mxu0 0
    %2169 = vmatpush1.bf16.msra.mxu0 0
    %2170 = vmatprep.subr.bf16.mxu0 0
    %2171 = vmatpush1.bf16.msra.mxu0 0
    %2172 = vmatprep.mubr.bf16.mxu0 0
    %2173 = vmatmul.mubr.bf16.gmra.mrb[0].mxu0 %v2138
    %v2174 = vpop.f32.mrb[0].mxu0
    %v2175 = vadd.f32 %v2119, %v2174
    %v2176 = vpop.f32.mrb[0].mxu0
    %v2177 = vpop.f32.mrb[0].mxu0
    %v2178 = vadd.f32 %v2122, %v2177
    %v2179 = vpop.f32.mrb[0].mxu0
    %2180 = vdwg.mxu0
    %v2181 = vld [vmem:[%s8] sm:$0x1]
    %v2183 = vlaneseq
    %v2184 = vshrl.u32 %v2183, 7
    %v2185 = vsub.s32 0, %v2184
    %v2186 = vrot.slane %v2181, %v2185
    %v2188 = vadd.f32 %v2175, %v2186
    %v2189 = vadd.f32 %v2178, %v2186
    %v2190 = vtanh.pop %v2188
    %v2191 = vtanh.pop %v2189
    %v2192 = vld [vmem:[%s9] sm:$0x1]
    %v2194 = vlaneseq
    %v2195 = vshrl.u32 %v2194, 7
    %v2196 = vsub.s32 0, %v2195
    %v2197 = vrot.slane %v2192, %v2196
    %v2199 = vmul.f32 %v2190, %v2197
    %v2200 = vmul.f32 %v2191, %v2197
    %vm2201 = vcmask 523264
    %v2202 = vsel %vm2201, %v2199, 0.0
    %2203 = vadd.xlane.f32.xlu0 %v2202
    %v2204 = vpop.xlane.xlu0 %2203
    %v2205 = vsel %vm2201, %v2200, 0.0
    %2206 = vadd.xlane.f32.xlu0 %v2205
    %v2207 = vpop.xlane.xlu0 %2206
    %vm2208 = vcmp.gt.f32.partialorder %v361, 0.0
    %v2209 = vsel %vm2208, %v2204, -1e+32
    %vm2210 = vcmp.gt.f32.partialorder %v362, 0.0
    %v2212 = vrot.slane %v2204, 2
    %v2214 = vsel %vm2210, %v2212, -1e+32
    %vm2215 = vcmp.gt.f32.partialorder %v363, 0.0
    %v2216 = vrot.slane %v2204, 4
    %v2218 = vsel %vm2215, %v2216, -1e+32
    %vm2219 = vcmp.gt.f32.partialorder %v364, 0.0
    %v2220 = vrot.slane %v2204, 6
    %v2222 = vsel %vm2219, %v2220, -1e+32
    %vm2223 = vcmp.gt.f32.partialorder %v365, 0.0
    %v2224 = vsel %vm2223, %v2207, -1e+32
    %vm2225 = vcmp.gt.f32.partialorder %v366, 0.0
    %v2227 = vrot.slane %v2207, 2
    %v2229 = vsel %vm2225, %v2227, -1e+32
    %vm2230 = vcmp.gt.f32.partialorder %v367, 0.0
    %v2231 = vrot.slane %v2207, 4
    %v2233 = vsel %vm2230, %v2231, -1e+32
    %vm2234 = vcmp.gt.f32.partialorder %v368, 0.0
    %v2235 = vrot.slane %v2207, 6
    %v2237 = vsel %vm2234, %v2235, -1e+32
    %v2238 = vmax.f32 %v2209, %v2214
    %v2239 = vmax.f32 %v2238, %v2218
    %v2240 = vmax.f32 %v2239, %v2222
    %v2241 = vmax.f32 %v2240, %v2224
    %v2242 = vmax.f32 %v2241, %v2229
    %v2243 = vmax.f32 %v2242, %v2233
    %v2244 = vmax.f32 %v2243, %v2237
    %v2245 = vsub.f32 %v2209, %v2244
    %v2246 = vmul.f32 %v2245, 1.442695
    %v2247 = vpow.pop %v2246
    %v2248 = vsub.f32 %v2214, %v2244
    %v2249 = vmul.f32 %v2248, 1.442695
    %v2250 = vpow.pop %v2249
    %v2251 = vsub.f32 %v2218, %v2244
    %v2252 = vmul.f32 %v2251, 1.442695
    %v2253 = vpow.pop %v2252
    %v2254 = vsub.f32 %v2222, %v2244
    %v2255 = vmul.f32 %v2254, 1.442695
    %v2256 = vpow.pop %v2255
    %v2257 = vsub.f32 %v2224, %v2244
    %v2258 = vmul.f32 %v2257, 1.442695
    %v2259 = vpow.pop %v2258
    %v2260 = vsub.f32 %v2229, %v2244
    %v2261 = vmul.f32 %v2260, 1.442695
    %v2262 = vpow.pop %v2261
    %v2263 = vsub.f32 %v2233, %v2244
    %v2264 = vmul.f32 %v2263, 1.442695
    %v2265 = vpow.pop %v2264
    %v2266 = vsub.f32 %v2237, %v2244
    %v2267 = vmul.f32 %v2266, 1.442695
    %v2268 = vpow.pop %v2267
    %v2269 = vadd.f32 %v2247, %v2250
    %v2270 = vadd.f32 %v2269, %v2253
    %v2271 = vadd.f32 %v2270, %v2256
    %v2272 = vadd.f32 %v2271, %v2259
    %v2273 = vadd.f32 %v2272, %v2262
    %v2274 = vadd.f32 %v2273, %v2265
    %v2275 = vadd.f32 %v2274, %v2268
    %v2276 = vrcp.pop %v2275
    %v2277 = vmul.f32 %v2247, %v2276
    %2279 = vset.pattern.permute.xlu0 0
    %2280 = vperm.xlu0 %2279, %v2277
    %v2281 = vpop.permute.xlu0 %2280
    %v2283 = vmul.f32 %v2281, %v1995
    %v2284 = vadd.f32 %v2283, 0.0
    %v2285 = vmul.f32 %v2281, %v2027
    %v2286 = vadd.f32 %v2285, 0.0
    %v2287 = vmul.f32 %v2250, %v2276
    %2289 = vset.pattern.permute.xlu0 0
    %2290 = vperm.xlu0 %2289, %v2287
    %v2291 = vpop.permute.xlu0 %2290
    %v2293 = vmul.f32 %v2291, %v1996
    %v2294 = vadd.f32 %v2284, %v2293
    %v2295 = vmul.f32 %v2291, %v2028
    %v2296 = vadd.f32 %v2286, %v2295
    %v2297 = vmul.f32 %v2253, %v2276
    %2299 = vset.pattern.permute.xlu0 0
    %2300 = vperm.xlu0 %2299, %v2297
    %v2301 = vpop.permute.xlu0 %2300
    %v2303 = vmul.f32 %v2301, %v1997
    %v2304 = vadd.f32 %v2294, %v2303
    %v2305 = vmul.f32 %v2301, %v2029
    %v2306 = vadd.f32 %v2296, %v2305
    %v2307 = vmul.f32 %v2256, %v2276
    %2309 = vset.pattern.permute.xlu0 0
    %2310 = vperm.xlu0 %2309, %v2307
    %v2311 = vpop.permute.xlu0 %2310
    %v2313 = vmul.f32 %v2311, %v1998
    %v2314 = vadd.f32 %v2304, %v2313
    %v2315 = vmul.f32 %v2311, %v2030
    %v2316 = vadd.f32 %v2306, %v2315
    %v2317 = vmul.f32 %v2259, %v2276
    %2319 = vset.pattern.permute.xlu0 0
    %2320 = vperm.xlu0 %2319, %v2317
    %v2321 = vpop.permute.xlu0 %2320
    %v2323 = vmul.f32 %v2321, %v1999
    %v2324 = vadd.f32 %v2314, %v2323
    %v2325 = vmul.f32 %v2321, %v2031
    %v2326 = vadd.f32 %v2316, %v2325
    %v2327 = vmul.f32 %v2262, %v2276
    %2329 = vset.pattern.permute.xlu0 0
    %2330 = vperm.xlu0 %2329, %v2327
    %v2331 = vpop.permute.xlu0 %2330
    %v2333 = vmul.f32 %v2331, %v2000
    %v2334 = vadd.f32 %v2324, %v2333
    %v2335 = vmul.f32 %v2331, %v2032
    %v2336 = vadd.f32 %v2326, %v2335
    %v2337 = vmul.f32 %v2265, %v2276
    %2339 = vset.pattern.permute.xlu0 0
    %2340 = vperm.xlu0 %2339, %v2337
    %v2341 = vpop.permute.xlu0 %2340
    %v2343 = vmul.f32 %v2341, %v2001
    %v2344 = vadd.f32 %v2334, %v2343
    %v2345 = vmul.f32 %v2341, %v2033
    %v2346 = vadd.f32 %v2336, %v2345
    %v2347 = vmul.f32 %v2268, %v2276
    %2349 = vset.pattern.permute.xlu0 0
    %2350 = vperm.xlu0 %2349, %v2347
    %v2351 = vpop.permute.xlu0 %2350
    %v2353 = vmul.f32 %v2351, %v2002
    %v2354 = vadd.f32 %v2344, %v2353
    %v2355 = vmul.f32 %v2351, %v2034
    %v2356 = vadd.f32 %v2346, %v2355
    %2357 = vst.msk [vmem:[#allocation13] sm:$0x3] %vm560, %v2354
    %2359 = vrot.lane.b32.xlu0 %v2356, 32
    %v2360 = vpop.permute.xlu0 %2359
    %vm2362 = vcmask 517376
    %2363 = vst.msk [vmem:[#allocation13] sm:$0x3] %vm2362, %v2360
    // Predicated region
    $region62: #{tpu_custom_call.1} parent=1 // pred_check
      _
    $region63: #{tpu_custom_call.1} parent=1 // pred_check_branch
      %2365 = sbr.rel (0) target = $region65
    $region64: #{tpu_custom_call.1} parent=1 // pred_region
      %s2367 = ssub.s32 32, 32
      %2368 = vsyncadd [#allocation6], %s2367
      %s2370 = sshll.u32 [#allocation13], 4
      %s2371 = int_to_ptr.vmem [resolvable:$true] %s2370
      %2373 = dma.vmem_to_hbm [thread:$0]  %s2371, 32, %s10, [#allocation6]
    $region65: #{tpu_custom_call.1} parent=1 // pred_fallthru
      _
    // Predicated region
    $region66: #{tpu_custom_call.1} parent=1 // pred_check
      _
    $region67: #{tpu_custom_call.1} parent=1 // pred_check_branch
      %2375 = sbr.rel (0) target = $region69
    $region68: #{tpu_custom_call.1} parent=1 // pred_region
      %2376 = dma.done [#allocation6], 32
    $region69: #{tpu_custom_call.1} parent=1 // pred_fallthru
      _
    %2377 = vsyncpa [#allocation5], 1
    %2378 = vsyncpa [#allocation8], 1
    %2379 = vsyncpa [#allocation11], 1
    %2380 = vsyncpa [#allocation6], 1

</llo_original>
